<compile_context>
chip_gen: v7x
topology: tpu7x:2x2x1
jax: 0.10.0
libtpu: 0.0.40
codegen_flags: <defaults>
</compile_context>

<pallas_src>
import functools

import jax
import jax.numpy as jnp
from jax import lax
from jax.experimental import pallas as pl
from jax.experimental.pallas import tpu as pltpu


def fire_kernel(x_ref, wsq_ref, bsq_ref, wx_ref, bx_ref, out_ref, *, W, HW):
    """One grid step processes a block of B images (NHWC, spatial flattened).

    x_ref   : (B, H*W, Cin)    bf16  input activations
    wsq_ref : (Cin, Sq)        bf16  squeeze 1x1 weight
    bsq_ref : (1, Sq)          f32   squeeze bias
    wx_ref  : (9*Sq, E1+E3)    bf16  fused expand weight, rows grouped by ky,
                                     within a group [kx=-1 | kx=0 | kx=+1],
                                     1x1 expand folded into the centre tap
    bx_ref  : (1, E1+E3)       f32   fused expand bias [be1 | be3]
    out_ref : (B, H*W, E1+E3)  f32   channel-concatenated output
    """
    B, _, Cin = x_ref.shape
    Sq = wsq_ref.shape[1]
    K3 = 3 * Sq
    Cout = wx_ref.shape[1]
    M = B * HW

    # ---- squeeze: 1x1 conv as (M, Cin) @ (Cin, Sq); bias + ReLU in f32 ----
    x = x_ref[...].reshape(M, Cin)
    sq = jnp.dot(x, wsq_ref[...], preferred_element_type=jnp.float32)
    sq = jnp.maximum(sq + bsq_ref[...], 0.0)                   # (M, Sq) f32

    # Per-pixel bookkeeping: column within the image row and pixel index
    # within the image (the flattened row axis is batch-major).
    pix = lax.broadcasted_iota(jnp.int32, (M, 1), 0)
    col = pix % W
    pos = pix % HW

    def shift(v, k):
        # result[i] = v[i - k]; every row that wraps (across image rows,
        # images, or the array edge) is zeroed by the caller's mask, so the
        # rotate boundary never reaches the output.
        return pltpu.roll(v, k % M, axis=0)

    # ---- dx taps: sublane rolls (XLU slot) + column masks ------------------
    # Replaces the previous version's 8 sublane-misaligned slab slices and
    # their relayout copies.  Rolls stay in f32 (mature 32-bit rotate path);
    # the cast to bf16 happens once, at the MXU boundary.
    left = jnp.where(col != 0, shift(sq, 1), 0.0)              # dx = -1
    right = jnp.where(col != W - 1, shift(sq, -1), 0.0)        # dx = +1
    v1 = jnp.concatenate([left, sq, right], axis=-1)           # (M, 3Sq), dy=0

    # ---- dy taps: roll the 3*Sq slab by +-W rows + top/bottom masks --------
    # The masks also kill the cross-image contamination of the flat roll.
    v0 = jnp.where(pos >= W, shift(v1, W), 0.0)                # dy = -1
    v2 = jnp.where(pos < HW - W, shift(v1, -W), 0.0)           # dy = +1

    # ---- fused expand: 3 accumulating K=3*Sq matmuls ------------------------
    # No im2col scratch (no narrow stores, no VMEM round-trip); each dy group
    # is contracted against its row-group of the fused weight as soon as it is
    # assembled, so the scheduler overlaps tap assembly (VPU/XLU) with MXU
    # work.  The single result is already [e1 | e3] channel-concatenated.
    acc = jnp.dot(v0.astype(jnp.bfloat16), wx_ref[0:K3, :],
                  preferred_element_type=jnp.float32)
    acc = acc + jnp.dot(v1.astype(jnp.bfloat16), wx_ref[K3:2 * K3, :],
                        preferred_element_type=jnp.float32)
    acc = acc + jnp.dot(v2.astype(jnp.bfloat16), wx_ref[2 * K3:, :],
                        preferred_element_type=jnp.float32)
    out = jnp.maximum(acc + bx_ref[...], 0.0)
    out_ref[...] = out.reshape(B, HW, Cout).astype(out_ref.dtype)


def _vmem_limit_bytes():
    """Per-generation VMEM limit: 3/4 of physical, capped; safe fallback."""
    cap = None
    try:
        cap = getattr(pltpu.get_tpu_info(), "vmem_capacity_bytes", None)
    except Exception:
        cap = None
    if not cap:
        cap = 64 << 20          # conservative default (v7x physical VMEM)
    return int(min(cap * 3 // 4, 112 << 20))


def _vmem_bytes_per_image(hw, cin, sq, cout):
    """Rough per-image VMEM residency of one grid step."""
    in_blk = 2 * hw * cin * 2          # bf16 input block, double buffered
    out_blk = 2 * hw * cout * 4        # f32 output block, double buffered
    slabs = 3 * hw * 3 * sq * 4        # v0/v1/v2 tap slabs (f32)
    slabs += 3 * hw * 3 * sq * 2       # bf16 copies fed to the MXU
    sq_act = 3 * hw * sq * 4           # sq / left / right (f32)
    acc = hw * cout * 4                # f32 accumulator
    return in_blk + out_blk + slabs + sq_act + acc


def _pick_images_per_block(n, hw, cin, sq, cout, vmem_budget, min_steps=4):
    """Largest image block fitting the VMEM budget while keeping enough grid
    steps for the BlockSpec pipeline to hide HBM DMA (>=4 steps preferred,
    then >=2, then whatever fits).  On v7x an even step count additionally
    keeps both TensorCores loaded."""
    per_img = max(1, _vmem_bytes_per_image(hw, cin, sq, cout))
    max_b = max(1, vmem_budget // per_img)
    feasible = [b for b in range(1, n + 1) if n % b == 0 and b <= max_b]
    if not feasible:
        # TODO(synk): add a spatial (image-row) grid axis with dy halos for
        # single images whose working set alone exceeds the VMEM budget.
        return 1
    for steps in (min_steps, 2):
        good = [b for b in feasible if n // b >= steps]
        if good:
            return max(good)
    return max(feasible)


@functools.partial(jax.jit, static_argnames=("images_per_block",))
def fire_forward(x_nchw, wsq, bsq, we1, be1, we3, be3, images_per_block=None):
    """Fire forward pass. x_nchw: (N, Cin, H, W). Weights in PyTorch layout:
       wsq (Sq, Cin, 1, 1), we1 (E1, Sq, 1, 1), we3 (E3, Sq, 3, 3)."""
    N, Cin, H, W = x_nchw.shape
    Sq = wsq.shape[0]
    E1 = we1.shape[0]
    E3 = we3.shape[0]
    Cout = E1 + E3
    HW = H * W

    vmem_limit = _vmem_limit_bytes()
    if images_per_block is None:
        images_per_block = _pick_images_per_block(
            N, HW, Cin, Sq, Cout, vmem_budget=vmem_limit // 2)
    B = images_per_block
    assert N % B == 0

    # NCHW -> NHWC -> (N, H*W, C); channels land on the TPU lane axis.
    # TODO(synk): if the surrounding model can stay NHWC (and tolerate a bf16
    # output), both wrapper transposes and half the HBM writeback disappear —
    # ~1.5-2x end-to-end for this near-memory-bound block.
    x_rows = jnp.transpose(x_nchw, (0, 2, 3, 1)).reshape(N, HW, Cin)
    x_rows = x_rows.astype(jnp.bfloat16)

    # Squeeze weight as (Cin, Sq).
    wsq_m = jnp.transpose(wsq[:, :, 0, 0], (1, 0)).astype(jnp.bfloat16)
    bsq_m = bsq.reshape(1, Sq).astype(jnp.float32)

    # Fused expand weight (9*Sq, E1+E3):
    #   cols [0, E1)     : 1x1 expand, only the centre-tap (k == 4) rows.
    #   cols [E1, Cout)  : 3x3 expand, tap k = ky*3+kx in rows k*Sq..(k+1)*Sq.
    # Row-group g = ky covers rows [3*Sq*g, 3*Sq*(g+1)) and is contracted in
    # the kernel against the [left | centre | right] slab for that dy.
    w3_m = jnp.transpose(we3, (2, 3, 1, 0)).reshape(9 * Sq, E3)
    w1_m = jnp.zeros((9 * Sq, E1), we1.dtype).at[4 * Sq:5 * Sq, :].set(
        jnp.transpose(we1[:, :, 0, 0], (1, 0)))
    wx_m = jnp.concatenate([w1_m, w3_m], axis=1).astype(jnp.bfloat16)
    bx_m = jnp.concatenate([be1, be3]).reshape(1, Cout).astype(jnp.float32)

    flops = 2 * N * HW * (Cin * Sq + 9 * Sq * Cout)
    bytes_accessed = (x_rows.size * 2 + wsq_m.size * 2 + wx_m.size * 2
                      + bsq_m.size * 4 + bx_m.size * 4 + N * HW * Cout * 4)

    out_rows = pl.pallas_call(
        functools.partial(fire_kernel, W=W, HW=HW),
        out_shape=jax.ShapeDtypeStruct((N, HW, Cout), x_nchw.dtype),
        grid_spec=pltpu.PrefetchScalarGridSpec(
            num_scalar_prefetch=0,
            grid=(N // B,),
            in_specs=[
                pl.BlockSpec((B, HW, Cin), lambda n: (n, 0, 0)),
                pl.BlockSpec((Cin, Sq), lambda n: (0, 0)),
                pl.BlockSpec((1, Sq), lambda n: (0, 0)),
                pl.BlockSpec((9 * Sq, Cout), lambda n: (0, 0)),
                pl.BlockSpec((1, Cout), lambda n: (0, 0)),
            ],
            out_specs=pl.BlockSpec((B, HW, Cout), lambda n: (n, 0, 0)),
        ),
        compiler_params=pltpu.CompilerParams(
            dimension_semantics=("parallel",),
            vmem_limit_bytes=vmem_limit),
        cost_estimate=pl.CostEstimate(
            flops=flops, transcendentals=0, bytes_accessed=bytes_accessed),
    )(x_rows, wsq_m, bsq_m, wx_m, bx_m)

    # (N, H*W, Cout) -> NCHW to match the PyTorch output convention.
    return jnp.transpose(out_rows.reshape(N, H, W, Cout), (0, 3, 1, 2))


def _reference_fire(x, wsq, bsq, we1, be1, we3, be3):
    """Pure-JAX f32 reference (NCHW), mirrors the PyTorch module exactly."""
    def conv(x, w, b, pad):
        y = lax.conv_general_dilated(
            x, w, window_strides=(1, 1), padding=[(pad, pad), (pad, pad)],
            dimension_numbers=("NCHW", "OIHW", "NCHW"))
        return y + b[None, :, None, None]

    sq = jax.nn.relu(conv(x, wsq, bsq, 0))
    e1 = jax.nn.relu(conv(sq, we1, be1, 0))
    e3 = jax.nn.relu(conv(sq, we3, be3, 1))
    return jnp.concatenate([e1, e3], axis=1)


if __name__ == "__main__":
    # Fire(inplanes=96, squeeze_planes=16, expand1x1_planes=64,
    #      expand3x3_planes=64) — the first Fire block of SqueezeNet, at a
    # small 16x16 spatial size.  Cout = 128 keeps the output stores lane-dense.
    N, Cin, H, W = 2, 96, 16, 16
    Sq, E1, E3 = 16, 64, 64

    key = jax.random.PRNGKey(0)
    ks = jax.random.split(key, 7)

    def bf16_round(a):
        # Pre-round to bf16-representable values so the bf16 MXU path only
        # differs from the f32 reference by cast/accumulation rounding.
        return a.astype(jnp.bfloat16).astype(jnp.float32)

    x = bf16_round(jax.random.normal(ks[0], (N, Cin, H, W), jnp.float32))
    wsq = bf16_round(0.1 * jax.random.normal(ks[1], (Sq, Cin, 1, 1), jnp.float32))
    bsq = 0.1 * jax.random.normal(ks[2], (Sq,), jnp.float32)
    we1 = bf16_round(0.1 * jax.random.normal(ks[3], (E1, Sq, 1, 1), jnp.float32))
    be1 = 0.1 * jax.random.normal(ks[4], (E1,), jnp.float32)
    we3 = bf16_round(0.1 * jax.random.normal(ks[5], (E3, Sq, 3, 3), jnp.float32))
    be3 = 0.1 * jax.random.normal(ks[6], (E3,), jnp.float32)

    out = fire_forward(x, wsq, bsq, we1, be1, we3, be3)
    out = jax.block_until_ready(out)

    ref = _reference_fire(x, wsq, bsq, we1, be1, we3, be3)
    assert out.shape == (N, E1 + E3, H, W), out.shape
    max_err = float(jnp.max(jnp.abs(out - ref)))
    assert jnp.allclose(out, ref, atol=4e-2, rtol=4e-2), max_err

    print("KERNEL_OK")
</pallas_src>

<mosaic_0001>
module attributes {stable_mosaic.version = 11 : i64} {
  func.func @fire_kernel(%arg0: i32, %arg1: memref<1x256x96xbf16, #tpu.memory_space<vmem>>, %arg2: memref<96x16xbf16, #tpu.memory_space<vmem>>, %arg3: memref<1x16xf32, #tpu.memory_space<vmem>>, %arg4: memref<144x128xbf16, #tpu.memory_space<vmem>>, %arg5: memref<1x128xf32, #tpu.memory_space<vmem>>, %arg6: memref<1x256x128xf32, #tpu.memory_space<vmem>>) attributes {dimension_semantics = [#tpu.dimension_semantics<parallel>], iteration_bounds = array<i64: 2>, scalar_prefetch = 0 : i64, scratch_operands = 0 : i64, tpu.core_type = #tpu.core_type<tc>, window_params = [{transform_indices = @transform_0, window_bounds = array<i64: 1, 256, 96>}, {pipeline_mode = #tpu.pipeline_mode<synchronous>, transform_indices = @transform_1, window_bounds = array<i64: 96, 16>}, {pipeline_mode = #tpu.pipeline_mode<synchronous>, transform_indices = @transform_2, window_bounds = array<i64: 1, 16>}, {pipeline_mode = #tpu.pipeline_mode<synchronous>, transform_indices = @transform_3, window_bounds = array<i64: 144, 128>}, {pipeline_mode = #tpu.pipeline_mode<synchronous>, transform_indices = @transform_4, window_bounds = array<i64: 1, 128>}, {transform_indices = @transform_5, window_bounds = array<i64: 1, 256, 128>}]} {
    %c0 = arith.constant 0 : index
    %c0_0 = arith.constant 0 : index
    %c0_1 = arith.constant 0 : index
    %0 = vector.load %arg1[%c0, %c0_0, %c0_1] : memref<1x256x96xbf16, #tpu.memory_space<vmem>>, vector<1x256x96xbf16>
    %1 = vector.shape_cast %0 : vector<1x256x96xbf16> to vector<256x96xbf16>
    %c0_2 = arith.constant 0 : index
    %c0_3 = arith.constant 0 : index
    %2 = vector.load %arg2[%c0_2, %c0_3] : memref<96x16xbf16, #tpu.memory_space<vmem>>, vector<96x16xbf16>
    %cst = arith.constant dense<0.000000e+00> : vector<256x16xf32>
    %3 = tpu.matmul %1, %2, %cst {dimension_numbers = #tpu.dot_dimension_numbers<[1], [0], [0], [1], [0, 0, 1, 1], [], []>} : vector<256x96xbf16>, vector<96x16xbf16>, vector<256x16xf32> -> vector<256x16xf32>
    %c0_4 = arith.constant 0 : index
    %c0_5 = arith.constant 0 : index
    %4 = vector.load %arg3[%c0_4, %c0_5] : memref<1x16xf32, #tpu.memory_space<vmem>>, vector<1x16xf32>
    %5 = vector.broadcast %4 : vector<1x16xf32> to vector<256x16xf32>
    %6 = arith.addf %3, %5 : vector<256x16xf32>
    %cst_6 = arith.constant 0.000000e+00 : f32
    %7 = vector.broadcast %cst_6 : f32 to vector<256x16xf32>
    %8 = arith.maximumf %6, %7 : vector<256x16xf32>
    %9 = tpu.iota {dimensions = array<i32: 0>} : vector<256x1xi32>
    %c16_i32 = arith.constant 16 : i32
    %c0_i32 = arith.constant 0 : i32
    %10 = arith.cmpi eq, %c16_i32, %c0_i32 : i32
    %c1_i32 = arith.constant 1 : i32
    %11 = arith.select %10, %c1_i32, %c16_i32 : i32
    %12 = vector.broadcast %11 : i32 to vector<256x1xi32>
    %13 = arith.remsi %9, %12 : vector<256x1xi32>
    %c0_i32_7 = arith.constant 0 : i32
    %14 = vector.broadcast %c0_i32_7 : i32 to vector<256x1xi32>
    %15 = arith.cmpi ne, %13, %14 : vector<256x1xi32>
    %c0_i32_8 = arith.constant 0 : i32
    %16 = vector.broadcast %c0_i32_8 : i32 to vector<256x1xi32>
    %17 = arith.cmpi slt, %13, %16 : vector<256x1xi32>
    %c0_i32_9 = arith.constant 0 : i32
    %18 = arith.cmpi slt, %11, %c0_i32_9 : i32
    %19 = vector.broadcast %18 : i1 to vector<256x1xi1>
    %20 = vector.broadcast %19 : vector<256x1xi1> to vector<256x1xi1>
    %21 = arith.xori %17, %20 : vector<256x1xi1>
    %22 = arith.andi %21, %15 : vector<256x1xi1>
    %23 = vector.broadcast %11 : i32 to vector<256x1xi32>
    %24 = arith.addi %13, %23 : vector<256x1xi32>
    %25 = arith.select %22, %24, %13 : vector<256x1xi1>, vector<256x1xi32>
    %c256_i32 = arith.constant 256 : i32
    %c0_i32_10 = arith.constant 0 : i32
    %26 = arith.cmpi eq, %c256_i32, %c0_i32_10 : i32
    %c1_i32_11 = arith.constant 1 : i32
    %27 = arith.select %26, %c1_i32_11, %c256_i32 : i32
    %28 = vector.broadcast %27 : i32 to vector<256x1xi32>
    %29 = arith.remsi %9, %28 : vector<256x1xi32>
    %c0_i32_12 = arith.constant 0 : i32
    %30 = vector.broadcast %c0_i32_12 : i32 to vector<256x1xi32>
    %31 = arith.cmpi ne, %29, %30 : vector<256x1xi32>
    %c0_i32_13 = arith.constant 0 : i32
    %32 = vector.broadcast %c0_i32_13 : i32 to vector<256x1xi32>
    %33 = arith.cmpi slt, %29, %32 : vector<256x1xi32>
    %c0_i32_14 = arith.constant 0 : i32
    %34 = arith.cmpi slt, %27, %c0_i32_14 : i32
    %35 = vector.broadcast %34 : i1 to vector<256x1xi1>
    %36 = vector.broadcast %35 : vector<256x1xi1> to vector<256x1xi1>
    %37 = arith.xori %33, %36 : vector<256x1xi1>
    %38 = arith.andi %37, %31 : vector<256x1xi1>
    %39 = vector.broadcast %27 : i32 to vector<256x1xi32>
    %40 = arith.addi %29, %39 : vector<256x1xi32>
    %41 = arith.select %38, %40, %29 : vector<256x1xi1>, vector<256x1xi32>
    %c0_i32_15 = arith.constant 0 : i32
    %42 = vector.broadcast %c0_i32_15 : i32 to vector<256x1xi32>
    %43 = arith.cmpi ne, %25, %42 : vector<256x1xi32>
    %c1_i32_16 = arith.constant 1 : i32
    %44 = tpu.dynamic_rotate %8 by %c1_i32_16 dim 0 : vector<256x16xf32>, i32 -> vector<256x16xf32>
    %cst_17 = arith.constant 0.000000e+00 : f32
    %45 = vector.shape_cast %43 : vector<256x1xi1> to vector<256x1xi1>
    %46 = vector.broadcast %45 : vector<256x1xi1> to vector<256x16xi1>
    %47 = vector.broadcast %cst_17 : f32 to vector<256x16xf32>
    %48 = arith.select %46, %44, %47 : vector<256x16xi1>, vector<256x16xf32>
    %c15_i32 = arith.constant 15 : i32
    %49 = vector.broadcast %c15_i32 : i32 to vector<256x1xi32>
    %50 = arith.cmpi ne, %25, %49 : vector<256x1xi32>
    %c255_i32 = arith.constant 255 : i32
    %51 = tpu.dynamic_rotate %8 by %c255_i32 dim 0 : vector<256x16xf32>, i32 -> vector<256x16xf32>
    %cst_18 = arith.constant 0.000000e+00 : f32
    %52 = vector.shape_cast %50 : vector<256x1xi1> to vector<256x1xi1>
    %53 = vector.broadcast %52 : vector<256x1xi1> to vector<256x16xi1>
    %54 = vector.broadcast %cst_18 : f32 to vector<256x16xf32>
    %55 = arith.select %53, %51, %54 : vector<256x16xi1>, vector<256x16xf32>
    %56 = tpu.concatenate %48, %8, %55 in 1 : vector<256x16xf32>, vector<256x16xf32>, vector<256x16xf32> -> vector<256x48xf32>
    %c16_i32_19 = arith.constant 16 : i32
    %57 = vector.broadcast %c16_i32_19 : i32 to vector<256x1xi32>
    %58 = arith.cmpi sge, %41, %57 : vector<256x1xi32>
    %c16_i32_20 = arith.constant 16 : i32
    %59 = tpu.dynamic_rotate %56 by %c16_i32_20 dim 0 : vector<256x48xf32>, i32 -> vector<256x48xf32>
    %cst_21 = arith.constant 0.000000e+00 : f32
    %60 = vector.shape_cast %58 : vector<256x1xi1> to vector<256x1xi1>
    %61 = vector.broadcast %60 : vector<256x1xi1> to vector<256x48xi1>
    %62 = vector.broadcast %cst_21 : f32 to vector<256x48xf32>
    %63 = arith.select %61, %59, %62 : vector<256x48xi1>, vector<256x48xf32>
    %c240_i32 = arith.constant 240 : i32
    %64 = vector.broadcast %c240_i32 : i32 to vector<256x1xi32>
    %65 = arith.cmpi slt, %41, %64 : vector<256x1xi32>
    %c240_i32_22 = arith.constant 240 : i32
    %66 = tpu.dynamic_rotate %56 by %c240_i32_22 dim 0 : vector<256x48xf32>, i32 -> vector<256x48xf32>
    %cst_23 = arith.constant 0.000000e+00 : f32
    %67 = vector.shape_cast %65 : vector<256x1xi1> to vector<256x1xi1>
    %68 = vector.broadcast %67 : vector<256x1xi1> to vector<256x48xi1>
    %69 = vector.broadcast %cst_23 : f32 to vector<256x48xf32>
    %70 = arith.select %68, %66, %69 : vector<256x48xi1>, vector<256x48xf32>
    %71 = arith.truncf %63 : vector<256x48xf32> to vector<256x48xbf16>
    %c0_24 = arith.constant 0 : index
    %c0_25 = arith.constant 0 : index
    %72 = vector.load %arg4[%c0_24, %c0_25] : memref<144x128xbf16, #tpu.memory_space<vmem>>, vector<48x128xbf16>
    %cst_26 = arith.constant dense<0.000000e+00> : vector<256x128xf32>
    %73 = tpu.matmul %71, %72, %cst_26 {dimension_numbers = #tpu.dot_dimension_numbers<[1], [0], [0], [1], [0, 0, 1, 1], [], []>} : vector<256x48xbf16>, vector<48x128xbf16>, vector<256x128xf32> -> vector<256x128xf32>
    %74 = arith.truncf %56 : vector<256x48xf32> to vector<256x48xbf16>
    %c48 = arith.constant 48 : index
    %c0_27 = arith.constant 0 : index
    %75 = vector.load %arg4[%c48, %c0_27] : memref<144x128xbf16, #tpu.memory_space<vmem>>, vector<48x128xbf16>
    %cst_28 = arith.constant dense<0.000000e+00> : vector<256x128xf32>
    %76 = tpu.matmul %74, %75, %cst_28 {dimension_numbers = #tpu.dot_dimension_numbers<[1], [0], [0], [1], [0, 0, 1, 1], [], []>} : vector<256x48xbf16>, vector<48x128xbf16>, vector<256x128xf32> -> vector<256x128xf32>
    %77 = arith.addf %73, %76 : vector<256x128xf32>
    %78 = arith.truncf %70 : vector<256x48xf32> to vector<256x48xbf16>
    %c96 = arith.constant 96 : index
    %c0_29 = arith.constant 0 : index
    %79 = vector.load %arg4[%c96, %c0_29] : memref<144x128xbf16, #tpu.memory_space<vmem>>, vector<48x128xbf16>
    %cst_30 = arith.constant dense<0.000000e+00> : vector<256x128xf32>
    %80 = tpu.matmul %78, %79, %cst_30 {dimension_numbers = #tpu.dot_dimension_numbers<[1], [0], [0], [1], [0, 0, 1, 1], [], []>} : vector<256x48xbf16>, vector<48x128xbf16>, vector<256x128xf32> -> vector<256x128xf32>
    %81 = arith.addf %77, %80 : vector<256x128xf32>
    %c0_31 = arith.constant 0 : index
    %c0_32 = arith.constant 0 : index
    %82 = vector.load %arg5[%c0_31, %c0_32] : memref<1x128xf32, #tpu.memory_space<vmem>>, vector<1x128xf32>
    %83 = vector.broadcast %82 : vector<1x128xf32> to vector<256x128xf32>
    %84 = arith.addf %81, %83 : vector<256x128xf32>
    %cst_33 = arith.constant 0.000000e+00 : f32
    %85 = vector.broadcast %cst_33 : f32 to vector<256x128xf32>
    %86 = arith.maximumf %84, %85 : vector<256x128xf32>
    %87 = vector.shape_cast %86 : vector<256x128xf32> to vector<1x256x128xf32>
    %c0_34 = arith.constant 0 : index
    %c0_35 = arith.constant 0 : index
    %c0_36 = arith.constant 0 : index
    %88 = vector.load %arg6[%c0_34, %c0_35, %c0_36] : memref<1x256x128xf32, #tpu.memory_space<vmem>>, vector<1x256x128xf32>
    tpu.vector_store %arg6[%c0_34, %c0_35, %c0_36], %87 {strides = array<i32>} : memref<1x256x128xf32, #tpu.memory_space<vmem>>, vector<1x256x128xf32>,
    return
  }
  func.func @transform_0(%arg0: i32) -> (i32, i32, i32) {
    %c0_i32 = arith.constant 0 : i32
    %c0_i32_0 = arith.constant 0 : i32
    %c0_i32_1 = arith.constant 0 : i32
    return %arg0, %c0_i32, %c0_i32_0 : i32, i32, i32
  }
  func.func @transform_1(%arg0: i32) -> (i32, i32) {
    %c0_i32 = arith.constant 0 : i32
    %c0_i32_0 = arith.constant 0 : i32
    %c0_i32_1 = arith.constant 0 : i32
    return %c0_i32, %c0_i32_0 : i32, i32
  }
  func.func @transform_2(%arg0: i32) -> (i32, i32) {
    %c0_i32 = arith.constant 0 : i32
    %c0_i32_0 = arith.constant 0 : i32
    %c0_i32_1 = arith.constant 0 : i32
    return %c0_i32, %c0_i32_0 : i32, i32
  }
  func.func @transform_3(%arg0: i32) -> (i32, i32) {
    %c0_i32 = arith.constant 0 : i32
    %c0_i32_0 = arith.constant 0 : i32
    %c0_i32_1 = arith.constant 0 : i32
    return %c0_i32, %c0_i32_0 : i32, i32
  }
  func.func @transform_4(%arg0: i32) -> (i32, i32) {
    %c0_i32 = arith.constant 0 : i32
    %c0_i32_0 = arith.constant 0 : i32
    %c0_i32_1 = arith.constant 0 : i32
    return %c0_i32, %c0_i32_0 : i32, i32
  }
  func.func @transform_5(%arg0: i32) -> (i32, i32, i32) {
    %c0_i32 = arith.constant 0 : i32
    %c0_i32_0 = arith.constant 0 : i32
    %c0_i32_1 = arith.constant 0 : i32
    return %arg0, %c0_i32, %c0_i32_0 : i32, i32, i32
  }
}

</mosaic_0001>

<llo_original>
// kernel: fire_forward.1
$region0: #{fire_forward.1}
  #allocation0 [shape = 'u32[]', space=smem, size = 0x4, offset = 0x4, fixed_abs, tag = 'smem constant byte address 0x4 - core index']
  #allocation1 [shape = 'u32[144,128]{1,0:T(1,128)}', space=vmem, size = 0x12000, scoped, tag = 'internal scratch']
  %s0 = inlined_call_operand.vmem [shape: bf16[2,256,96], index: 0, kind: input, shape index: {}]
  %s1 = inlined_call_operand.vmem [shape: bf16[96,16], index: 1, kind: input, shape index: {}]
  %s2 = inlined_call_operand.vmem [shape: f32[1,16], index: 2, kind: input, shape index: {}]
  %s3 = inlined_call_operand.vmem [shape: bf16[144,128], index: 3, kind: input, shape index: {}]
  %s4 = inlined_call_operand.vmem [shape: f32[1,128], index: 4, kind: input, shape index: {}]
  %s5 = inlined_call_operand.hbm [shape: f32[2,256,128], index: 5, kind: output, shape index: {}]
  %s6 = sld [smem:[#allocation0]]
  $region53: #{fire_forward.1} parent=0
    _
  %s8 = ssub.s32 1, %s6
  %s9 = scalar_select 0, %s8, %s6
  $region1: #{fire_forward.1} parent=0
    #allocation2 [shape = 'u8[262144]{0}', space=vmem, size = 0x40000, scoped, tag = 'output window, operand 0']
    #allocation3 [shape = 's32[2]{0}', space=sflag, size = 0x8, scoped, tag = 'scoped memory for fire_forward.1']
    %10 = vsyncpa [#allocation3], 0
    %s11 = scalar_lea.sflag [#allocation3], 1
    %12 = vsyncpa %s11, 0
    loop: start=0, step=1, limit=4
    $region2: #{fire_forward.1} parent=1 // loop_pre_header
      _
    $region3: #{fire_forward.1} parent=1 // loop_header
      %s14 = sphi 0, %s18
      %p15 = scmp.ge.s32.totalorder %s14, 4
      %s24 = sphi 0, %s26
      %s27 = sphi 0, %s24
      %s28 = sphi 0, %s27
      %s44 = sphi 0, %s28
      %s48 = sphi 0, %s48
      %s50 = sphi 0, %s48
      %s51 = sphi 0, %s50
      %s65 = sphi 0, %s51
      %s69 = sphi 0, %s69
      %s71 = sphi 0, %s69
      %s72 = sphi 0, %s71
      %s86 = sphi 0, %s72
      %s90 = sphi 0, %s90
      %s92 = sphi 0, %s90
      %s93 = sphi 0, %s92
      %s107 = sphi 0, %s93
      %s111 = sphi 0, %s111
      %s113 = sphi 0, %s111
      %s114 = sphi 0, %s113
      %s128 = sphi 0, %s114
      %s134 = sphi 0, %s136
      %s137 = sphi 0, %s134
      %s138 = sphi 0, %s137
      %s154 = sphi 0, %s138
    $region4: #{fire_forward.1} parent=1 // loop_header_branch
      %17 = sbr.rel (%p15) target = $region8
    $region5: #{fire_forward.1} parent=1 // loop_body
      %s19 = ssub.s32 %s14, 1
      %s20 = ssub.s32 %s14, 2
      %s21 = sadd.s32 %s14, 1
      %s22 = ssub.s32 %s14, %s21
      %p23 = scmp.eq.s32.totalorder %s22, 0
      %s25 = sadd.s32 %s24, 1
      %s26 = scalar_select %p23, %s24, %s25
      %p29 = pneg %p23
      %p30 = scmp.eq.s32.totalorder %s14, 1
      %p31 = por %p29, %p30
      %p32 = scmp.ne.s32.totalorder %s24, %s27
      %p33 = scmp.eq.s32.totalorder %s14, 0
      %p34 = por %p32, %p33
      %p35 = scmp.ne.s32.totalorder %s24, %s27
      %p36 = scmp.eq.s32.totalorder %s19, 1
      %p37 = por %p35, %p36
      %p38 = scmp.ne.s32.totalorder %s27, %s28
      %p39 = scmp.eq.s32.totalorder %s19, 0
      %p40 = por %p38, %p39
      %p41 = scmp.ne.s32.totalorder %s27, %s28
      %p42 = scmp.eq.s32.totalorder %s20, 1
      %p43 = por %p41, %p42
      %p45 = scmp.ne.s32.totalorder %s28, %s44
      %p46 = scmp.eq.s32.totalorder %s20, 0
      %p47 = por %p45, %p46
      %s49 = sadd.s32 %s48, 1
      %p52 = scmp.eq.s32.totalorder %s14, 1
      %p53 = scmp.ne.s32.totalorder %s48, %s50
      %p54 = scmp.eq.s32.totalorder %s14, 0
      %p55 = por %p53, %p54
      %p56 = scmp.ne.s32.totalorder %s48, %s50
      %p57 = scmp.eq.s32.totalorder %s19, 1
      %p58 = por %p56, %p57
      %p59 = scmp.ne.s32.totalorder %s50, %s51
      %p60 = scmp.eq.s32.totalorder %s19, 0
      %p61 = por %p59, %p60
      %p62 = scmp.ne.s32.totalorder %s50, %s51
      %p63 = scmp.eq.s32.totalorder %s20, 1
      %p64 = por %p62, %p63
      %p66 = scmp.ne.s32.totalorder %s51, %s65
      %p67 = scmp.eq.s32.totalorder %s20, 0
      %p68 = por %p66, %p67
      %s70 = sadd.s32 %s69, 1
      %p73 = scmp.eq.s32.totalorder %s14, 1
      %p74 = scmp.ne.s32.totalorder %s69, %s71
      %p75 = scmp.eq.s32.totalorder %s14, 0
      %p76 = por %p74, %p75
      %p77 = scmp.ne.s32.totalorder %s69, %s71
      %p78 = scmp.eq.s32.totalorder %s19, 1
      %p79 = por %p77, %p78
      %p80 = scmp.ne.s32.totalorder %s71, %s72
      %p81 = scmp.eq.s32.totalorder %s19, 0
      %p82 = por %p80, %p81
      %p83 = scmp.ne.s32.totalorder %s71, %s72
      %p84 = scmp.eq.s32.totalorder %s20, 1
      %p85 = por %p83, %p84
      %p87 = scmp.ne.s32.totalorder %s72, %s86
      %p88 = scmp.eq.s32.totalorder %s20, 0
      %p89 = por %p87, %p88
      %s91 = sadd.s32 %s90, 1
      %p94 = scmp.eq.s32.totalorder %s14, 1
      %p95 = scmp.ne.s32.totalorder %s90, %s92
      %p96 = scmp.eq.s32.totalorder %s14, 0
      %p97 = por %p95, %p96
      %p98 = scmp.ne.s32.totalorder %s90, %s92
      %p99 = scmp.eq.s32.totalorder %s19, 1
      %p100 = por %p98, %p99
      %p101 = scmp.ne.s32.totalorder %s92, %s93
      %p102 = scmp.eq.s32.totalorder %s19, 0
      %p103 = por %p101, %p102
      %p104 = scmp.ne.s32.totalorder %s92, %s93
      %p105 = scmp.eq.s32.totalorder %s20, 1
      %p106 = por %p104, %p105
      %p108 = scmp.ne.s32.totalorder %s93, %s107
      %p109 = scmp.eq.s32.totalorder %s20, 0
      %p110 = por %p108, %p109
      %s112 = sadd.s32 %s111, 1
      %p115 = scmp.eq.s32.totalorder %s14, 1
      %p116 = scmp.ne.s32.totalorder %s111, %s113
      %p117 = scmp.eq.s32.totalorder %s14, 0
      %p118 = por %p116, %p117
      %p119 = scmp.ne.s32.totalorder %s111, %s113
      %p120 = scmp.eq.s32.totalorder %s19, 1
      %p121 = por %p119, %p120
      %p122 = scmp.ne.s32.totalorder %s113, %s114
      %p123 = scmp.eq.s32.totalorder %s19, 0
      %p124 = por %p122, %p123
      %p125 = scmp.ne.s32.totalorder %s113, %s114
      %p126 = scmp.eq.s32.totalorder %s20, 1
      %p127 = por %p125, %p126
      %p129 = scmp.ne.s32.totalorder %s114, %s128
      %p130 = scmp.eq.s32.totalorder %s20, 0
      %p131 = por %p129, %p130
      %s132 = ssub.s32 %s14, %s21
      %p133 = scmp.eq.s32.totalorder %s132, 0
      %s135 = sadd.s32 %s134, 1
      %s136 = scalar_select %p133, %s134, %s135
      %p139 = pneg %p133
      %p140 = scmp.eq.s32.totalorder %s14, 1
      %p141 = por %p139, %p140
      %p142 = scmp.ne.s32.totalorder %s134, %s137
      %p143 = scmp.eq.s32.totalorder %s14, 0
      %p144 = por %p142, %p143
      %p145 = scmp.ne.s32.totalorder %s134, %s137
      %p146 = scmp.eq.s32.totalorder %s19, 1
      %p147 = por %p145, %p146
      %p148 = scmp.ne.s32.totalorder %s137, %s138
      %p149 = scmp.eq.s32.totalorder %s19, 0
      %p150 = por %p148, %p149
      %p151 = scmp.ne.s32.totalorder %s137, %s138
      %p152 = scmp.eq.s32.totalorder %s20, 1
      %p153 = por %p151, %p152
      %p155 = scmp.ne.s32.totalorder %s138, %s154
      %p156 = scmp.eq.s32.totalorder %s20, 0
      %p157 = por %p155, %p156
      %p158 = scmp.le.s32.totalorder 1, %s14
      %p159 = scmp.lt.s32.totalorder %s14, 3
      %p160 = pnand %p158, %p159
      %p161 = pneg %p160
      // Predicated region
      $region9: #{fire_forward.1} parent=5 // pred_check
        _
      $region10: #{fire_forward.1} parent=5 // pred_check_branch
        %163 = sbr.rel (%p160) target = $region12
      $region11: #{fire_forward.1} parent=5 // pred_region
        %s164 = ssub.s32 %s14, 1
        // Predicated region
        $region13: #{fire_forward.1} parent=11 // pred_check
          %p165 = pneg %p61
        $region14: #{fire_forward.1} parent=11 // pred_check_branch
          %167 = sbr.rel (%p165) target = $region16
        $region15: #{fire_forward.1} parent=11 // pred_region
          _
        $region16: #{fire_forward.1} parent=11 // pred_fallthru
          _
        // Predicated region
        $region17: #{fire_forward.1} parent=11 // pred_check
          %p168 = pneg %p82
        $region18: #{fire_forward.1} parent=11 // pred_check_branch
          %170 = sbr.rel (%p168) target = $region20
        $region19: #{fire_forward.1} parent=11 // pred_region
          _
        $region20: #{fire_forward.1} parent=11 // pred_fallthru
          _
        // Predicated region
        $region21: #{fire_forward.1} parent=11 // pred_check
          %p171 = pneg %p103
        $region22: #{fire_forward.1} parent=11 // pred_check_branch
          %173 = sbr.rel (%p171) target = $region24
        $region23: #{fire_forward.1} parent=11 // pred_region
          _
        $region24: #{fire_forward.1} parent=11 // pred_fallthru
          _
        // Predicated region
        $region25: #{fire_forward.1} parent=11 // pred_check
          %p174 = pneg %p124
        $region26: #{fire_forward.1} parent=11 // pred_check_branch
          %176 = sbr.rel (%p174) target = $region28
        $region27: #{fire_forward.1} parent=11 // pred_region
          _
        $region28: #{fire_forward.1} parent=11 // pred_fallthru
          _
      $region12: #{fire_forward.1} parent=5 // pred_fallthru
        _
      %p177 = scmp.lt.s32.totalorder %s14, 2
      // Predicated region
      $region29: #{fire_forward.1} parent=5 // pred_check
        %p178 = pneg %p177
      $region30: #{fire_forward.1} parent=5 // pred_check_branch
        %180 = sbr.rel (%p178) target = $region32
      $region31: #{fire_forward.1} parent=5 // pred_region
        // Predicated region
        $region33: #{fire_forward.1} parent=31 // pred_check
          %p181 = pneg %p34
        $region34: #{fire_forward.1} parent=31 // pred_check_branch
          %183 = sbr.rel (%p181) target = $region36
        $region35: #{fire_forward.1} parent=31 // pred_region
          %p184 = scmp.lt.s32.totalorder %s14, 1
          %s185 = scalar_select %p184, %s14, 1
          %s186 = smul.addr %s185, 32
          %s187 = smul.addr %s186, 4
          %s188 = scalar_lea.vmem %s0, %s187
        $region36: #{fire_forward.1} parent=31 // pred_fallthru
          _
      $region32: #{fire_forward.1} parent=5 // pred_fallthru
        _
      %p189 = scmp.le.s32.totalorder 1, %s14
      %p190 = scmp.lt.s32.totalorder %s14, 3
      %p191 = pnand %p189, %p190
      %p192 = pneg %p191
      // Predicated region
      $region37: #{fire_forward.1} parent=5 // pred_check
        _
      $region38: #{fire_forward.1} parent=5 // pred_check_branch
        %194 = sbr.rel (%p191) target = $region40
      $region39: #{fire_forward.1} parent=5 // pred_region
        %s195 = ssub.s32 %s14, 1
        %p196 = scmp.lt.s32.totalorder %s19, 1
        %s197 = scalar_select %p196, %s19, 1
        %s198 = smul.addr %s197, 32
        %s199 = smul.addr %s198, 4
        %s200 = scalar_lea.vmem %s0, %s199
        %p201 = pneg %p40
        %p202 = pneg %p37
        %p203 = pneg %p61
        %p204 = pneg %p58
        %p205 = pneg %p82
        %p206 = pneg %p79
        %p207 = pneg %p103
        %p208 = pneg %p100
        %p209 = pneg %p124
        %p210 = pneg %p121
        %p211 = pneg %p150
        %p212 = pneg %p147
        %s213 = sand.u32 %s137, 1
        %s214 = scalar_lea.sflag [#allocation3], %s213
        %s215 = sand.u32 %s137, 1
        %s216 = smul.addr %s215, 256
        %s217 = scalar_lea.vmem [#allocation2], %s216
        %p218 = scmp.lt.s32.totalorder %s19, 1
        %s219 = scalar_select %p218, %s19, 1
        %s220 = smul.addr %s219, 32
        %s221 = smul.addr %s220, 4
        %s222 = scalar_lea.vmem %s0, %s221
        %v224 = vld [vmem:[%s222] sm:$0xf]
        %v225 = vld [vmem:[%s222 + $0x4] sm:$0xf]
        %v226 = vld [vmem:[%s222 + $0x8] sm:$0xf]
        %v227 = vld [vmem:[%s222 + $0xc] sm:$0xf]
        %v228 = vld [vmem:[%s222 + $0x10] sm:$0xf]
        %v229 = vld [vmem:[%s222 + $0x14] sm:$0xf]
        %v230 = vld [vmem:[%s222 + $0x18] sm:$0xf]
        %v231 = vld [vmem:[%s222 + $0x1c] sm:$0xf]
        %v232 = vld [vmem:[%s222 + $0x20] sm:$0xf]
        %v233 = vld [vmem:[%s222 + $0x24] sm:$0xf]
        %v234 = vld [vmem:[%s222 + $0x28] sm:$0xf]
        %v235 = vld [vmem:[%s222 + $0x2c] sm:$0xf]
        %v236 = vld [vmem:[%s222 + $0x30] sm:$0xf]
        %v237 = vld [vmem:[%s222 + $0x34] sm:$0xf]
        %v238 = vld [vmem:[%s222 + $0x38] sm:$0xf]
        %v239 = vld [vmem:[%s222 + $0x3c] sm:$0xf]
        %v240 = vld [vmem:[%s222 + $0x40] sm:$0xf]
        %v241 = vld [vmem:[%s222 + $0x44] sm:$0xf]
        %v242 = vld [vmem:[%s222 + $0x48] sm:$0xf]
        %v243 = vld [vmem:[%s222 + $0x4c] sm:$0xf]
        %v244 = vld [vmem:[%s222 + $0x50] sm:$0xf]
        %v245 = vld [vmem:[%s222 + $0x54] sm:$0xf]
        %v246 = vld [vmem:[%s222 + $0x58] sm:$0xf]
        %v247 = vld [vmem:[%s222 + $0x5c] sm:$0xf]
        %v248 = vld [vmem:[%s222 + $0x60] sm:$0xf]
        %v249 = vld [vmem:[%s222 + $0x64] sm:$0xf]
        %v250 = vld [vmem:[%s222 + $0x68] sm:$0xf]
        %v251 = vld [vmem:[%s222 + $0x6c] sm:$0xf]
        %v252 = vld [vmem:[%s222 + $0x70] sm:$0xf]
        %v253 = vld [vmem:[%s222 + $0x74] sm:$0xf]
        %v254 = vld [vmem:[%s222 + $0x78] sm:$0xf]
        %v255 = vld [vmem:[%s222 + $0x7c] sm:$0xf]
        %v256 = vld [vmem:[%s1] sm:$0xf]
        %v257 = vld [vmem:[%s1 + $0x4] sm:$0xf]
        %v258 = vld [vmem:[%s1 + $0x8] sm:$0xf]
        %v259 = vld [vmem:[%s1 + $0xc] sm:$0xf]
        %v260 = vld [vmem:[%s1 + $0x10] sm:$0xf]
        %v261 = vld [vmem:[%s1 + $0x14] sm:$0xf]
        %v262 = vld [vmem:[%s1 + $0x18] sm:$0xf]
        %v263 = vld [vmem:[%s1 + $0x1c] sm:$0xf]
        %v264 = vld [vmem:[%s1 + $0x20] sm:$0xf]
        %v265 = vld [vmem:[%s1 + $0x24] sm:$0xf]
        %v266 = vld [vmem:[%s1 + $0x28] sm:$0xf]
        %v267 = vld [vmem:[%s1 + $0x2c] sm:$0xf]
        %v268 = vld [vmem:[%s2] sm:$0x1]
        %v270 = vlaneseq
        %v271 = vshrl.u32 %v270, 7
        %v272 = vsub.s32 0, %v271
        %v273 = vrot.slane %v268, %v272
        %v307 = vunpack.c.l.b16 %v224
        %v308 = vunpack.c.l.b16 %v225
        %v309 = vunpack.c.l.b16 %v226
        %v310 = vunpack.c.l.b16 %v227
        %v311 = vunpack.c.l.b16 %v228
        %v312 = vunpack.c.l.b16 %v229
        %v313 = vunpack.c.l.b16 %v230
        %v314 = vunpack.c.l.b16 %v231
        %v315 = vunpack.c.l.b16 %v232
        %v316 = vunpack.c.l.b16 %v233
        %v317 = vunpack.c.l.b16 %v234
        %v318 = vunpack.c.l.b16 %v235
        %v319 = vunpack.c.l.b16 %v236
        %v320 = vunpack.c.l.b16 %v237
        %v321 = vunpack.c.l.b16 %v238
        %v322 = vunpack.c.l.b16 %v239
        %v323 = vunpack.c.l.b16 %v240
        %v324 = vunpack.c.l.b16 %v241
        %v325 = vunpack.c.l.b16 %v242
        %v326 = vunpack.c.l.b16 %v243
        %v327 = vunpack.c.l.b16 %v244
        %v328 = vunpack.c.l.b16 %v245
        %v329 = vunpack.c.l.b16 %v246
        %v330 = vunpack.c.l.b16 %v247
        %v331 = vunpack.c.l.b16 %v248
        %v332 = vunpack.c.l.b16 %v249
        %v333 = vunpack.c.l.b16 %v250
        %v334 = vunpack.c.l.b16 %v251
        %v335 = vunpack.c.l.b16 %v252
        %v336 = vunpack.c.l.b16 %v253
        %v337 = vunpack.c.l.b16 %v254
        %v338 = vunpack.c.l.b16 %v255
        %v339 = vpack.c.b16 %v308, %v307
        %v340 = vpack.c.b16 %v310, %v309
        %v341 = vpack.c.b16 %v312, %v311
        %v342 = vpack.c.b16 %v314, %v313
        %v343 = vpack.c.b16 %v316, %v315
        %v344 = vpack.c.b16 %v318, %v317
        %v345 = vpack.c.b16 %v320, %v319
        %v346 = vpack.c.b16 %v322, %v321
        %v347 = vpack.c.b16 %v324, %v323
        %v348 = vpack.c.b16 %v326, %v325
        %v349 = vpack.c.b16 %v328, %v327
        %v350 = vpack.c.b16 %v330, %v329
        %v351 = vpack.c.b16 %v332, %v331
        %v352 = vpack.c.b16 %v334, %v333
        %v353 = vpack.c.b16 %v336, %v335
        %v354 = vpack.c.b16 %v338, %v337
        %v367 = vunpack.c.l.b16 %v256
        %v368 = vunpack.c.l.b16 %v257
        %v369 = vunpack.c.l.b16 %v258
        %v370 = vunpack.c.l.b16 %v259
        %v371 = vunpack.c.l.b16 %v260
        %v372 = vunpack.c.l.b16 %v261
        %v373 = vunpack.c.l.b16 %v262
        %v374 = vunpack.c.l.b16 %v263
        %v375 = vunpack.c.l.b16 %v264
        %v376 = vunpack.c.l.b16 %v265
        %v377 = vunpack.c.l.b16 %v266
        %v378 = vunpack.c.l.b16 %v267
        %v379 = vpack.c.b16 %v368, %v367
        %v380 = vpack.c.b16 %v370, %v369
        %v381 = vpack.c.b16 %v372, %v371
        %v382 = vpack.c.b16 %v374, %v373
        %v383 = vpack.c.b16 %v376, %v375
        %v384 = vpack.c.b16 %v378, %v377
        %vm391 = vcmask 785408
        %v393 = vsel %vm391, %v339, 0
        %v396 = vsel %vm391, %v340, 0
        %v399 = vsel %vm391, %v341, 0
        %v402 = vsel %vm391, %v342, 0
        %v405 = vsel %vm391, %v343, 0
        %v408 = vsel %vm391, %v344, 0
        %v411 = vsel %vm391, %v345, 0
        %v414 = vsel %vm391, %v346, 0
        %v417 = vsel %vm391, %v347, 0
        %v420 = vsel %vm391, %v348, 0
        %v423 = vsel %vm391, %v349, 0
        %v426 = vsel %vm391, %v350, 0
        %v429 = vsel %vm391, %v351, 0
        %v432 = vsel %vm391, %v352, 0
        %v435 = vsel %vm391, %v353, 0
        %v438 = vsel %vm391, %v354, 0
        %440 = vmatprep.subr.bf16.mxu0 0
        %441 = vmatpush1.bf16.msra.mxu0 %v379
        %442 = vmatprep.subr.bf16.mxu0 0
        %443 = vmatpush1.bf16.msra.mxu0 %v380
        %444 = vmatprep.subr.bf16.mxu0 0
        %445 = vmatpush1.bf16.msra.mxu0 %v381
        %446 = vmatprep.subr.bf16.mxu0 0
        %447 = vmatpush1.bf16.msra.mxu0 %v382
        %448 = vmatprep.subr.bf16.mxu0 0
        %449 = vmatpush1.bf16.msra.mxu0 %v383
        %450 = vmatprep.subr.bf16.mxu0 0
        %451 = vmatpush1.bf16.msra.mxu0 %v384
        %452 = vmatprep.subr.bf16.mxu0 0
        %453 = vmatpush1.bf16.msra.mxu0 0
        %454 = vmatprep.subr.bf16.mxu0 0
        %455 = vmatpush1.bf16.msra.mxu0 0
        %456 = vmatprep.subr.bf16.mxu0 0
        %457 = vmatpush1.bf16.msra.mxu0 0
        %458 = vmatprep.subr.bf16.mxu0 0
        %459 = vmatpush1.bf16.msra.mxu0 0
        %460 = vmatprep.subr.bf16.mxu0 0
        %461 = vmatpush1.bf16.msra.mxu0 0
        %462 = vmatprep.subr.bf16.mxu0 0
        %463 = vmatpush1.bf16.msra.mxu0 0
        %464 = vmatprep.subr.bf16.mxu0 0
        %465 = vmatpush1.bf16.msra.mxu0 0
        %466 = vmatprep.subr.bf16.mxu0 0
        %467 = vmatpush1.bf16.msra.mxu0 0
        %468 = vmatprep.subr.bf16.mxu0 0
        %469 = vmatpush1.bf16.msra.mxu0 0
        %470 = vmatprep.subr.bf16.mxu0 0
        %471 = vmatpush1.bf16.msra.mxu0 0
        %472 = vmatprep.mubr.bf16.mxu0 0
        %473 = vmatmul.mubr.bf16.gmra.mrb[0].mxu0 %v393
        %v474 = vpop.f32.mrb[0].mxu0
        %v475 = vadd.f32 %v273, %v474
        %v476 = vpop.f32.mrb[0].mxu0
        %v477 = vpop.f32.mrb[0].mxu0
        %v478 = vadd.f32 %v273, %v477
        %v479 = vpop.f32.mrb[0].mxu0
        %480 = vmatprep.mubr.bf16.mxu0 0
        %481 = vmatmul.mubr.bf16.gmra.mrb[0].mxu0 %v396
        %v482 = vpop.f32.mrb[0].mxu0
        %v483 = vadd.f32 %v273, %v482
        %v484 = vpop.f32.mrb[0].mxu0
        %v485 = vpop.f32.mrb[0].mxu0
        %v486 = vadd.f32 %v273, %v485
        %v487 = vpop.f32.mrb[0].mxu0
        %488 = vmatprep.mubr.bf16.mxu0 0
        %489 = vmatmul.mubr.bf16.gmra.mrb[0].mxu0 %v399
        %v490 = vpop.f32.mrb[0].mxu0
        %v491 = vadd.f32 %v273, %v490
        %v492 = vpop.f32.mrb[0].mxu0
        %v493 = vpop.f32.mrb[0].mxu0
        %v494 = vadd.f32 %v273, %v493
        %v495 = vpop.f32.mrb[0].mxu0
        %496 = vmatprep.mubr.bf16.mxu0 0
        %497 = vmatmul.mubr.bf16.gmra.mrb[0].mxu0 %v402
        %v498 = vpop.f32.mrb[0].mxu0
        %v499 = vadd.f32 %v273, %v498
        %v500 = vpop.f32.mrb[0].mxu0
        %v501 = vpop.f32.mrb[0].mxu0
        %v502 = vadd.f32 %v273, %v501
        %v503 = vpop.f32.mrb[0].mxu0
        %504 = vmatprep.mubr.bf16.mxu0 0
        %505 = vmatmul.mubr.bf16.gmra.mrb[0].mxu0 %v405
        %v506 = vpop.f32.mrb[0].mxu0
        %v507 = vadd.f32 %v273, %v506
        %v508 = vpop.f32.mrb[0].mxu0
        %v509 = vpop.f32.mrb[0].mxu0
        %v510 = vadd.f32 %v273, %v509
        %v511 = vpop.f32.mrb[0].mxu0
        %512 = vmatprep.mubr.bf16.mxu0 0
        %513 = vmatmul.mubr.bf16.gmra.mrb[0].mxu0 %v408
        %v514 = vpop.f32.mrb[0].mxu0
        %v515 = vadd.f32 %v273, %v514
        %v516 = vpop.f32.mrb[0].mxu0
        %v517 = vpop.f32.mrb[0].mxu0
        %v518 = vadd.f32 %v273, %v517
        %v519 = vpop.f32.mrb[0].mxu0
        %520 = vmatprep.mubr.bf16.mxu0 0
        %521 = vmatmul.mubr.bf16.gmra.mrb[0].mxu0 %v411
        %v522 = vpop.f32.mrb[0].mxu0
        %v523 = vadd.f32 %v273, %v522
        %v524 = vpop.f32.mrb[0].mxu0
        %v525 = vpop.f32.mrb[0].mxu0
        %v526 = vadd.f32 %v273, %v525
        %v527 = vpop.f32.mrb[0].mxu0
        %528 = vmatprep.mubr.bf16.mxu0 0
        %529 = vmatmul.mubr.bf16.gmra.mrb[0].mxu0 %v414
        %v530 = vpop.f32.mrb[0].mxu0
        %v531 = vadd.f32 %v273, %v530
        %v532 = vpop.f32.mrb[0].mxu0
        %v533 = vpop.f32.mrb[0].mxu0
        %v534 = vadd.f32 %v273, %v533
        %v535 = vpop.f32.mrb[0].mxu0
        %536 = vmatprep.mubr.bf16.mxu0 0
        %537 = vmatmul.mubr.bf16.gmra.mrb[0].mxu0 %v417
        %v538 = vpop.f32.mrb[0].mxu0
        %v539 = vadd.f32 %v273, %v538
        %v540 = vpop.f32.mrb[0].mxu0
        %v541 = vpop.f32.mrb[0].mxu0
        %v542 = vadd.f32 %v273, %v541
        %v543 = vpop.f32.mrb[0].mxu0
        %544 = vmatprep.mubr.bf16.mxu0 0
        %545 = vmatmul.mubr.bf16.gmra.mrb[0].mxu0 %v420
        %v546 = vpop.f32.mrb[0].mxu0
        %v547 = vadd.f32 %v273, %v546
        %v548 = vpop.f32.mrb[0].mxu0
        %v549 = vpop.f32.mrb[0].mxu0
        %v550 = vadd.f32 %v273, %v549
        %v551 = vpop.f32.mrb[0].mxu0
        %552 = vmatprep.mubr.bf16.mxu0 0
        %553 = vmatmul.mubr.bf16.gmra.mrb[0].mxu0 %v423
        %v554 = vpop.f32.mrb[0].mxu0
        %v555 = vadd.f32 %v273, %v554
        %v556 = vpop.f32.mrb[0].mxu0
        %v557 = vpop.f32.mrb[0].mxu0
        %v558 = vadd.f32 %v273, %v557
        %v559 = vpop.f32.mrb[0].mxu0
        %560 = vmatprep.mubr.bf16.mxu0 0
        %561 = vmatmul.mubr.bf16.gmra.mrb[0].mxu0 %v426
        %v562 = vpop.f32.mrb[0].mxu0
        %v563 = vadd.f32 %v273, %v562
        %v564 = vpop.f32.mrb[0].mxu0
        %v565 = vpop.f32.mrb[0].mxu0
        %v566 = vadd.f32 %v273, %v565
        %v567 = vpop.f32.mrb[0].mxu0
        %568 = vmatprep.mubr.bf16.mxu0 0
        %569 = vmatmul.mubr.bf16.gmra.mrb[0].mxu0 %v429
        %v570 = vpop.f32.mrb[0].mxu0
        %v571 = vadd.f32 %v273, %v570
        %v572 = vpop.f32.mrb[0].mxu0
        %v573 = vpop.f32.mrb[0].mxu0
        %v574 = vadd.f32 %v273, %v573
        %v575 = vpop.f32.mrb[0].mxu0
        %576 = vmatprep.mubr.bf16.mxu0 0
        %577 = vmatmul.mubr.bf16.gmra.mrb[0].mxu0 %v432
        %v578 = vpop.f32.mrb[0].mxu0
        %v579 = vadd.f32 %v273, %v578
        %v580 = vpop.f32.mrb[0].mxu0
        %v581 = vpop.f32.mrb[0].mxu0
        %v582 = vadd.f32 %v273, %v581
        %v583 = vpop.f32.mrb[0].mxu0
        %584 = vmatprep.mubr.bf16.mxu0 0
        %585 = vmatmul.mubr.bf16.gmra.mrb[0].mxu0 %v435
        %v586 = vpop.f32.mrb[0].mxu0
        %v587 = vadd.f32 %v273, %v586
        %v588 = vpop.f32.mrb[0].mxu0
        %v589 = vpop.f32.mrb[0].mxu0
        %v590 = vadd.f32 %v273, %v589
        %v591 = vpop.f32.mrb[0].mxu0
        %592 = vmatprep.mubr.bf16.mxu0 0
        %593 = vmatmul.mubr.bf16.gmra.mrb[0].mxu0 %v438
        %v594 = vpop.f32.mrb[0].mxu0
        %v595 = vadd.f32 %v273, %v594
        %v596 = vpop.f32.mrb[0].mxu0
        %v597 = vpop.f32.mrb[0].mxu0
        %v598 = vadd.f32 %v273, %v597
        %v599 = vpop.f32.mrb[0].mxu0
        %600 = vdwg.mxu0
        %v601 = vmax.f32 %v475, 0.0
        %v602 = vmax.f32 %v478, 0.0
        %v603 = vmax.f32 %v483, 0.0
        %v604 = vmax.f32 %v486, 0.0
        %v605 = vmax.f32 %v491, 0.0
        %v606 = vmax.f32 %v494, 0.0
        %v607 = vmax.f32 %v499, 0.0
        %v608 = vmax.f32 %v502, 0.0
        %v609 = vmax.f32 %v507, 0.0
        %v610 = vmax.f32 %v510, 0.0
        %v611 = vmax.f32 %v515, 0.0
        %v612 = vmax.f32 %v518, 0.0
        %v613 = vmax.f32 %v523, 0.0
        %v614 = vmax.f32 %v526, 0.0
        %v615 = vmax.f32 %v531, 0.0
        %v616 = vmax.f32 %v534, 0.0
        %v617 = vmax.f32 %v539, 0.0
        %v618 = vmax.f32 %v542, 0.0
        %v619 = vmax.f32 %v547, 0.0
        %v620 = vmax.f32 %v550, 0.0
        %v621 = vmax.f32 %v555, 0.0
        %v622 = vmax.f32 %v558, 0.0
        %v623 = vmax.f32 %v563, 0.0
        %v624 = vmax.f32 %v566, 0.0
        %v625 = vmax.f32 %v571, 0.0
        %v626 = vmax.f32 %v574, 0.0
        %v627 = vmax.f32 %v579, 0.0
        %v628 = vmax.f32 %v582, 0.0
        %v629 = vmax.f32 %v587, 0.0
        %v630 = vmax.f32 %v590, 0.0
        %v631 = vmax.f32 %v595, 0.0
        %v632 = vmax.f32 %v598, 0.0
        %v633 = vlaneseq
        %v634 = vshrl.u32 %v633, 7
        %v635 = vadd.s32 %v634, 8
        %v636 = vadd.s32 %v634, 16
        %v637 = vadd.s32 %v634, 24
        %v638 = vadd.s32 %v634, 32
        %v639 = vadd.s32 %v634, 40
        %v640 = vadd.s32 %v634, 48
        %v641 = vadd.s32 %v634, 56
        %v642 = vadd.s32 %v634, 64
        %v643 = vadd.s32 %v634, 72
        %v644 = vadd.s32 %v634, 80
        %v645 = vadd.s32 %v634, 88
        %v646 = vadd.s32 %v634, 96
        %v647 = vadd.s32 %v634, 104
        %v648 = vadd.s32 %v634, 112
        %v649 = vadd.s32 %v634, 120
        %v650 = vadd.s32 %v634, 128
        %v651 = vadd.s32 %v634, 136
        %v652 = vadd.s32 %v634, 144
        %v653 = vadd.s32 %v634, 152
        %v654 = vadd.s32 %v634, 160
        %v655 = vadd.s32 %v634, 168
        %v656 = vadd.s32 %v634, 176
        %v657 = vadd.s32 %v634, 184
        %v658 = vadd.s32 %v634, 192
        %v659 = vadd.s32 %v634, 200
        %v660 = vadd.s32 %v634, 208
        %v661 = vadd.s32 %v634, 216
        %v662 = vadd.s32 %v634, 224
        %v663 = vadd.s32 %v634, 232
        %v664 = vadd.s32 %v634, 240
        %v665 = vadd.s32 %v634, 248
        %vm666 = vcmp.lt.s32.totalorder %v634, 0
        %v667 = vsub.s32 0, %v634
        %v668 = vsel %vm666, %v667, %v634
        %v669 = vshrl.u32 %v668, 4
        %v670 = vand.u32 %v668, 15
        %v671 = vsub.s32 0, %v670
        %v672 = vsel %vm666, %v671, %v670
        %vm673 = vcmp.lt.s32.totalorder %v635, 0
        %v674 = vsub.s32 0, %v635
        %v675 = vsel %vm673, %v674, %v635
        %v676 = vshrl.u32 %v675, 4
        %v677 = vand.u32 %v675, 15
        %v678 = vsub.s32 0, %v677
        %v679 = vsel %vm673, %v678, %v677
        %vm680 = vcmp.lt.s32.totalorder %v636, 0
        %v681 = vsub.s32 0, %v636
        %v682 = vsel %vm680, %v681, %v636
        %v683 = vshrl.u32 %v682, 4
        %v684 = vand.u32 %v682, 15
        %v685 = vsub.s32 0, %v684
        %v686 = vsel %vm680, %v685, %v684
        %vm687 = vcmp.lt.s32.totalorder %v637, 0
        %v688 = vsub.s32 0, %v637
        %v689 = vsel %vm687, %v688, %v637
        %v690 = vshrl.u32 %v689, 4
        %v691 = vand.u32 %v689, 15
        %v692 = vsub.s32 0, %v691
        %v693 = vsel %vm687, %v692, %v691
        %vm694 = vcmp.lt.s32.totalorder %v638, 0
        %v695 = vsub.s32 0, %v638
        %v696 = vsel %vm694, %v695, %v638
        %v697 = vshrl.u32 %v696, 4
        %v698 = vand.u32 %v696, 15
        %v699 = vsub.s32 0, %v698
        %v700 = vsel %vm694, %v699, %v698
        %vm701 = vcmp.lt.s32.totalorder %v639, 0
        %v702 = vsub.s32 0, %v639
        %v703 = vsel %vm701, %v702, %v639
        %v704 = vshrl.u32 %v703, 4
        %v705 = vand.u32 %v703, 15
        %v706 = vsub.s32 0, %v705
        %v707 = vsel %vm701, %v706, %v705
        %vm708 = vcmp.lt.s32.totalorder %v640, 0
        %v709 = vsub.s32 0, %v640
        %v710 = vsel %vm708, %v709, %v640
        %v711 = vshrl.u32 %v710, 4
        %v712 = vand.u32 %v710, 15
        %v713 = vsub.s32 0, %v712
        %v714 = vsel %vm708, %v713, %v712
        %vm715 = vcmp.lt.s32.totalorder %v641, 0
        %v716 = vsub.s32 0, %v641
        %v717 = vsel %vm715, %v716, %v641
        %v718 = vshrl.u32 %v717, 4
        %v719 = vand.u32 %v717, 15
        %v720 = vsub.s32 0, %v719
        %v721 = vsel %vm715, %v720, %v719
        %vm722 = vcmp.lt.s32.totalorder %v642, 0
        %v723 = vsub.s32 0, %v642
        %v724 = vsel %vm722, %v723, %v642
        %v725 = vshrl.u32 %v724, 4
        %v726 = vand.u32 %v724, 15
        %v727 = vsub.s32 0, %v726
        %v728 = vsel %vm722, %v727, %v726
        %vm729 = vcmp.lt.s32.totalorder %v643, 0
        %v730 = vsub.s32 0, %v643
        %v731 = vsel %vm729, %v730, %v643
        %v732 = vshrl.u32 %v731, 4
        %v733 = vand.u32 %v731, 15
        %v734 = vsub.s32 0, %v733
        %v735 = vsel %vm729, %v734, %v733
        %vm736 = vcmp.lt.s32.totalorder %v644, 0
        %v737 = vsub.s32 0, %v644
        %v738 = vsel %vm736, %v737, %v644
        %v739 = vshrl.u32 %v738, 4
        %v740 = vand.u32 %v738, 15
        %v741 = vsub.s32 0, %v740
        %v742 = vsel %vm736, %v741, %v740
        %vm743 = vcmp.lt.s32.totalorder %v645, 0
        %v744 = vsub.s32 0, %v645
        %v745 = vsel %vm743, %v744, %v645
        %v746 = vshrl.u32 %v745, 4
        %v747 = vand.u32 %v745, 15
        %v748 = vsub.s32 0, %v747
        %v749 = vsel %vm743, %v748, %v747
        %vm750 = vcmp.lt.s32.totalorder %v646, 0
        %v751 = vsub.s32 0, %v646
        %v752 = vsel %vm750, %v751, %v646
        %v753 = vshrl.u32 %v752, 4
        %v754 = vand.u32 %v752, 15
        %v755 = vsub.s32 0, %v754
        %v756 = vsel %vm750, %v755, %v754
        %vm757 = vcmp.lt.s32.totalorder %v647, 0
        %v758 = vsub.s32 0, %v647
        %v759 = vsel %vm757, %v758, %v647
        %v760 = vshrl.u32 %v759, 4
        %v761 = vand.u32 %v759, 15
        %v762 = vsub.s32 0, %v761
        %v763 = vsel %vm757, %v762, %v761
        %vm764 = vcmp.lt.s32.totalorder %v648, 0
        %v765 = vsub.s32 0, %v648
        %v766 = vsel %vm764, %v765, %v648
        %v767 = vshrl.u32 %v766, 4
        %v768 = vand.u32 %v766, 15
        %v769 = vsub.s32 0, %v768
        %v770 = vsel %vm764, %v769, %v768
        %vm771 = vcmp.lt.s32.totalorder %v649, 0
        %v772 = vsub.s32 0, %v649
        %v773 = vsel %vm771, %v772, %v649
        %v774 = vshrl.u32 %v773, 4
        %v775 = vand.u32 %v773, 15
        %v776 = vsub.s32 0, %v775
        %v777 = vsel %vm771, %v776, %v775
        %vm778 = vcmp.lt.s32.totalorder %v650, 0
        %v779 = vsub.s32 0, %v650
        %v780 = vsel %vm778, %v779, %v650
        %v781 = vshrl.u32 %v780, 4
        %v782 = vand.u32 %v780, 15
        %v783 = vsub.s32 0, %v782
        %v784 = vsel %vm778, %v783, %v782
        %vm785 = vcmp.lt.s32.totalorder %v651, 0
        %v786 = vsub.s32 0, %v651
        %v787 = vsel %vm785, %v786, %v651
        %v788 = vshrl.u32 %v787, 4
        %v789 = vand.u32 %v787, 15
        %v790 = vsub.s32 0, %v789
        %v791 = vsel %vm785, %v790, %v789
        %vm792 = vcmp.lt.s32.totalorder %v652, 0
        %v793 = vsub.s32 0, %v652
        %v794 = vsel %vm792, %v793, %v652
        %v795 = vshrl.u32 %v794, 4
        %v796 = vand.u32 %v794, 15
        %v797 = vsub.s32 0, %v796
        %v798 = vsel %vm792, %v797, %v796
        %vm799 = vcmp.lt.s32.totalorder %v653, 0
        %v800 = vsub.s32 0, %v653
        %v801 = vsel %vm799, %v800, %v653
        %v802 = vshrl.u32 %v801, 4
        %v803 = vand.u32 %v801, 15
        %v804 = vsub.s32 0, %v803
        %v805 = vsel %vm799, %v804, %v803
        %vm806 = vcmp.lt.s32.totalorder %v654, 0
        %v807 = vsub.s32 0, %v654
        %v808 = vsel %vm806, %v807, %v654
        %v809 = vshrl.u32 %v808, 4
        %v810 = vand.u32 %v808, 15
        %v811 = vsub.s32 0, %v810
        %v812 = vsel %vm806, %v811, %v810
        %vm813 = vcmp.lt.s32.totalorder %v655, 0
        %v814 = vsub.s32 0, %v655
        %v815 = vsel %vm813, %v814, %v655
        %v816 = vshrl.u32 %v815, 4
        %v817 = vand.u32 %v815, 15
        %v818 = vsub.s32 0, %v817
        %v819 = vsel %vm813, %v818, %v817
        %vm820 = vcmp.lt.s32.totalorder %v656, 0
        %v821 = vsub.s32 0, %v656
        %v822 = vsel %vm820, %v821, %v656
        %v823 = vshrl.u32 %v822, 4
        %v824 = vand.u32 %v822, 15
        %v825 = vsub.s32 0, %v824
        %v826 = vsel %vm820, %v825, %v824
        %vm827 = vcmp.lt.s32.totalorder %v657, 0
        %v828 = vsub.s32 0, %v657
        %v829 = vsel %vm827, %v828, %v657
        %v830 = vshrl.u32 %v829, 4
        %v831 = vand.u32 %v829, 15
        %v832 = vsub.s32 0, %v831
        %v833 = vsel %vm827, %v832, %v831
        %vm834 = vcmp.lt.s32.totalorder %v658, 0
        %v835 = vsub.s32 0, %v658
        %v836 = vsel %vm834, %v835, %v658
        %v837 = vshrl.u32 %v836, 4
        %v838 = vand.u32 %v836, 15
        %v839 = vsub.s32 0, %v838
        %v840 = vsel %vm834, %v839, %v838
        %vm841 = vcmp.lt.s32.totalorder %v659, 0
        %v842 = vsub.s32 0, %v659
        %v843 = vsel %vm841, %v842, %v659
        %v844 = vshrl.u32 %v843, 4
        %v845 = vand.u32 %v843, 15
        %v846 = vsub.s32 0, %v845
        %v847 = vsel %vm841, %v846, %v845
        %vm848 = vcmp.lt.s32.totalorder %v660, 0
        %v849 = vsub.s32 0, %v660
        %v850 = vsel %vm848, %v849, %v660
        %v851 = vshrl.u32 %v850, 4
        %v852 = vand.u32 %v850, 15
        %v853 = vsub.s32 0, %v852
        %v854 = vsel %vm848, %v853, %v852
        %vm855 = vcmp.lt.s32.totalorder %v661, 0
        %v856 = vsub.s32 0, %v661
        %v857 = vsel %vm855, %v856, %v661
        %v858 = vshrl.u32 %v857, 4
        %v859 = vand.u32 %v857, 15
        %v860 = vsub.s32 0, %v859
        %v861 = vsel %vm855, %v860, %v859
        %vm862 = vcmp.lt.s32.totalorder %v662, 0
        %v863 = vsub.s32 0, %v662
        %v864 = vsel %vm862, %v863, %v662
        %v865 = vshrl.u32 %v864, 4
        %v866 = vand.u32 %v864, 15
        %v867 = vsub.s32 0, %v866
        %v868 = vsel %vm862, %v867, %v866
        %vm869 = vcmp.lt.s32.totalorder %v663, 0
        %v870 = vsub.s32 0, %v663
        %v871 = vsel %vm869, %v870, %v663
        %v872 = vshrl.u32 %v871, 4
        %v873 = vand.u32 %v871, 15
        %v874 = vsub.s32 0, %v873
        %v875 = vsel %vm869, %v874, %v873
        %vm876 = vcmp.lt.s32.totalorder %v664, 0
        %v877 = vsub.s32 0, %v664
        %v878 = vsel %vm876, %v877, %v664
        %v879 = vshrl.u32 %v878, 4
        %v880 = vand.u32 %v878, 15
        %v881 = vsub.s32 0, %v880
        %v882 = vsel %vm876, %v881, %v880
        %vm883 = vcmp.lt.s32.totalorder %v665, 0
        %v884 = vsub.s32 0, %v665
        %v885 = vsel %vm883, %v884, %v665
        %v886 = vshrl.u32 %v885, 4
        %v887 = vand.u32 %v885, 15
        %v888 = vsub.s32 0, %v887
        %v889 = vsel %vm883, %v888, %v887
        %vm890 = vcmp.ne.s32.totalorder %v672, 0
        %vm891 = vcmp.ne.s32.totalorder %v679, 0
        %vm892 = vcmp.ne.s32.totalorder %v686, 0
        %vm893 = vcmp.ne.s32.totalorder %v693, 0
        %vm894 = vcmp.ne.s32.totalorder %v700, 0
        %vm895 = vcmp.ne.s32.totalorder %v707, 0
        %vm896 = vcmp.ne.s32.totalorder %v714, 0
        %vm897 = vcmp.ne.s32.totalorder %v721, 0
        %vm898 = vcmp.ne.s32.totalorder %v728, 0
        %vm899 = vcmp.ne.s32.totalorder %v735, 0
        %vm900 = vcmp.ne.s32.totalorder %v742, 0
        %vm901 = vcmp.ne.s32.totalorder %v749, 0
        %vm902 = vcmp.ne.s32.totalorder %v756, 0
        %vm903 = vcmp.ne.s32.totalorder %v763, 0
        %vm904 = vcmp.ne.s32.totalorder %v770, 0
        %vm905 = vcmp.ne.s32.totalorder %v777, 0
        %vm906 = vcmp.ne.s32.totalorder %v784, 0
        %vm907 = vcmp.ne.s32.totalorder %v791, 0
        %vm908 = vcmp.ne.s32.totalorder %v798, 0
        %vm909 = vcmp.ne.s32.totalorder %v805, 0
        %vm910 = vcmp.ne.s32.totalorder %v812, 0
        %vm911 = vcmp.ne.s32.totalorder %v819, 0
        %vm912 = vcmp.ne.s32.totalorder %v826, 0
        %vm913 = vcmp.ne.s32.totalorder %v833, 0
        %vm914 = vcmp.ne.s32.totalorder %v840, 0
        %vm915 = vcmp.ne.s32.totalorder %v847, 0
        %vm916 = vcmp.ne.s32.totalorder %v854, 0
        %vm917 = vcmp.ne.s32.totalorder %v861, 0
        %vm918 = vcmp.ne.s32.totalorder %v868, 0
        %vm919 = vcmp.ne.s32.totalorder %v875, 0
        %vm920 = vcmp.ne.s32.totalorder %v882, 0
        %vm921 = vcmp.ne.s32.totalorder %v889, 0
        %vm922 = vcmp.lt.s32.totalorder %v672, 0
        %vm923 = vcmp.lt.s32.totalorder %v679, 0
        %vm924 = vcmp.lt.s32.totalorder %v686, 0
        %vm925 = vcmp.lt.s32.totalorder %v693, 0
        %vm926 = vcmp.lt.s32.totalorder %v700, 0
        %vm927 = vcmp.lt.s32.totalorder %v707, 0
        %vm928 = vcmp.lt.s32.totalorder %v714, 0
        %vm929 = vcmp.lt.s32.totalorder %v721, 0
        %vm930 = vcmp.lt.s32.totalorder %v728, 0
        %vm931 = vcmp.lt.s32.totalorder %v735, 0
        %vm932 = vcmp.lt.s32.totalorder %v742, 0
        %vm933 = vcmp.lt.s32.totalorder %v749, 0
        %vm934 = vcmp.lt.s32.totalorder %v756, 0
        %vm935 = vcmp.lt.s32.totalorder %v763, 0
        %vm936 = vcmp.lt.s32.totalorder %v770, 0
        %vm937 = vcmp.lt.s32.totalorder %v777, 0
        %vm938 = vcmp.lt.s32.totalorder %v784, 0
        %vm939 = vcmp.lt.s32.totalorder %v791, 0
        %vm940 = vcmp.lt.s32.totalorder %v798, 0
        %vm941 = vcmp.lt.s32.totalorder %v805, 0
        %vm942 = vcmp.lt.s32.totalorder %v812, 0
        %vm943 = vcmp.lt.s32.totalorder %v819, 0
        %vm944 = vcmp.lt.s32.totalorder %v826, 0
        %vm945 = vcmp.lt.s32.totalorder %v833, 0
        %vm946 = vcmp.lt.s32.totalorder %v840, 0
        %vm947 = vcmp.lt.s32.totalorder %v847, 0
        %vm948 = vcmp.lt.s32.totalorder %v854, 0
        %vm949 = vcmp.lt.s32.totalorder %v861, 0
        %vm950 = vcmp.lt.s32.totalorder %v868, 0
        %vm951 = vcmp.lt.s32.totalorder %v875, 0
        %vm952 = vcmp.lt.s32.totalorder %v882, 0
        %vm953 = vcmp.lt.s32.totalorder %v889, 0
        %vm954 = vmand %vm922, %vm890
        %vm955 = vmand %vm923, %vm891
        %vm956 = vmand %vm924, %vm892
        %vm957 = vmand %vm925, %vm893
        %vm958 = vmand %vm926, %vm894
        %vm959 = vmand %vm927, %vm895
        %vm960 = vmand %vm928, %vm896
        %vm961 = vmand %vm929, %vm897
        %vm962 = vmand %vm930, %vm898
        %vm963 = vmand %vm931, %vm899
        %vm964 = vmand %vm932, %vm900
        %vm965 = vmand %vm933, %vm901
        %vm966 = vmand %vm934, %vm902
        %vm967 = vmand %vm935, %vm903
        %vm968 = vmand %vm936, %vm904
        %vm969 = vmand %vm937, %vm905
        %vm970 = vmand %vm938, %vm906
        %vm971 = vmand %vm939, %vm907
        %vm972 = vmand %vm940, %vm908
        %vm973 = vmand %vm941, %vm909
        %vm974 = vmand %vm942, %vm910
        %vm975 = vmand %vm943, %vm911
        %vm976 = vmand %vm944, %vm912
        %vm977 = vmand %vm945, %vm913
        %vm978 = vmand %vm946, %vm914
        %vm979 = vmand %vm947, %vm915
        %vm980 = vmand %vm948, %vm916
        %vm981 = vmand %vm949, %vm917
        %vm982 = vmand %vm950, %vm918
        %vm983 = vmand %vm951, %vm919
        %vm984 = vmand %vm952, %vm920
        %vm985 = vmand %vm953, %vm921
        %v986 = vadd.s32 %v672, 16
        %v987 = vadd.s32 %v679, 16
        %v988 = vadd.s32 %v686, 16
        %v989 = vadd.s32 %v693, 16
        %v990 = vadd.s32 %v700, 16
        %v991 = vadd.s32 %v707, 16
        %v992 = vadd.s32 %v714, 16
        %v993 = vadd.s32 %v721, 16
        %v994 = vadd.s32 %v728, 16
        %v995 = vadd.s32 %v735, 16
        %v996 = vadd.s32 %v742, 16
        %v997 = vadd.s32 %v749, 16
        %v998 = vadd.s32 %v756, 16
        %v999 = vadd.s32 %v763, 16
        %v1000 = vadd.s32 %v770, 16
        %v1001 = vadd.s32 %v777, 16
        %v1002 = vadd.s32 %v784, 16
        %v1003 = vadd.s32 %v791, 16
        %v1004 = vadd.s32 %v798, 16
        %v1005 = vadd.s32 %v805, 16
        %v1006 = vadd.s32 %v812, 16
        %v1007 = vadd.s32 %v819, 16
        %v1008 = vadd.s32 %v826, 16
        %v1009 = vadd.s32 %v833, 16
        %v1010 = vadd.s32 %v840, 16
        %v1011 = vadd.s32 %v847, 16
        %v1012 = vadd.s32 %v854, 16
        %v1013 = vadd.s32 %v861, 16
        %v1014 = vadd.s32 %v868, 16
        %v1015 = vadd.s32 %v875, 16
        %v1016 = vadd.s32 %v882, 16
        %v1017 = vadd.s32 %v889, 16
        %v1018 = vsel %vm954, %v986, %v672
        %v1019 = vsel %vm955, %v987, %v679
        %v1020 = vsel %vm956, %v988, %v686
        %v1021 = vsel %vm957, %v989, %v693
        %v1022 = vsel %vm958, %v990, %v700
        %v1023 = vsel %vm959, %v991, %v707
        %v1024 = vsel %vm960, %v992, %v714
        %v1025 = vsel %vm961, %v993, %v721
        %v1026 = vsel %vm962, %v994, %v728
        %v1027 = vsel %vm963, %v995, %v735
        %v1028 = vsel %vm964, %v996, %v742
        %v1029 = vsel %vm965, %v997, %v749
        %v1030 = vsel %vm966, %v998, %v756
        %v1031 = vsel %vm967, %v999, %v763
        %v1032 = vsel %vm968, %v1000, %v770
        %v1033 = vsel %vm969, %v1001, %v777
        %v1034 = vsel %vm970, %v1002, %v784
        %v1035 = vsel %vm971, %v1003, %v791
        %v1036 = vsel %vm972, %v1004, %v798
        %v1037 = vsel %vm973, %v1005, %v805
        %v1038 = vsel %vm974, %v1006, %v812
        %v1039 = vsel %vm975, %v1007, %v819
        %v1040 = vsel %vm976, %v1008, %v826
        %v1041 = vsel %vm977, %v1009, %v833
        %v1042 = vsel %vm978, %v1010, %v840
        %v1043 = vsel %vm979, %v1011, %v847
        %v1044 = vsel %vm980, %v1012, %v854
        %v1045 = vsel %vm981, %v1013, %v861
        %v1046 = vsel %vm982, %v1014, %v868
        %v1047 = vsel %vm983, %v1015, %v875
        %v1048 = vsel %vm984, %v1016, %v882
        %v1049 = vsel %vm985, %v1017, %v889
        %vm1050 = vcmp.lt.s32.totalorder %v634, 0
        %v1051 = vsub.s32 0, %v634
        %v1052 = vsel %vm1050, %v1051, %v634
        %v1053 = vshrl.u32 %v1052, 8
        %v1054 = vand.u32 %v1052, 255
        %v1055 = vsub.s32 0, %v1054
        %v1056 = vsel %vm1050, %v1055, %v1054
        %vm1057 = vcmp.lt.s32.totalorder %v635, 0
        %v1058 = vsub.s32 0, %v635
        %v1059 = vsel %vm1057, %v1058, %v635
        %v1060 = vshrl.u32 %v1059, 8
        %v1061 = vand.u32 %v1059, 255
        %v1062 = vsub.s32 0, %v1061
        %v1063 = vsel %vm1057, %v1062, %v1061
        %vm1064 = vcmp.lt.s32.totalorder %v636, 0
        %v1065 = vsub.s32 0, %v636
        %v1066 = vsel %vm1064, %v1065, %v636
        %v1067 = vshrl.u32 %v1066, 8
        %v1068 = vand.u32 %v1066, 255
        %v1069 = vsub.s32 0, %v1068
        %v1070 = vsel %vm1064, %v1069, %v1068
        %vm1071 = vcmp.lt.s32.totalorder %v637, 0
        %v1072 = vsub.s32 0, %v637
        %v1073 = vsel %vm1071, %v1072, %v637
        %v1074 = vshrl.u32 %v1073, 8
        %v1075 = vand.u32 %v1073, 255
        %v1076 = vsub.s32 0, %v1075
        %v1077 = vsel %vm1071, %v1076, %v1075
        %vm1078 = vcmp.lt.s32.totalorder %v638, 0
        %v1079 = vsub.s32 0, %v638
        %v1080 = vsel %vm1078, %v1079, %v638
        %v1081 = vshrl.u32 %v1080, 8
        %v1082 = vand.u32 %v1080, 255
        %v1083 = vsub.s32 0, %v1082
        %v1084 = vsel %vm1078, %v1083, %v1082
        %vm1085 = vcmp.lt.s32.totalorder %v639, 0
        %v1086 = vsub.s32 0, %v639
        %v1087 = vsel %vm1085, %v1086, %v639
        %v1088 = vshrl.u32 %v1087, 8
        %v1089 = vand.u32 %v1087, 255
        %v1090 = vsub.s32 0, %v1089
        %v1091 = vsel %vm1085, %v1090, %v1089
        %vm1092 = vcmp.lt.s32.totalorder %v640, 0
        %v1093 = vsub.s32 0, %v640
        %v1094 = vsel %vm1092, %v1093, %v640
        %v1095 = vshrl.u32 %v1094, 8
        %v1096 = vand.u32 %v1094, 255
        %v1097 = vsub.s32 0, %v1096
        %v1098 = vsel %vm1092, %v1097, %v1096
        %vm1099 = vcmp.lt.s32.totalorder %v641, 0
        %v1100 = vsub.s32 0, %v641
        %v1101 = vsel %vm1099, %v1100, %v641
        %v1102 = vshrl.u32 %v1101, 8
        %v1103 = vand.u32 %v1101, 255
        %v1104 = vsub.s32 0, %v1103
        %v1105 = vsel %vm1099, %v1104, %v1103
        %vm1106 = vcmp.lt.s32.totalorder %v642, 0
        %v1107 = vsub.s32 0, %v642
        %v1108 = vsel %vm1106, %v1107, %v642
        %v1109 = vshrl.u32 %v1108, 8
        %v1110 = vand.u32 %v1108, 255
        %v1111 = vsub.s32 0, %v1110
        %v1112 = vsel %vm1106, %v1111, %v1110
        %vm1113 = vcmp.lt.s32.totalorder %v643, 0
        %v1114 = vsub.s32 0, %v643
        %v1115 = vsel %vm1113, %v1114, %v643
        %v1116 = vshrl.u32 %v1115, 8
        %v1117 = vand.u32 %v1115, 255
        %v1118 = vsub.s32 0, %v1117
        %v1119 = vsel %vm1113, %v1118, %v1117
        %vm1120 = vcmp.lt.s32.totalorder %v644, 0
        %v1121 = vsub.s32 0, %v644
        %v1122 = vsel %vm1120, %v1121, %v644
        %v1123 = vshrl.u32 %v1122, 8
        %v1124 = vand.u32 %v1122, 255
        %v1125 = vsub.s32 0, %v1124
        %v1126 = vsel %vm1120, %v1125, %v1124
        %vm1127 = vcmp.lt.s32.totalorder %v645, 0
        %v1128 = vsub.s32 0, %v645
        %v1129 = vsel %vm1127, %v1128, %v645
        %v1130 = vshrl.u32 %v1129, 8
        %v1131 = vand.u32 %v1129, 255
        %v1132 = vsub.s32 0, %v1131
        %v1133 = vsel %vm1127, %v1132, %v1131
        %vm1134 = vcmp.lt.s32.totalorder %v646, 0
        %v1135 = vsub.s32 0, %v646
        %v1136 = vsel %vm1134, %v1135, %v646
        %v1137 = vshrl.u32 %v1136, 8
        %v1138 = vand.u32 %v1136, 255
        %v1139 = vsub.s32 0, %v1138
        %v1140 = vsel %vm1134, %v1139, %v1138
        %vm1141 = vcmp.lt.s32.totalorder %v647, 0
        %v1142 = vsub.s32 0, %v647
        %v1143 = vsel %vm1141, %v1142, %v647
        %v1144 = vshrl.u32 %v1143, 8
        %v1145 = vand.u32 %v1143, 255
        %v1146 = vsub.s32 0, %v1145
        %v1147 = vsel %vm1141, %v1146, %v1145
        %vm1148 = vcmp.lt.s32.totalorder %v648, 0
        %v1149 = vsub.s32 0, %v648
        %v1150 = vsel %vm1148, %v1149, %v648
        %v1151 = vshrl.u32 %v1150, 8
        %v1152 = vand.u32 %v1150, 255
        %v1153 = vsub.s32 0, %v1152
        %v1154 = vsel %vm1148, %v1153, %v1152
        %vm1155 = vcmp.lt.s32.totalorder %v649, 0
        %v1156 = vsub.s32 0, %v649
        %v1157 = vsel %vm1155, %v1156, %v649
        %v1158 = vshrl.u32 %v1157, 8
        %v1159 = vand.u32 %v1157, 255
        %v1160 = vsub.s32 0, %v1159
        %v1161 = vsel %vm1155, %v1160, %v1159
        %vm1162 = vcmp.lt.s32.totalorder %v650, 0
        %v1163 = vsub.s32 0, %v650
        %v1164 = vsel %vm1162, %v1163, %v650
        %v1165 = vshrl.u32 %v1164, 8
        %v1166 = vand.u32 %v1164, 255
        %v1167 = vsub.s32 0, %v1166
        %v1168 = vsel %vm1162, %v1167, %v1166
        %vm1169 = vcmp.lt.s32.totalorder %v651, 0
        %v1170 = vsub.s32 0, %v651
        %v1171 = vsel %vm1169, %v1170, %v651
        %v1172 = vshrl.u32 %v1171, 8
        %v1173 = vand.u32 %v1171, 255
        %v1174 = vsub.s32 0, %v1173
        %v1175 = vsel %vm1169, %v1174, %v1173
        %vm1176 = vcmp.lt.s32.totalorder %v652, 0
        %v1177 = vsub.s32 0, %v652
        %v1178 = vsel %vm1176, %v1177, %v652
        %v1179 = vshrl.u32 %v1178, 8
        %v1180 = vand.u32 %v1178, 255
        %v1181 = vsub.s32 0, %v1180
        %v1182 = vsel %vm1176, %v1181, %v1180
        %vm1183 = vcmp.lt.s32.totalorder %v653, 0
        %v1184 = vsub.s32 0, %v653
        %v1185 = vsel %vm1183, %v1184, %v653
        %v1186 = vshrl.u32 %v1185, 8
        %v1187 = vand.u32 %v1185, 255
        %v1188 = vsub.s32 0, %v1187
        %v1189 = vsel %vm1183, %v1188, %v1187
        %vm1190 = vcmp.lt.s32.totalorder %v654, 0
        %v1191 = vsub.s32 0, %v654
        %v1192 = vsel %vm1190, %v1191, %v654
        %v1193 = vshrl.u32 %v1192, 8
        %v1194 = vand.u32 %v1192, 255
        %v1195 = vsub.s32 0, %v1194
        %v1196 = vsel %vm1190, %v1195, %v1194
        %vm1197 = vcmp.lt.s32.totalorder %v655, 0
        %v1198 = vsub.s32 0, %v655
        %v1199 = vsel %vm1197, %v1198, %v655
        %v1200 = vshrl.u32 %v1199, 8
        %v1201 = vand.u32 %v1199, 255
        %v1202 = vsub.s32 0, %v1201
        %v1203 = vsel %vm1197, %v1202, %v1201
        %vm1204 = vcmp.lt.s32.totalorder %v656, 0
        %v1205 = vsub.s32 0, %v656
        %v1206 = vsel %vm1204, %v1205, %v656
        %v1207 = vshrl.u32 %v1206, 8
        %v1208 = vand.u32 %v1206, 255
        %v1209 = vsub.s32 0, %v1208
        %v1210 = vsel %vm1204, %v1209, %v1208
        %vm1211 = vcmp.lt.s32.totalorder %v657, 0
        %v1212 = vsub.s32 0, %v657
        %v1213 = vsel %vm1211, %v1212, %v657
        %v1214 = vshrl.u32 %v1213, 8
        %v1215 = vand.u32 %v1213, 255
        %v1216 = vsub.s32 0, %v1215
        %v1217 = vsel %vm1211, %v1216, %v1215
        %vm1218 = vcmp.lt.s32.totalorder %v658, 0
        %v1219 = vsub.s32 0, %v658
        %v1220 = vsel %vm1218, %v1219, %v658
        %v1221 = vshrl.u32 %v1220, 8
        %v1222 = vand.u32 %v1220, 255
        %v1223 = vsub.s32 0, %v1222
        %v1224 = vsel %vm1218, %v1223, %v1222
        %vm1225 = vcmp.lt.s32.totalorder %v659, 0
        %v1226 = vsub.s32 0, %v659
        %v1227 = vsel %vm1225, %v1226, %v659
        %v1228 = vshrl.u32 %v1227, 8
        %v1229 = vand.u32 %v1227, 255
        %v1230 = vsub.s32 0, %v1229
        %v1231 = vsel %vm1225, %v1230, %v1229
        %vm1232 = vcmp.lt.s32.totalorder %v660, 0
        %v1233 = vsub.s32 0, %v660
        %v1234 = vsel %vm1232, %v1233, %v660
        %v1235 = vshrl.u32 %v1234, 8
        %v1236 = vand.u32 %v1234, 255
        %v1237 = vsub.s32 0, %v1236
        %v1238 = vsel %vm1232, %v1237, %v1236
        %vm1239 = vcmp.lt.s32.totalorder %v661, 0
        %v1240 = vsub.s32 0, %v661
        %v1241 = vsel %vm1239, %v1240, %v661
        %v1242 = vshrl.u32 %v1241, 8
        %v1243 = vand.u32 %v1241, 255
        %v1244 = vsub.s32 0, %v1243
        %v1245 = vsel %vm1239, %v1244, %v1243
        %vm1246 = vcmp.lt.s32.totalorder %v662, 0
        %v1247 = vsub.s32 0, %v662
        %v1248 = vsel %vm1246, %v1247, %v662
        %v1249 = vshrl.u32 %v1248, 8
        %v1250 = vand.u32 %v1248, 255
        %v1251 = vsub.s32 0, %v1250
        %v1252 = vsel %vm1246, %v1251, %v1250
        %vm1253 = vcmp.lt.s32.totalorder %v663, 0
        %v1254 = vsub.s32 0, %v663
        %v1255 = vsel %vm1253, %v1254, %v663
        %v1256 = vshrl.u32 %v1255, 8
        %v1257 = vand.u32 %v1255, 255
        %v1258 = vsub.s32 0, %v1257
        %v1259 = vsel %vm1253, %v1258, %v1257
        %vm1260 = vcmp.lt.s32.totalorder %v664, 0
        %v1261 = vsub.s32 0, %v664
        %v1262 = vsel %vm1260, %v1261, %v664
        %v1263 = vshrl.u32 %v1262, 8
        %v1264 = vand.u32 %v1262, 255
        %v1265 = vsub.s32 0, %v1264
        %v1266 = vsel %vm1260, %v1265, %v1264
        %vm1267 = vcmp.lt.s32.totalorder %v665, 0
        %v1268 = vsub.s32 0, %v665
        %v1269 = vsel %vm1267, %v1268, %v665
        %v1270 = vshrl.u32 %v1269, 8
        %v1271 = vand.u32 %v1269, 255
        %v1272 = vsub.s32 0, %v1271
        %v1273 = vsel %vm1267, %v1272, %v1271
        %vm1274 = vcmp.ne.s32.totalorder %v1056, 0
        %vm1275 = vcmp.ne.s32.totalorder %v1063, 0
        %vm1276 = vcmp.ne.s32.totalorder %v1070, 0
        %vm1277 = vcmp.ne.s32.totalorder %v1077, 0
        %vm1278 = vcmp.ne.s32.totalorder %v1084, 0
        %vm1279 = vcmp.ne.s32.totalorder %v1091, 0
        %vm1280 = vcmp.ne.s32.totalorder %v1098, 0
        %vm1281 = vcmp.ne.s32.totalorder %v1105, 0
        %vm1282 = vcmp.ne.s32.totalorder %v1112, 0
        %vm1283 = vcmp.ne.s32.totalorder %v1119, 0
        %vm1284 = vcmp.ne.s32.totalorder %v1126, 0
        %vm1285 = vcmp.ne.s32.totalorder %v1133, 0
        %vm1286 = vcmp.ne.s32.totalorder %v1140, 0
        %vm1287 = vcmp.ne.s32.totalorder %v1147, 0
        %vm1288 = vcmp.ne.s32.totalorder %v1154, 0
        %vm1289 = vcmp.ne.s32.totalorder %v1161, 0
        %vm1290 = vcmp.ne.s32.totalorder %v1168, 0
        %vm1291 = vcmp.ne.s32.totalorder %v1175, 0
        %vm1292 = vcmp.ne.s32.totalorder %v1182, 0
        %vm1293 = vcmp.ne.s32.totalorder %v1189, 0
        %vm1294 = vcmp.ne.s32.totalorder %v1196, 0
        %vm1295 = vcmp.ne.s32.totalorder %v1203, 0
        %vm1296 = vcmp.ne.s32.totalorder %v1210, 0
        %vm1297 = vcmp.ne.s32.totalorder %v1217, 0
        %vm1298 = vcmp.ne.s32.totalorder %v1224, 0
        %vm1299 = vcmp.ne.s32.totalorder %v1231, 0
        %vm1300 = vcmp.ne.s32.totalorder %v1238, 0
        %vm1301 = vcmp.ne.s32.totalorder %v1245, 0
        %vm1302 = vcmp.ne.s32.totalorder %v1252, 0
        %vm1303 = vcmp.ne.s32.totalorder %v1259, 0
        %vm1304 = vcmp.ne.s32.totalorder %v1266, 0
        %vm1305 = vcmp.ne.s32.totalorder %v1273, 0
        %vm1306 = vcmp.lt.s32.totalorder %v1056, 0
        %vm1307 = vcmp.lt.s32.totalorder %v1063, 0
        %vm1308 = vcmp.lt.s32.totalorder %v1070, 0
        %vm1309 = vcmp.lt.s32.totalorder %v1077, 0
        %vm1310 = vcmp.lt.s32.totalorder %v1084, 0
        %vm1311 = vcmp.lt.s32.totalorder %v1091, 0
        %vm1312 = vcmp.lt.s32.totalorder %v1098, 0
        %vm1313 = vcmp.lt.s32.totalorder %v1105, 0
        %vm1314 = vcmp.lt.s32.totalorder %v1112, 0
        %vm1315 = vcmp.lt.s32.totalorder %v1119, 0
        %vm1316 = vcmp.lt.s32.totalorder %v1126, 0
        %vm1317 = vcmp.lt.s32.totalorder %v1133, 0
        %vm1318 = vcmp.lt.s32.totalorder %v1140, 0
        %vm1319 = vcmp.lt.s32.totalorder %v1147, 0
        %vm1320 = vcmp.lt.s32.totalorder %v1154, 0
        %vm1321 = vcmp.lt.s32.totalorder %v1161, 0
        %vm1322 = vcmp.lt.s32.totalorder %v1168, 0
        %vm1323 = vcmp.lt.s32.totalorder %v1175, 0
        %vm1324 = vcmp.lt.s32.totalorder %v1182, 0
        %vm1325 = vcmp.lt.s32.totalorder %v1189, 0
        %vm1326 = vcmp.lt.s32.totalorder %v1196, 0
        %vm1327 = vcmp.lt.s32.totalorder %v1203, 0
        %vm1328 = vcmp.lt.s32.totalorder %v1210, 0
        %vm1329 = vcmp.lt.s32.totalorder %v1217, 0
        %vm1330 = vcmp.lt.s32.totalorder %v1224, 0
        %vm1331 = vcmp.lt.s32.totalorder %v1231, 0
        %vm1332 = vcmp.lt.s32.totalorder %v1238, 0
        %vm1333 = vcmp.lt.s32.totalorder %v1245, 0
        %vm1334 = vcmp.lt.s32.totalorder %v1252, 0
        %vm1335 = vcmp.lt.s32.totalorder %v1259, 0
        %vm1336 = vcmp.lt.s32.totalorder %v1266, 0
        %vm1337 = vcmp.lt.s32.totalorder %v1273, 0
        %vm1338 = vmand %vm1306, %vm1274
        %vm1339 = vmand %vm1307, %vm1275
        %vm1340 = vmand %vm1308, %vm1276
        %vm1341 = vmand %vm1309, %vm1277
        %vm1342 = vmand %vm1310, %vm1278
        %vm1343 = vmand %vm1311, %vm1279
        %vm1344 = vmand %vm1312, %vm1280
        %vm1345 = vmand %vm1313, %vm1281
        %vm1346 = vmand %vm1314, %vm1282
        %vm1347 = vmand %vm1315, %vm1283
        %vm1348 = vmand %vm1316, %vm1284
        %vm1349 = vmand %vm1317, %vm1285
        %vm1350 = vmand %vm1318, %vm1286
        %vm1351 = vmand %vm1319, %vm1287
        %vm1352 = vmand %vm1320, %vm1288
        %vm1353 = vmand %vm1321, %vm1289
        %vm1354 = vmand %vm1322, %vm1290
        %vm1355 = vmand %vm1323, %vm1291
        %vm1356 = vmand %vm1324, %vm1292
        %vm1357 = vmand %vm1325, %vm1293
        %vm1358 = vmand %vm1326, %vm1294
        %vm1359 = vmand %vm1327, %vm1295
        %vm1360 = vmand %vm1328, %vm1296
        %vm1361 = vmand %vm1329, %vm1297
        %vm1362 = vmand %vm1330, %vm1298
        %vm1363 = vmand %vm1331, %vm1299
        %vm1364 = vmand %vm1332, %vm1300
        %vm1365 = vmand %vm1333, %vm1301
        %vm1366 = vmand %vm1334, %vm1302
        %vm1367 = vmand %vm1335, %vm1303
        %vm1368 = vmand %vm1336, %vm1304
        %vm1369 = vmand %vm1337, %vm1305
        %v1370 = vadd.s32 %v1056, 256
        %v1371 = vadd.s32 %v1063, 256
        %v1372 = vadd.s32 %v1070, 256
        %v1373 = vadd.s32 %v1077, 256
        %v1374 = vadd.s32 %v1084, 256
        %v1375 = vadd.s32 %v1091, 256
        %v1376 = vadd.s32 %v1098, 256
        %v1377 = vadd.s32 %v1105, 256
        %v1378 = vadd.s32 %v1112, 256
        %v1379 = vadd.s32 %v1119, 256
        %v1380 = vadd.s32 %v1126, 256
        %v1381 = vadd.s32 %v1133, 256
        %v1382 = vadd.s32 %v1140, 256
        %v1383 = vadd.s32 %v1147, 256
        %v1384 = vadd.s32 %v1154, 256
        %v1385 = vadd.s32 %v1161, 256
        %v1386 = vadd.s32 %v1168, 256
        %v1387 = vadd.s32 %v1175, 256
        %v1388 = vadd.s32 %v1182, 256
        %v1389 = vadd.s32 %v1189, 256
        %v1390 = vadd.s32 %v1196, 256
        %v1391 = vadd.s32 %v1203, 256
        %v1392 = vadd.s32 %v1210, 256
        %v1393 = vadd.s32 %v1217, 256
        %v1394 = vadd.s32 %v1224, 256
        %v1395 = vadd.s32 %v1231, 256
        %v1396 = vadd.s32 %v1238, 256
        %v1397 = vadd.s32 %v1245, 256
        %v1398 = vadd.s32 %v1252, 256
        %v1399 = vadd.s32 %v1259, 256
        %v1400 = vadd.s32 %v1266, 256
        %v1401 = vadd.s32 %v1273, 256
        %v1402 = vsel %vm1338, %v1370, %v1056
        %v1403 = vsel %vm1339, %v1371, %v1063
        %v1404 = vsel %vm1340, %v1372, %v1070
        %v1405 = vsel %vm1341, %v1373, %v1077
        %v1406 = vsel %vm1342, %v1374, %v1084
        %v1407 = vsel %vm1343, %v1375, %v1091
        %v1408 = vsel %vm1344, %v1376, %v1098
        %v1409 = vsel %vm1345, %v1377, %v1105
        %v1410 = vsel %vm1346, %v1378, %v1112
        %v1411 = vsel %vm1347, %v1379, %v1119
        %v1412 = vsel %vm1348, %v1380, %v1126
        %v1413 = vsel %vm1349, %v1381, %v1133
        %v1414 = vsel %vm1350, %v1382, %v1140
        %v1415 = vsel %vm1351, %v1383, %v1147
        %v1416 = vsel %vm1352, %v1384, %v1154
        %v1417 = vsel %vm1353, %v1385, %v1161
        %v1418 = vsel %vm1354, %v1386, %v1168
        %v1419 = vsel %vm1355, %v1387, %v1175
        %v1420 = vsel %vm1356, %v1388, %v1182
        %v1421 = vsel %vm1357, %v1389, %v1189
        %v1422 = vsel %vm1358, %v1390, %v1196
        %v1423 = vsel %vm1359, %v1391, %v1203
        %v1424 = vsel %vm1360, %v1392, %v1210
        %v1425 = vsel %vm1361, %v1393, %v1217
        %v1426 = vsel %vm1362, %v1394, %v1224
        %v1427 = vsel %vm1363, %v1395, %v1231
        %v1428 = vsel %vm1364, %v1396, %v1238
        %v1429 = vsel %vm1365, %v1397, %v1245
        %v1430 = vsel %vm1366, %v1398, %v1252
        %v1431 = vsel %vm1367, %v1399, %v1259
        %v1432 = vsel %vm1368, %v1400, %v1266
        %v1433 = vsel %vm1369, %v1401, %v1273
        %vm1434 = vcmp.ne.s32.totalorder %v1018, 0
        %vm1435 = vcmp.ne.s32.totalorder %v1019, 0
        %vm1436 = vcmp.ne.s32.totalorder %v1020, 0
        %vm1437 = vcmp.ne.s32.totalorder %v1021, 0
        %vm1438 = vcmp.ne.s32.totalorder %v1022, 0
        %vm1439 = vcmp.ne.s32.totalorder %v1023, 0
        %vm1440 = vcmp.ne.s32.totalorder %v1024, 0
        %vm1441 = vcmp.ne.s32.totalorder %v1025, 0
        %vm1442 = vcmp.ne.s32.totalorder %v1026, 0
        %vm1443 = vcmp.ne.s32.totalorder %v1027, 0
        %vm1444 = vcmp.ne.s32.totalorder %v1028, 0
        %vm1445 = vcmp.ne.s32.totalorder %v1029, 0
        %vm1446 = vcmp.ne.s32.totalorder %v1030, 0
        %vm1447 = vcmp.ne.s32.totalorder %v1031, 0
        %vm1448 = vcmp.ne.s32.totalorder %v1032, 0
        %vm1449 = vcmp.ne.s32.totalorder %v1033, 0
        %vm1450 = vcmp.ne.s32.totalorder %v1034, 0
        %vm1451 = vcmp.ne.s32.totalorder %v1035, 0
        %vm1452 = vcmp.ne.s32.totalorder %v1036, 0
        %vm1453 = vcmp.ne.s32.totalorder %v1037, 0
        %vm1454 = vcmp.ne.s32.totalorder %v1038, 0
        %vm1455 = vcmp.ne.s32.totalorder %v1039, 0
        %vm1456 = vcmp.ne.s32.totalorder %v1040, 0
        %vm1457 = vcmp.ne.s32.totalorder %v1041, 0
        %vm1458 = vcmp.ne.s32.totalorder %v1042, 0
        %vm1459 = vcmp.ne.s32.totalorder %v1043, 0
        %vm1460 = vcmp.ne.s32.totalorder %v1044, 0
        %vm1461 = vcmp.ne.s32.totalorder %v1045, 0
        %vm1462 = vcmp.ne.s32.totalorder %v1046, 0
        %vm1463 = vcmp.ne.s32.totalorder %v1047, 0
        %vm1464 = vcmp.ne.s32.totalorder %v1048, 0
        %vm1465 = vcmp.ne.s32.totalorder %v1049, 0
        %v1466 = vrot.slane %v601, 7
        %v1467 = vrot.slane %v602, 7
        %v1468 = vrot.slane %v603, 7
        %v1469 = vrot.slane %v604, 7
        %v1470 = vrot.slane %v605, 7
        %v1471 = vrot.slane %v606, 7
        %v1472 = vrot.slane %v607, 7
        %v1473 = vrot.slane %v608, 7
        %v1474 = vrot.slane %v609, 7
        %v1475 = vrot.slane %v610, 7
        %v1476 = vrot.slane %v611, 7
        %v1477 = vrot.slane %v612, 7
        %v1478 = vrot.slane %v613, 7
        %v1479 = vrot.slane %v614, 7
        %v1480 = vrot.slane %v615, 7
        %v1481 = vrot.slane %v616, 7
        %v1482 = vrot.slane %v617, 7
        %v1483 = vrot.slane %v618, 7
        %v1484 = vrot.slane %v619, 7
        %v1485 = vrot.slane %v620, 7
        %v1486 = vrot.slane %v621, 7
        %v1487 = vrot.slane %v622, 7
        %v1488 = vrot.slane %v623, 7
        %v1489 = vrot.slane %v624, 7
        %v1490 = vrot.slane %v625, 7
        %v1491 = vrot.slane %v626, 7
        %v1492 = vrot.slane %v627, 7
        %v1493 = vrot.slane %v628, 7
        %v1494 = vrot.slane %v629, 7
        %v1495 = vrot.slane %v630, 7
        %v1496 = vrot.slane %v631, 7
        %v1497 = vrot.slane %v632, 7
        %vm1498 = vcmp.lt.s32.totalorder %v634, 1
        %v1499 = vsel %vm1498, %v1496, %v1497
        %v1500 = vsel %vm1498, %v1495, %v1496
        %v1501 = vsel %vm1498, %v1494, %v1495
        %v1502 = vsel %vm1498, %v1493, %v1494
        %v1503 = vsel %vm1498, %v1492, %v1493
        %v1504 = vsel %vm1498, %v1491, %v1492
        %v1505 = vsel %vm1498, %v1490, %v1491
        %v1506 = vsel %vm1498, %v1489, %v1490
        %v1507 = vsel %vm1498, %v1488, %v1489
        %v1508 = vsel %vm1498, %v1487, %v1488
        %v1509 = vsel %vm1498, %v1486, %v1487
        %v1510 = vsel %vm1498, %v1485, %v1486
        %v1511 = vsel %vm1498, %v1484, %v1485
        %v1512 = vsel %vm1498, %v1483, %v1484
        %v1513 = vsel %vm1498, %v1482, %v1483
        %v1514 = vsel %vm1498, %v1481, %v1482
        %v1515 = vsel %vm1498, %v1480, %v1481
        %v1516 = vsel %vm1498, %v1479, %v1480
        %v1517 = vsel %vm1498, %v1478, %v1479
        %v1518 = vsel %vm1498, %v1477, %v1478
        %v1519 = vsel %vm1498, %v1476, %v1477
        %v1520 = vsel %vm1498, %v1475, %v1476
        %v1521 = vsel %vm1498, %v1474, %v1475
        %v1522 = vsel %vm1498, %v1473, %v1474
        %v1523 = vsel %vm1498, %v1472, %v1473
        %v1524 = vsel %vm1498, %v1471, %v1472
        %v1525 = vsel %vm1498, %v1470, %v1471
        %v1526 = vsel %vm1498, %v1469, %v1470
        %v1527 = vsel %vm1498, %v1468, %v1469
        %v1528 = vsel %vm1498, %v1467, %v1468
        %v1529 = vsel %vm1498, %v1466, %v1467
        %v1530 = vsel %vm1498, %v1497, %v1466
        %v1531 = vsel %vm1434, 1, 0
        %v1532 = vsel %vm1435, 1, 0
        %v1533 = vsel %vm1436, 1, 0
        %v1534 = vsel %vm1437, 1, 0
        %v1535 = vsel %vm1438, 1, 0
        %v1536 = vsel %vm1439, 1, 0
        %v1537 = vsel %vm1440, 1, 0
        %v1538 = vsel %vm1441, 1, 0
        %v1539 = vsel %vm1442, 1, 0
        %v1540 = vsel %vm1443, 1, 0
        %v1541 = vsel %vm1444, 1, 0
        %v1542 = vsel %vm1445, 1, 0
        %v1543 = vsel %vm1446, 1, 0
        %v1544 = vsel %vm1447, 1, 0
        %v1545 = vsel %vm1448, 1, 0
        %v1546 = vsel %vm1449, 1, 0
        %v1547 = vsel %vm1450, 1, 0
        %v1548 = vsel %vm1451, 1, 0
        %v1549 = vsel %vm1452, 1, 0
        %v1550 = vsel %vm1453, 1, 0
        %v1551 = vsel %vm1454, 1, 0
        %v1552 = vsel %vm1455, 1, 0
        %v1553 = vsel %vm1456, 1, 0
        %v1554 = vsel %vm1457, 1, 0
        %v1555 = vsel %vm1458, 1, 0
        %v1556 = vsel %vm1459, 1, 0
        %v1557 = vsel %vm1460, 1, 0
        %v1558 = vsel %vm1461, 1, 0
        %v1559 = vsel %vm1462, 1, 0
        %v1560 = vsel %vm1463, 1, 0
        %v1561 = vsel %vm1464, 1, 0
        %v1562 = vsel %vm1465, 1, 0
        %vm1563 = vcmp.eq.s32.totalorder %v1531, 1
        %vm1564 = vcmp.eq.s32.totalorder %v1532, 1
        %vm1565 = vcmp.eq.s32.totalorder %v1533, 1
        %vm1566 = vcmp.eq.s32.totalorder %v1534, 1
        %vm1567 = vcmp.eq.s32.totalorder %v1535, 1
        %vm1568 = vcmp.eq.s32.totalorder %v1536, 1
        %vm1569 = vcmp.eq.s32.totalorder %v1537, 1
        %vm1570 = vcmp.eq.s32.totalorder %v1538, 1
        %vm1571 = vcmp.eq.s32.totalorder %v1539, 1
        %vm1572 = vcmp.eq.s32.totalorder %v1540, 1
        %vm1573 = vcmp.eq.s32.totalorder %v1541, 1
        %vm1574 = vcmp.eq.s32.totalorder %v1542, 1
        %vm1575 = vcmp.eq.s32.totalorder %v1543, 1
        %vm1576 = vcmp.eq.s32.totalorder %v1544, 1
        %vm1577 = vcmp.eq.s32.totalorder %v1545, 1
        %vm1578 = vcmp.eq.s32.totalorder %v1546, 1
        %vm1579 = vcmp.eq.s32.totalorder %v1547, 1
        %vm1580 = vcmp.eq.s32.totalorder %v1548, 1
        %vm1581 = vcmp.eq.s32.totalorder %v1549, 1
        %vm1582 = vcmp.eq.s32.totalorder %v1550, 1
        %vm1583 = vcmp.eq.s32.totalorder %v1551, 1
        %vm1584 = vcmp.eq.s32.totalorder %v1552, 1
        %vm1585 = vcmp.eq.s32.totalorder %v1553, 1
        %vm1586 = vcmp.eq.s32.totalorder %v1554, 1
        %vm1587 = vcmp.eq.s32.totalorder %v1555, 1
        %vm1588 = vcmp.eq.s32.totalorder %v1556, 1
        %vm1589 = vcmp.eq.s32.totalorder %v1557, 1
        %vm1590 = vcmp.eq.s32.totalorder %v1558, 1
        %vm1591 = vcmp.eq.s32.totalorder %v1559, 1
        %vm1592 = vcmp.eq.s32.totalorder %v1560, 1
        %vm1593 = vcmp.eq.s32.totalorder %v1561, 1
        %vm1594 = vcmp.eq.s32.totalorder %v1562, 1
        %v1595 = vsel %vm1563, %v1530, 0.0
        %v1596 = vsel %vm1564, %v1529, 0.0
        %v1597 = vsel %vm1565, %v1528, 0.0
        %v1598 = vsel %vm1566, %v1527, 0.0
        %v1599 = vsel %vm1567, %v1526, 0.0
        %v1600 = vsel %vm1568, %v1525, 0.0
        %v1601 = vsel %vm1569, %v1524, 0.0
        %v1602 = vsel %vm1570, %v1523, 0.0
        %v1603 = vsel %vm1571, %v1522, 0.0
        %v1604 = vsel %vm1572, %v1521, 0.0
        %v1605 = vsel %vm1573, %v1520, 0.0
        %v1606 = vsel %vm1574, %v1519, 0.0
        %v1607 = vsel %vm1575, %v1518, 0.0
        %v1608 = vsel %vm1576, %v1517, 0.0
        %v1609 = vsel %vm1577, %v1516, 0.0
        %v1610 = vsel %vm1578, %v1515, 0.0
        %v1611 = vsel %vm1579, %v1514, 0.0
        %v1612 = vsel %vm1580, %v1513, 0.0
        %v1613 = vsel %vm1581, %v1512, 0.0
        %v1614 = vsel %vm1582, %v1511, 0.0
        %v1615 = vsel %vm1583, %v1510, 0.0
        %v1616 = vsel %vm1584, %v1509, 0.0
        %v1617 = vsel %vm1585, %v1508, 0.0
        %v1618 = vsel %vm1586, %v1507, 0.0
        %v1619 = vsel %vm1587, %v1506, 0.0
        %v1620 = vsel %vm1588, %v1505, 0.0
        %v1621 = vsel %vm1589, %v1504, 0.0
        %v1622 = vsel %vm1590, %v1503, 0.0
        %v1623 = vsel %vm1591, %v1502, 0.0
        %v1624 = vsel %vm1592, %v1501, 0.0
        %v1625 = vsel %vm1593, %v1500, 0.0
        %v1626 = vsel %vm1594, %v1499, 0.0
        %vm1627 = vcmp.ne.s32.totalorder %v1018, 15
        %vm1628 = vcmp.ne.s32.totalorder %v1019, 15
        %vm1629 = vcmp.ne.s32.totalorder %v1020, 15
        %vm1630 = vcmp.ne.s32.totalorder %v1021, 15
        %vm1631 = vcmp.ne.s32.totalorder %v1022, 15
        %vm1632 = vcmp.ne.s32.totalorder %v1023, 15
        %vm1633 = vcmp.ne.s32.totalorder %v1024, 15
        %vm1634 = vcmp.ne.s32.totalorder %v1025, 15
        %vm1635 = vcmp.ne.s32.totalorder %v1026, 15
        %vm1636 = vcmp.ne.s32.totalorder %v1027, 15
        %vm1637 = vcmp.ne.s32.totalorder %v1028, 15
        %vm1638 = vcmp.ne.s32.totalorder %v1029, 15
        %vm1639 = vcmp.ne.s32.totalorder %v1030, 15
        %vm1640 = vcmp.ne.s32.totalorder %v1031, 15
        %vm1641 = vcmp.ne.s32.totalorder %v1032, 15
        %vm1642 = vcmp.ne.s32.totalorder %v1033, 15
        %vm1643 = vcmp.ne.s32.totalorder %v1034, 15
        %vm1644 = vcmp.ne.s32.totalorder %v1035, 15
        %vm1645 = vcmp.ne.s32.totalorder %v1036, 15
        %vm1646 = vcmp.ne.s32.totalorder %v1037, 15
        %vm1647 = vcmp.ne.s32.totalorder %v1038, 15
        %vm1648 = vcmp.ne.s32.totalorder %v1039, 15
        %vm1649 = vcmp.ne.s32.totalorder %v1040, 15
        %vm1650 = vcmp.ne.s32.totalorder %v1041, 15
        %vm1651 = vcmp.ne.s32.totalorder %v1042, 15
        %vm1652 = vcmp.ne.s32.totalorder %v1043, 15
        %vm1653 = vcmp.ne.s32.totalorder %v1044, 15
        %vm1654 = vcmp.ne.s32.totalorder %v1045, 15
        %vm1655 = vcmp.ne.s32.totalorder %v1046, 15
        %vm1656 = vcmp.ne.s32.totalorder %v1047, 15
        %vm1657 = vcmp.ne.s32.totalorder %v1048, 15
        %vm1658 = vcmp.ne.s32.totalorder %v1049, 15
        %v1659 = vrot.slane %v601, 1
        %v1660 = vrot.slane %v602, 1
        %v1661 = vrot.slane %v603, 1
        %v1662 = vrot.slane %v604, 1
        %v1663 = vrot.slane %v605, 1
        %v1664 = vrot.slane %v606, 1
        %v1665 = vrot.slane %v607, 1
        %v1666 = vrot.slane %v608, 1
        %v1667 = vrot.slane %v609, 1
        %v1668 = vrot.slane %v610, 1
        %v1669 = vrot.slane %v611, 1
        %v1670 = vrot.slane %v612, 1
        %v1671 = vrot.slane %v613, 1
        %v1672 = vrot.slane %v614, 1
        %v1673 = vrot.slane %v615, 1
        %v1674 = vrot.slane %v616, 1
        %v1675 = vrot.slane %v617, 1
        %v1676 = vrot.slane %v618, 1
        %v1677 = vrot.slane %v619, 1
        %v1678 = vrot.slane %v620, 1
        %v1679 = vrot.slane %v621, 1
        %v1680 = vrot.slane %v622, 1
        %v1681 = vrot.slane %v623, 1
        %v1682 = vrot.slane %v624, 1
        %v1683 = vrot.slane %v625, 1
        %v1684 = vrot.slane %v626, 1
        %v1685 = vrot.slane %v627, 1
        %v1686 = vrot.slane %v628, 1
        %v1687 = vrot.slane %v629, 1
        %v1688 = vrot.slane %v630, 1
        %v1689 = vrot.slane %v631, 1
        %v1690 = vrot.slane %v632, 1
        %vm1691 = vcmp.lt.s32.totalorder %v634, 7
        %v1692 = vsel %vm1691, %v1689, %v1690
        %v1693 = vsel %vm1691, %v1688, %v1689
        %v1694 = vsel %vm1691, %v1687, %v1688
        %v1695 = vsel %vm1691, %v1686, %v1687
        %v1696 = vsel %vm1691, %v1685, %v1686
        %v1697 = vsel %vm1691, %v1684, %v1685
        %v1698 = vsel %vm1691, %v1683, %v1684
        %v1699 = vsel %vm1691, %v1682, %v1683
        %v1700 = vsel %vm1691, %v1681, %v1682
        %v1701 = vsel %vm1691, %v1680, %v1681
        %v1702 = vsel %vm1691, %v1679, %v1680
        %v1703 = vsel %vm1691, %v1678, %v1679
        %v1704 = vsel %vm1691, %v1677, %v1678
        %v1705 = vsel %vm1691, %v1676, %v1677
        %v1706 = vsel %vm1691, %v1675, %v1676
        %v1707 = vsel %vm1691, %v1674, %v1675
        %v1708 = vsel %vm1691, %v1673, %v1674
        %v1709 = vsel %vm1691, %v1672, %v1673
        %v1710 = vsel %vm1691, %v1671, %v1672
        %v1711 = vsel %vm1691, %v1670, %v1671
        %v1712 = vsel %vm1691, %v1669, %v1670
        %v1713 = vsel %vm1691, %v1668, %v1669
        %v1714 = vsel %vm1691, %v1667, %v1668
        %v1715 = vsel %vm1691, %v1666, %v1667
        %v1716 = vsel %vm1691, %v1665, %v1666
        %v1717 = vsel %vm1691, %v1664, %v1665
        %v1718 = vsel %vm1691, %v1663, %v1664
        %v1719 = vsel %vm1691, %v1662, %v1663
        %v1720 = vsel %vm1691, %v1661, %v1662
        %v1721 = vsel %vm1691, %v1660, %v1661
        %v1722 = vsel %vm1691, %v1659, %v1660
        %v1723 = vsel %vm1691, %v1690, %v1659
        %v1724 = vsel %vm1627, 1, 0
        %v1725 = vsel %vm1628, 1, 0
        %v1726 = vsel %vm1629, 1, 0
        %v1727 = vsel %vm1630, 1, 0
        %v1728 = vsel %vm1631, 1, 0
        %v1729 = vsel %vm1632, 1, 0
        %v1730 = vsel %vm1633, 1, 0
        %v1731 = vsel %vm1634, 1, 0
        %v1732 = vsel %vm1635, 1, 0
        %v1733 = vsel %vm1636, 1, 0
        %v1734 = vsel %vm1637, 1, 0
        %v1735 = vsel %vm1638, 1, 0
        %v1736 = vsel %vm1639, 1, 0
        %v1737 = vsel %vm1640, 1, 0
        %v1738 = vsel %vm1641, 1, 0
        %v1739 = vsel %vm1642, 1, 0
        %v1740 = vsel %vm1643, 1, 0
        %v1741 = vsel %vm1644, 1, 0
        %v1742 = vsel %vm1645, 1, 0
        %v1743 = vsel %vm1646, 1, 0
        %v1744 = vsel %vm1647, 1, 0
        %v1745 = vsel %vm1648, 1, 0
        %v1746 = vsel %vm1649, 1, 0
        %v1747 = vsel %vm1650, 1, 0
        %v1748 = vsel %vm1651, 1, 0
        %v1749 = vsel %vm1652, 1, 0
        %v1750 = vsel %vm1653, 1, 0
        %v1751 = vsel %vm1654, 1, 0
        %v1752 = vsel %vm1655, 1, 0
        %v1753 = vsel %vm1656, 1, 0
        %v1754 = vsel %vm1657, 1, 0
        %v1755 = vsel %vm1658, 1, 0
        %vm1756 = vcmp.eq.s32.totalorder %v1724, 1
        %vm1757 = vcmp.eq.s32.totalorder %v1725, 1
        %vm1758 = vcmp.eq.s32.totalorder %v1726, 1
        %vm1759 = vcmp.eq.s32.totalorder %v1727, 1
        %vm1760 = vcmp.eq.s32.totalorder %v1728, 1
        %vm1761 = vcmp.eq.s32.totalorder %v1729, 1
        %vm1762 = vcmp.eq.s32.totalorder %v1730, 1
        %vm1763 = vcmp.eq.s32.totalorder %v1731, 1
        %vm1764 = vcmp.eq.s32.totalorder %v1732, 1
        %vm1765 = vcmp.eq.s32.totalorder %v1733, 1
        %vm1766 = vcmp.eq.s32.totalorder %v1734, 1
        %vm1767 = vcmp.eq.s32.totalorder %v1735, 1
        %vm1768 = vcmp.eq.s32.totalorder %v1736, 1
        %vm1769 = vcmp.eq.s32.totalorder %v1737, 1
        %vm1770 = vcmp.eq.s32.totalorder %v1738, 1
        %vm1771 = vcmp.eq.s32.totalorder %v1739, 1
        %vm1772 = vcmp.eq.s32.totalorder %v1740, 1
        %vm1773 = vcmp.eq.s32.totalorder %v1741, 1
        %vm1774 = vcmp.eq.s32.totalorder %v1742, 1
        %vm1775 = vcmp.eq.s32.totalorder %v1743, 1
        %vm1776 = vcmp.eq.s32.totalorder %v1744, 1
        %vm1777 = vcmp.eq.s32.totalorder %v1745, 1
        %vm1778 = vcmp.eq.s32.totalorder %v1746, 1
        %vm1779 = vcmp.eq.s32.totalorder %v1747, 1
        %vm1780 = vcmp.eq.s32.totalorder %v1748, 1
        %vm1781 = vcmp.eq.s32.totalorder %v1749, 1
        %vm1782 = vcmp.eq.s32.totalorder %v1750, 1
        %vm1783 = vcmp.eq.s32.totalorder %v1751, 1
        %vm1784 = vcmp.eq.s32.totalorder %v1752, 1
        %vm1785 = vcmp.eq.s32.totalorder %v1753, 1
        %vm1786 = vcmp.eq.s32.totalorder %v1754, 1
        %vm1787 = vcmp.eq.s32.totalorder %v1755, 1
        %v1788 = vsel %vm1756, %v1722, 0.0
        %v1789 = vsel %vm1757, %v1721, 0.0
        %v1790 = vsel %vm1758, %v1720, 0.0
        %v1791 = vsel %vm1759, %v1719, 0.0
        %v1792 = vsel %vm1760, %v1718, 0.0
        %v1793 = vsel %vm1761, %v1717, 0.0
        %v1794 = vsel %vm1762, %v1716, 0.0
        %v1795 = vsel %vm1763, %v1715, 0.0
        %v1796 = vsel %vm1764, %v1714, 0.0
        %v1797 = vsel %vm1765, %v1713, 0.0
        %v1798 = vsel %vm1766, %v1712, 0.0
        %v1799 = vsel %vm1767, %v1711, 0.0
        %v1800 = vsel %vm1768, %v1710, 0.0
        %v1801 = vsel %vm1769, %v1709, 0.0
        %v1802 = vsel %vm1770, %v1708, 0.0
        %v1803 = vsel %vm1771, %v1707, 0.0
        %v1804 = vsel %vm1772, %v1706, 0.0
        %v1805 = vsel %vm1773, %v1705, 0.0
        %v1806 = vsel %vm1774, %v1704, 0.0
        %v1807 = vsel %vm1775, %v1703, 0.0
        %v1808 = vsel %vm1776, %v1702, 0.0
        %v1809 = vsel %vm1777, %v1701, 0.0
        %v1810 = vsel %vm1778, %v1700, 0.0
        %v1811 = vsel %vm1779, %v1699, 0.0
        %v1812 = vsel %vm1780, %v1698, 0.0
        %v1813 = vsel %vm1781, %v1697, 0.0
        %v1814 = vsel %vm1782, %v1696, 0.0
        %v1815 = vsel %vm1783, %v1695, 0.0
        %v1816 = vsel %vm1784, %v1694, 0.0
        %v1817 = vsel %vm1785, %v1693, 0.0
        %v1818 = vsel %vm1786, %v1692, 0.0
        %v1819 = vsel %vm1787, %v1723, 0.0
        %1852 = vrot.lane.b32.xlu0 %v601, 16
        %v1853 = vpop.permute.xlu0 %1852
        %1854 = vrot.lane.b32.xlu0 %v602, 16
        %v1855 = vpop.permute.xlu0 %1854
        %1856 = vrot.lane.b32.xlu0 %v603, 16
        %v1857 = vpop.permute.xlu0 %1856
        %1858 = vrot.lane.b32.xlu0 %v604, 16
        %v1859 = vpop.permute.xlu0 %1858
        %1860 = vrot.lane.b32.xlu0 %v605, 16
        %v1861 = vpop.permute.xlu0 %1860
        %1862 = vrot.lane.b32.xlu0 %v606, 16
        %v1863 = vpop.permute.xlu0 %1862
        %1864 = vrot.lane.b32.xlu0 %v607, 16
        %v1865 = vpop.permute.xlu0 %1864
        %1866 = vrot.lane.b32.xlu0 %v608, 16
        %v1867 = vpop.permute.xlu0 %1866
        %1868 = vrot.lane.b32.xlu0 %v609, 16
        %v1869 = vpop.permute.xlu0 %1868
        %1870 = vrot.lane.b32.xlu0 %v610, 16
        %v1871 = vpop.permute.xlu0 %1870
        %1872 = vrot.lane.b32.xlu0 %v611, 16
        %v1873 = vpop.permute.xlu0 %1872
        %1874 = vrot.lane.b32.xlu0 %v612, 16
        %v1875 = vpop.permute.xlu0 %1874
        %1876 = vrot.lane.b32.xlu0 %v613, 16
        %v1877 = vpop.permute.xlu0 %1876
        %1878 = vrot.lane.b32.xlu0 %v614, 16
        %v1879 = vpop.permute.xlu0 %1878
        %1880 = vrot.lane.b32.xlu0 %v615, 16
        %v1881 = vpop.permute.xlu0 %1880
        %1882 = vrot.lane.b32.xlu0 %v616, 16
        %v1883 = vpop.permute.xlu0 %1882
        %1884 = vrot.lane.b32.xlu0 %v617, 16
        %v1885 = vpop.permute.xlu0 %1884
        %1886 = vrot.lane.b32.xlu0 %v618, 16
        %v1887 = vpop.permute.xlu0 %1886
        %1888 = vrot.lane.b32.xlu0 %v619, 16
        %v1889 = vpop.permute.xlu0 %1888
        %1890 = vrot.lane.b32.xlu0 %v620, 16
        %v1891 = vpop.permute.xlu0 %1890
        %1892 = vrot.lane.b32.xlu0 %v621, 16
        %v1893 = vpop.permute.xlu0 %1892
        %1894 = vrot.lane.b32.xlu0 %v622, 16
        %v1895 = vpop.permute.xlu0 %1894
        %1896 = vrot.lane.b32.xlu0 %v623, 16
        %v1897 = vpop.permute.xlu0 %1896
        %1898 = vrot.lane.b32.xlu0 %v624, 16
        %v1899 = vpop.permute.xlu0 %1898
        %1900 = vrot.lane.b32.xlu0 %v625, 16
        %v1901 = vpop.permute.xlu0 %1900
        %1902 = vrot.lane.b32.xlu0 %v626, 16
        %v1903 = vpop.permute.xlu0 %1902
        %1904 = vrot.lane.b32.xlu0 %v627, 16
        %v1905 = vpop.permute.xlu0 %1904
        %1906 = vrot.lane.b32.xlu0 %v628, 16
        %v1907 = vpop.permute.xlu0 %1906
        %1908 = vrot.lane.b32.xlu0 %v629, 16
        %v1909 = vpop.permute.xlu0 %1908
        %1910 = vrot.lane.b32.xlu0 %v630, 16
        %v1911 = vpop.permute.xlu0 %1910
        %1912 = vrot.lane.b32.xlu0 %v631, 16
        %v1913 = vpop.permute.xlu0 %1912
        %1914 = vrot.lane.b32.xlu0 %v632, 16
        %v1915 = vpop.permute.xlu0 %1914
        %1980 = vrot.lane.b32.xlu0 %v1788, 32
        %v1981 = vpop.permute.xlu0 %1980
        %1982 = vrot.lane.b32.xlu0 %v1789, 32
        %v1983 = vpop.permute.xlu0 %1982
        %1984 = vrot.lane.b32.xlu0 %v1790, 32
        %v1985 = vpop.permute.xlu0 %1984
        %1986 = vrot.lane.b32.xlu0 %v1791, 32
        %v1987 = vpop.permute.xlu0 %1986
        %1988 = vrot.lane.b32.xlu0 %v1792, 32
        %v1989 = vpop.permute.xlu0 %1988
        %1990 = vrot.lane.b32.xlu0 %v1793, 32
        %v1991 = vpop.permute.xlu0 %1990
        %1992 = vrot.lane.b32.xlu0 %v1794, 32
        %v1993 = vpop.permute.xlu0 %1992
        %1994 = vrot.lane.b32.xlu0 %v1795, 32
        %v1995 = vpop.permute.xlu0 %1994
        %1996 = vrot.lane.b32.xlu0 %v1796, 32
        %v1997 = vpop.permute.xlu0 %1996
        %1998 = vrot.lane.b32.xlu0 %v1797, 32
        %v1999 = vpop.permute.xlu0 %1998
        %2000 = vrot.lane.b32.xlu0 %v1798, 32
        %v2001 = vpop.permute.xlu0 %2000
        %2002 = vrot.lane.b32.xlu0 %v1799, 32
        %v2003 = vpop.permute.xlu0 %2002
        %2004 = vrot.lane.b32.xlu0 %v1800, 32
        %v2005 = vpop.permute.xlu0 %2004
        %2006 = vrot.lane.b32.xlu0 %v1801, 32
        %v2007 = vpop.permute.xlu0 %2006
        %2008 = vrot.lane.b32.xlu0 %v1802, 32
        %v2009 = vpop.permute.xlu0 %2008
        %2010 = vrot.lane.b32.xlu0 %v1803, 32
        %v2011 = vpop.permute.xlu0 %2010
        %2012 = vrot.lane.b32.xlu0 %v1804, 32
        %v2013 = vpop.permute.xlu0 %2012
        %2014 = vrot.lane.b32.xlu0 %v1805, 32
        %v2015 = vpop.permute.xlu0 %2014
        %2016 = vrot.lane.b32.xlu0 %v1806, 32
        %v2017 = vpop.permute.xlu0 %2016
        %2018 = vrot.lane.b32.xlu0 %v1807, 32
        %v2019 = vpop.permute.xlu0 %2018
        %2020 = vrot.lane.b32.xlu0 %v1808, 32
        %v2021 = vpop.permute.xlu0 %2020
        %2022 = vrot.lane.b32.xlu0 %v1809, 32
        %v2023 = vpop.permute.xlu0 %2022
        %2024 = vrot.lane.b32.xlu0 %v1810, 32
        %v2025 = vpop.permute.xlu0 %2024
        %2026 = vrot.lane.b32.xlu0 %v1811, 32
        %v2027 = vpop.permute.xlu0 %2026
        %2028 = vrot.lane.b32.xlu0 %v1812, 32
        %v2029 = vpop.permute.xlu0 %2028
        %2030 = vrot.lane.b32.xlu0 %v1813, 32
        %v2031 = vpop.permute.xlu0 %2030
        %2032 = vrot.lane.b32.xlu0 %v1814, 32
        %v2033 = vpop.permute.xlu0 %2032
        %2034 = vrot.lane.b32.xlu0 %v1815, 32
        %v2035 = vpop.permute.xlu0 %2034
        %2036 = vrot.lane.b32.xlu0 %v1816, 32
        %v2037 = vpop.permute.xlu0 %2036
        %2038 = vrot.lane.b32.xlu0 %v1817, 32
        %v2039 = vpop.permute.xlu0 %2038
        %2040 = vrot.lane.b32.xlu0 %v1818, 32
        %v2041 = vpop.permute.xlu0 %2040
        %2042 = vrot.lane.b32.xlu0 %v1819, 32
        %v2043 = vpop.permute.xlu0 %2042
        %vm2076 = vcmask 130048
        %v2077 = vsel %vm2076, %v1595, %v1853
        %v2078 = vsel %vm2076, %v1596, %v1855
        %v2079 = vsel %vm2076, %v1597, %v1857
        %v2080 = vsel %vm2076, %v1598, %v1859
        %v2081 = vsel %vm2076, %v1599, %v1861
        %v2082 = vsel %vm2076, %v1600, %v1863
        %v2083 = vsel %vm2076, %v1601, %v1865
        %v2084 = vsel %vm2076, %v1602, %v1867
        %v2085 = vsel %vm2076, %v1603, %v1869
        %v2086 = vsel %vm2076, %v1604, %v1871
        %v2087 = vsel %vm2076, %v1605, %v1873
        %v2088 = vsel %vm2076, %v1606, %v1875
        %v2089 = vsel %vm2076, %v1607, %v1877
        %v2090 = vsel %vm2076, %v1608, %v1879
        %v2091 = vsel %vm2076, %v1609, %v1881
        %v2092 = vsel %vm2076, %v1610, %v1883
        %v2093 = vsel %vm2076, %v1611, %v1885
        %v2094 = vsel %vm2076, %v1612, %v1887
        %v2095 = vsel %vm2076, %v1613, %v1889
        %v2096 = vsel %vm2076, %v1614, %v1891
        %v2097 = vsel %vm2076, %v1615, %v1893
        %v2098 = vsel %vm2076, %v1616, %v1895
        %v2099 = vsel %vm2076, %v1617, %v1897
        %v2100 = vsel %vm2076, %v1618, %v1899
        %v2101 = vsel %vm2076, %v1619, %v1901
        %v2102 = vsel %vm2076, %v1620, %v1903
        %v2103 = vsel %vm2076, %v1621, %v1905
        %v2104 = vsel %vm2076, %v1622, %v1907
        %v2105 = vsel %vm2076, %v1623, %v1909
        %v2106 = vsel %vm2076, %v1624, %v1911
        %v2107 = vsel %vm2076, %v1625, %v1913
        %v2108 = vsel %vm2076, %v1626, %v1915
        %vm2109 = vcmask 261120
        %v2110 = vsel %vm2109, %v2077, %v1981
        %v2111 = vsel %vm2109, %v2078, %v1983
        %v2112 = vsel %vm2109, %v2079, %v1985
        %v2113 = vsel %vm2109, %v2080, %v1987
        %v2114 = vsel %vm2109, %v2081, %v1989
        %v2115 = vsel %vm2109, %v2082, %v1991
        %v2116 = vsel %vm2109, %v2083, %v1993
        %v2117 = vsel %vm2109, %v2084, %v1995
        %v2118 = vsel %vm2109, %v2085, %v1997
        %v2119 = vsel %vm2109, %v2086, %v1999
        %v2120 = vsel %vm2109, %v2087, %v2001
        %v2121 = vsel %vm2109, %v2088, %v2003
        %v2122 = vsel %vm2109, %v2089, %v2005
        %v2123 = vsel %vm2109, %v2090, %v2007
        %v2124 = vsel %vm2109, %v2091, %v2009
        %v2125 = vsel %vm2109, %v2092, %v2011
        %v2126 = vsel %vm2109, %v2093, %v2013
        %v2127 = vsel %vm2109, %v2094, %v2015
        %v2128 = vsel %vm2109, %v2095, %v2017
        %v2129 = vsel %vm2109, %v2096, %v2019
        %v2130 = vsel %vm2109, %v2097, %v2021
        %v2131 = vsel %vm2109, %v2098, %v2023
        %v2132 = vsel %vm2109, %v2099, %v2025
        %v2133 = vsel %vm2109, %v2100, %v2027
        %v2134 = vsel %vm2109, %v2101, %v2029
        %v2135 = vsel %vm2109, %v2102, %v2031
        %v2136 = vsel %vm2109, %v2103, %v2033
        %v2137 = vsel %vm2109, %v2104, %v2035
        %v2138 = vsel %vm2109, %v2105, %v2037
        %v2139 = vsel %vm2109, %v2106, %v2039
        %v2140 = vsel %vm2109, %v2107, %v2041
        %v2141 = vsel %vm2109, %v2108, %v2043
        %vm2142 = vcmp.ge.s32.totalorder %v1402, 16
        %vm2143 = vcmp.ge.s32.totalorder %v1403, 16
        %vm2144 = vcmp.ge.s32.totalorder %v1404, 16
        %vm2145 = vcmp.ge.s32.totalorder %v1405, 16
        %vm2146 = vcmp.ge.s32.totalorder %v1406, 16
        %vm2147 = vcmp.ge.s32.totalorder %v1407, 16
        %vm2148 = vcmp.ge.s32.totalorder %v1408, 16
        %vm2149 = vcmp.ge.s32.totalorder %v1409, 16
        %vm2150 = vcmp.ge.s32.totalorder %v1410, 16
        %vm2151 = vcmp.ge.s32.totalorder %v1411, 16
        %vm2152 = vcmp.ge.s32.totalorder %v1412, 16
        %vm2153 = vcmp.ge.s32.totalorder %v1413, 16
        %vm2154 = vcmp.ge.s32.totalorder %v1414, 16
        %vm2155 = vcmp.ge.s32.totalorder %v1415, 16
        %vm2156 = vcmp.ge.s32.totalorder %v1416, 16
        %vm2157 = vcmp.ge.s32.totalorder %v1417, 16
        %vm2158 = vcmp.ge.s32.totalorder %v1418, 16
        %vm2159 = vcmp.ge.s32.totalorder %v1419, 16
        %vm2160 = vcmp.ge.s32.totalorder %v1420, 16
        %vm2161 = vcmp.ge.s32.totalorder %v1421, 16
        %vm2162 = vcmp.ge.s32.totalorder %v1422, 16
        %vm2163 = vcmp.ge.s32.totalorder %v1423, 16
        %vm2164 = vcmp.ge.s32.totalorder %v1424, 16
        %vm2165 = vcmp.ge.s32.totalorder %v1425, 16
        %vm2166 = vcmp.ge.s32.totalorder %v1426, 16
        %vm2167 = vcmp.ge.s32.totalorder %v1427, 16
        %vm2168 = vcmp.ge.s32.totalorder %v1428, 16
        %vm2169 = vcmp.ge.s32.totalorder %v1429, 16
        %vm2170 = vcmp.ge.s32.totalorder %v1430, 16
        %vm2171 = vcmp.ge.s32.totalorder %v1431, 16
        %vm2172 = vcmp.ge.s32.totalorder %v1432, 16
        %vm2173 = vcmp.ge.s32.totalorder %v1433, 16
        %v2174 = vsel %vm2142, 1, 0
        %v2175 = vsel %vm2143, 1, 0
        %v2176 = vsel %vm2144, 1, 0
        %v2177 = vsel %vm2145, 1, 0
        %v2178 = vsel %vm2146, 1, 0
        %v2179 = vsel %vm2147, 1, 0
        %v2180 = vsel %vm2148, 1, 0
        %v2181 = vsel %vm2149, 1, 0
        %v2182 = vsel %vm2150, 1, 0
        %v2183 = vsel %vm2151, 1, 0
        %v2184 = vsel %vm2152, 1, 0
        %v2185 = vsel %vm2153, 1, 0
        %v2186 = vsel %vm2154, 1, 0
        %v2187 = vsel %vm2155, 1, 0
        %v2188 = vsel %vm2156, 1, 0
        %v2189 = vsel %vm2157, 1, 0
        %v2190 = vsel %vm2158, 1, 0
        %v2191 = vsel %vm2159, 1, 0
        %v2192 = vsel %vm2160, 1, 0
        %v2193 = vsel %vm2161, 1, 0
        %v2194 = vsel %vm2162, 1, 0
        %v2195 = vsel %vm2163, 1, 0
        %v2196 = vsel %vm2164, 1, 0
        %v2197 = vsel %vm2165, 1, 0
        %v2198 = vsel %vm2166, 1, 0
        %v2199 = vsel %vm2167, 1, 0
        %v2200 = vsel %vm2168, 1, 0
        %v2201 = vsel %vm2169, 1, 0
        %v2202 = vsel %vm2170, 1, 0
        %v2203 = vsel %vm2171, 1, 0
        %v2204 = vsel %vm2172, 1, 0
        %v2205 = vsel %vm2173, 1, 0
        %vm2206 = vcmp.eq.s32.totalorder %v2174, 1
        %vm2207 = vcmp.eq.s32.totalorder %v2175, 1
        %vm2208 = vcmp.eq.s32.totalorder %v2176, 1
        %vm2209 = vcmp.eq.s32.totalorder %v2177, 1
        %vm2210 = vcmp.eq.s32.totalorder %v2178, 1
        %vm2211 = vcmp.eq.s32.totalorder %v2179, 1
        %vm2212 = vcmp.eq.s32.totalorder %v2180, 1
        %vm2213 = vcmp.eq.s32.totalorder %v2181, 1
        %vm2214 = vcmp.eq.s32.totalorder %v2182, 1
        %vm2215 = vcmp.eq.s32.totalorder %v2183, 1
        %vm2216 = vcmp.eq.s32.totalorder %v2184, 1
        %vm2217 = vcmp.eq.s32.totalorder %v2185, 1
        %vm2218 = vcmp.eq.s32.totalorder %v2186, 1
        %vm2219 = vcmp.eq.s32.totalorder %v2187, 1
        %vm2220 = vcmp.eq.s32.totalorder %v2188, 1
        %vm2221 = vcmp.eq.s32.totalorder %v2189, 1
        %vm2222 = vcmp.eq.s32.totalorder %v2190, 1
        %vm2223 = vcmp.eq.s32.totalorder %v2191, 1
        %vm2224 = vcmp.eq.s32.totalorder %v2192, 1
        %vm2225 = vcmp.eq.s32.totalorder %v2193, 1
        %vm2226 = vcmp.eq.s32.totalorder %v2194, 1
        %vm2227 = vcmp.eq.s32.totalorder %v2195, 1
        %vm2228 = vcmp.eq.s32.totalorder %v2196, 1
        %vm2229 = vcmp.eq.s32.totalorder %v2197, 1
        %vm2230 = vcmp.eq.s32.totalorder %v2198, 1
        %vm2231 = vcmp.eq.s32.totalorder %v2199, 1
        %vm2232 = vcmp.eq.s32.totalorder %v2200, 1
        %vm2233 = vcmp.eq.s32.totalorder %v2201, 1
        %vm2234 = vcmp.eq.s32.totalorder %v2202, 1
        %vm2235 = vcmp.eq.s32.totalorder %v2203, 1
        %vm2236 = vcmp.eq.s32.totalorder %v2204, 1
        %vm2237 = vcmp.eq.s32.totalorder %v2205, 1
        %v2238 = vsel %vm2206, %v2140, 0.0
        %v2239 = vsel %vm2207, %v2141, 0.0
        %v2240 = vsel %vm2208, %v2110, 0.0
        %v2241 = vsel %vm2209, %v2111, 0.0
        %v2242 = vsel %vm2210, %v2112, 0.0
        %v2243 = vsel %vm2211, %v2113, 0.0
        %v2244 = vsel %vm2212, %v2114, 0.0
        %v2245 = vsel %vm2213, %v2115, 0.0
        %v2246 = vsel %vm2214, %v2116, 0.0
        %v2247 = vsel %vm2215, %v2117, 0.0
        %v2248 = vsel %vm2216, %v2118, 0.0
        %v2249 = vsel %vm2217, %v2119, 0.0
        %v2250 = vsel %vm2218, %v2120, 0.0
        %v2251 = vsel %vm2219, %v2121, 0.0
        %v2252 = vsel %vm2220, %v2122, 0.0
        %v2253 = vsel %vm2221, %v2123, 0.0
        %v2254 = vsel %vm2222, %v2124, 0.0
        %v2255 = vsel %vm2223, %v2125, 0.0
        %v2256 = vsel %vm2224, %v2126, 0.0
        %v2257 = vsel %vm2225, %v2127, 0.0
        %v2258 = vsel %vm2226, %v2128, 0.0
        %v2259 = vsel %vm2227, %v2129, 0.0
        %v2260 = vsel %vm2228, %v2130, 0.0
        %v2261 = vsel %vm2229, %v2131, 0.0
        %v2262 = vsel %vm2230, %v2132, 0.0
        %v2263 = vsel %vm2231, %v2133, 0.0
        %v2264 = vsel %vm2232, %v2134, 0.0
        %v2265 = vsel %vm2233, %v2135, 0.0
        %v2266 = vsel %vm2234, %v2136, 0.0
        %v2267 = vsel %vm2235, %v2137, 0.0
        %v2268 = vsel %vm2236, %v2138, 0.0
        %v2269 = vsel %vm2237, %v2139, 0.0
        %vm2270 = vcmp.lt.s32.totalorder %v1402, 240
        %vm2271 = vcmp.lt.s32.totalorder %v1403, 240
        %vm2272 = vcmp.lt.s32.totalorder %v1404, 240
        %vm2273 = vcmp.lt.s32.totalorder %v1405, 240
        %vm2274 = vcmp.lt.s32.totalorder %v1406, 240
        %vm2275 = vcmp.lt.s32.totalorder %v1407, 240
        %vm2276 = vcmp.lt.s32.totalorder %v1408, 240
        %vm2277 = vcmp.lt.s32.totalorder %v1409, 240
        %vm2278 = vcmp.lt.s32.totalorder %v1410, 240
        %vm2279 = vcmp.lt.s32.totalorder %v1411, 240
        %vm2280 = vcmp.lt.s32.totalorder %v1412, 240
        %vm2281 = vcmp.lt.s32.totalorder %v1413, 240
        %vm2282 = vcmp.lt.s32.totalorder %v1414, 240
        %vm2283 = vcmp.lt.s32.totalorder %v1415, 240
        %vm2284 = vcmp.lt.s32.totalorder %v1416, 240
        %vm2285 = vcmp.lt.s32.totalorder %v1417, 240
        %vm2286 = vcmp.lt.s32.totalorder %v1418, 240
        %vm2287 = vcmp.lt.s32.totalorder %v1419, 240
        %vm2288 = vcmp.lt.s32.totalorder %v1420, 240
        %vm2289 = vcmp.lt.s32.totalorder %v1421, 240
        %vm2290 = vcmp.lt.s32.totalorder %v1422, 240
        %vm2291 = vcmp.lt.s32.totalorder %v1423, 240
        %vm2292 = vcmp.lt.s32.totalorder %v1424, 240
        %vm2293 = vcmp.lt.s32.totalorder %v1425, 240
        %vm2294 = vcmp.lt.s32.totalorder %v1426, 240
        %vm2295 = vcmp.lt.s32.totalorder %v1427, 240
        %vm2296 = vcmp.lt.s32.totalorder %v1428, 240
        %vm2297 = vcmp.lt.s32.totalorder %v1429, 240
        %vm2298 = vcmp.lt.s32.totalorder %v1430, 240
        %vm2299 = vcmp.lt.s32.totalorder %v1431, 240
        %vm2300 = vcmp.lt.s32.totalorder %v1432, 240
        %vm2301 = vcmp.lt.s32.totalorder %v1433, 240
        %v2302 = vsel %vm2270, 1, 0
        %v2303 = vsel %vm2271, 1, 0
        %v2304 = vsel %vm2272, 1, 0
        %v2305 = vsel %vm2273, 1, 0
        %v2306 = vsel %vm2274, 1, 0
        %v2307 = vsel %vm2275, 1, 0
        %v2308 = vsel %vm2276, 1, 0
        %v2309 = vsel %vm2277, 1, 0
        %v2310 = vsel %vm2278, 1, 0
        %v2311 = vsel %vm2279, 1, 0
        %v2312 = vsel %vm2280, 1, 0
        %v2313 = vsel %vm2281, 1, 0
        %v2314 = vsel %vm2282, 1, 0
        %v2315 = vsel %vm2283, 1, 0
        %v2316 = vsel %vm2284, 1, 0
        %v2317 = vsel %vm2285, 1, 0
        %v2318 = vsel %vm2286, 1, 0
        %v2319 = vsel %vm2287, 1, 0
        %v2320 = vsel %vm2288, 1, 0
        %v2321 = vsel %vm2289, 1, 0
        %v2322 = vsel %vm2290, 1, 0
        %v2323 = vsel %vm2291, 1, 0
        %v2324 = vsel %vm2292, 1, 0
        %v2325 = vsel %vm2293, 1, 0
        %v2326 = vsel %vm2294, 1, 0
        %v2327 = vsel %vm2295, 1, 0
        %v2328 = vsel %vm2296, 1, 0
        %v2329 = vsel %vm2297, 1, 0
        %v2330 = vsel %vm2298, 1, 0
        %v2331 = vsel %vm2299, 1, 0
        %v2332 = vsel %vm2300, 1, 0
        %v2333 = vsel %vm2301, 1, 0
        %vm2334 = vcmp.eq.s32.totalorder %v2302, 1
        %vm2335 = vcmp.eq.s32.totalorder %v2303, 1
        %vm2336 = vcmp.eq.s32.totalorder %v2304, 1
        %vm2337 = vcmp.eq.s32.totalorder %v2305, 1
        %vm2338 = vcmp.eq.s32.totalorder %v2306, 1
        %vm2339 = vcmp.eq.s32.totalorder %v2307, 1
        %vm2340 = vcmp.eq.s32.totalorder %v2308, 1
        %vm2341 = vcmp.eq.s32.totalorder %v2309, 1
        %vm2342 = vcmp.eq.s32.totalorder %v2310, 1
        %vm2343 = vcmp.eq.s32.totalorder %v2311, 1
        %vm2344 = vcmp.eq.s32.totalorder %v2312, 1
        %vm2345 = vcmp.eq.s32.totalorder %v2313, 1
        %vm2346 = vcmp.eq.s32.totalorder %v2314, 1
        %vm2347 = vcmp.eq.s32.totalorder %v2315, 1
        %vm2348 = vcmp.eq.s32.totalorder %v2316, 1
        %vm2349 = vcmp.eq.s32.totalorder %v2317, 1
        %vm2350 = vcmp.eq.s32.totalorder %v2318, 1
        %vm2351 = vcmp.eq.s32.totalorder %v2319, 1
        %vm2352 = vcmp.eq.s32.totalorder %v2320, 1
        %vm2353 = vcmp.eq.s32.totalorder %v2321, 1
        %vm2354 = vcmp.eq.s32.totalorder %v2322, 1
        %vm2355 = vcmp.eq.s32.totalorder %v2323, 1
        %vm2356 = vcmp.eq.s32.totalorder %v2324, 1
        %vm2357 = vcmp.eq.s32.totalorder %v2325, 1
        %vm2358 = vcmp.eq.s32.totalorder %v2326, 1
        %vm2359 = vcmp.eq.s32.totalorder %v2327, 1
        %vm2360 = vcmp.eq.s32.totalorder %v2328, 1
        %vm2361 = vcmp.eq.s32.totalorder %v2329, 1
        %vm2362 = vcmp.eq.s32.totalorder %v2330, 1
        %vm2363 = vcmp.eq.s32.totalorder %v2331, 1
        %vm2364 = vcmp.eq.s32.totalorder %v2332, 1
        %vm2365 = vcmp.eq.s32.totalorder %v2333, 1
        %v2366 = vsel %vm2334, %v2112, 0.0
        %v2367 = vsel %vm2335, %v2113, 0.0
        %v2368 = vsel %vm2336, %v2114, 0.0
        %v2369 = vsel %vm2337, %v2115, 0.0
        %v2370 = vsel %vm2338, %v2116, 0.0
        %v2371 = vsel %vm2339, %v2117, 0.0
        %v2372 = vsel %vm2340, %v2118, 0.0
        %v2373 = vsel %vm2341, %v2119, 0.0
        %v2374 = vsel %vm2342, %v2120, 0.0
        %v2375 = vsel %vm2343, %v2121, 0.0
        %v2376 = vsel %vm2344, %v2122, 0.0
        %v2377 = vsel %vm2345, %v2123, 0.0
        %v2378 = vsel %vm2346, %v2124, 0.0
        %v2379 = vsel %vm2347, %v2125, 0.0
        %v2380 = vsel %vm2348, %v2126, 0.0
        %v2381 = vsel %vm2349, %v2127, 0.0
        %v2382 = vsel %vm2350, %v2128, 0.0
        %v2383 = vsel %vm2351, %v2129, 0.0
        %v2384 = vsel %vm2352, %v2130, 0.0
        %v2385 = vsel %vm2353, %v2131, 0.0
        %v2386 = vsel %vm2354, %v2132, 0.0
        %v2387 = vsel %vm2355, %v2133, 0.0
        %v2388 = vsel %vm2356, %v2134, 0.0
        %v2389 = vsel %vm2357, %v2135, 0.0
        %v2390 = vsel %vm2358, %v2136, 0.0
        %v2391 = vsel %vm2359, %v2137, 0.0
        %v2392 = vsel %vm2360, %v2138, 0.0
        %v2393 = vsel %vm2361, %v2139, 0.0
        %v2394 = vsel %vm2362, %v2140, 0.0
        %v2395 = vsel %vm2363, %v2141, 0.0
        %v2396 = vsel %vm2364, %v2110, 0.0
        %v2397 = vsel %vm2365, %v2111, 0.0
        %v2398 = vpack.c.bf16 %v2239, %v2238
        %v2399 = vpack.c.bf16 %v2241, %v2240
        %v2400 = vpack.c.bf16 %v2243, %v2242
        %v2401 = vpack.c.bf16 %v2245, %v2244
        %v2402 = vpack.c.bf16 %v2247, %v2246
        %v2403 = vpack.c.bf16 %v2249, %v2248
        %v2404 = vpack.c.bf16 %v2251, %v2250
        %v2405 = vpack.c.bf16 %v2253, %v2252
        %v2406 = vpack.c.bf16 %v2255, %v2254
        %v2407 = vpack.c.bf16 %v2257, %v2256
        %v2408 = vpack.c.bf16 %v2259, %v2258
        %v2409 = vpack.c.bf16 %v2261, %v2260
        %v2410 = vpack.c.bf16 %v2263, %v2262
        %v2411 = vpack.c.bf16 %v2265, %v2264
        %v2412 = vpack.c.bf16 %v2267, %v2266
        %v2413 = vpack.c.bf16 %v2269, %v2268
        %v2414 = vld [vmem:[%s3] sm:$0xf]
        %v2415 = vld [vmem:[%s3 + $0x4] sm:$0xf]
        %v2416 = vld [vmem:[%s3 + $0x8] sm:$0xf]
        %v2417 = vld [vmem:[%s3 + $0xc] sm:$0xf]
        %v2418 = vld [vmem:[%s3 + $0x10] sm:$0xf]
        %v2419 = vld [vmem:[%s3 + $0x14] sm:$0xf]
        %v2420 = vpack.c.bf16 %v2111, %v2110
        %v2421 = vpack.c.bf16 %v2113, %v2112
        %v2422 = vpack.c.bf16 %v2115, %v2114
        %v2423 = vpack.c.bf16 %v2117, %v2116
        %v2424 = vpack.c.bf16 %v2119, %v2118
        %v2425 = vpack.c.bf16 %v2121, %v2120
        %v2426 = vpack.c.bf16 %v2123, %v2122
        %v2427 = vpack.c.bf16 %v2125, %v2124
        %v2428 = vpack.c.bf16 %v2127, %v2126
        %v2429 = vpack.c.bf16 %v2129, %v2128
        %v2430 = vpack.c.bf16 %v2131, %v2130
        %v2431 = vpack.c.bf16 %v2133, %v2132
        %v2432 = vpack.c.bf16 %v2135, %v2134
        %v2433 = vpack.c.bf16 %v2137, %v2136
        %v2434 = vpack.c.bf16 %v2139, %v2138
        %v2435 = vpack.c.bf16 %v2141, %v2140
        %v2436 = vld [vmem:[%s3 + $0x18] sm:$0xf]
        %v2437 = vld [vmem:[%s3 + $0x1c] sm:$0xf]
        %v2438 = vld [vmem:[%s3 + $0x20] sm:$0xf]
        %v2439 = vld [vmem:[%s3 + $0x24] sm:$0xf]
        %v2440 = vld [vmem:[%s3 + $0x28] sm:$0xf]
        %v2441 = vld [vmem:[%s3 + $0x2c] sm:$0xf]
        %v2448 = vunpack.c.l.b16 %v2436
        %v2449 = vunpack.c.l.b16 %v2437
        %v2450 = vunpack.c.l.b16 %v2438
        %v2451 = vunpack.c.l.b16 %v2439
        %v2452 = vunpack.c.l.b16 %v2440
        %v2453 = vunpack.c.l.b16 %v2441
        %v2454 = vpack.c.b16 %v2449, %v2448
        %v2455 = vpack.c.b16 %v2451, %v2450
        %v2456 = vpack.c.b16 %v2453, %v2452
        %vm2460 = vcmask 392192
        %v2462 = vsel %vm2460, %v2420, 0
        %v2465 = vsel %vm2460, %v2421, 0
        %v2468 = vsel %vm2460, %v2422, 0
        %v2471 = vsel %vm2460, %v2423, 0
        %v2474 = vsel %vm2460, %v2424, 0
        %v2477 = vsel %vm2460, %v2425, 0
        %v2480 = vsel %vm2460, %v2426, 0
        %v2483 = vsel %vm2460, %v2427, 0
        %v2486 = vsel %vm2460, %v2428, 0
        %v2489 = vsel %vm2460, %v2429, 0
        %v2492 = vsel %vm2460, %v2430, 0
        %v2495 = vsel %vm2460, %v2431, 0
        %v2498 = vsel %vm2460, %v2432, 0
        %v2501 = vsel %vm2460, %v2433, 0
        %v2504 = vsel %vm2460, %v2434, 0
        %v2507 = vsel %vm2460, %v2435, 0
        %2509 = vmatprep.subr.bf16.mxu0 0
        %2510 = vmatpush1.bf16.msra.mxu0 %v2454
        %2511 = vmatprep.subr.bf16.mxu0 0
        %2512 = vmatpush1.bf16.msra.mxu0 %v2455
        %2513 = vmatprep.subr.bf16.mxu0 0
        %2514 = vmatpush1.bf16.msra.mxu0 %v2456
        %2515 = vmatprep.subr.bf16.mxu0 0
        %2516 = vmatpush1.bf16.msra.mxu0 0
        %2517 = vmatprep.subr.bf16.mxu0 0
        %2518 = vmatpush1.bf16.msra.mxu0 0
        %2519 = vmatprep.subr.bf16.mxu0 0
        %2520 = vmatpush1.bf16.msra.mxu0 0
        %2521 = vmatprep.subr.bf16.mxu0 0
        %2522 = vmatpush1.bf16.msra.mxu0 0
        %2523 = vmatprep.subr.bf16.mxu0 0
        %2524 = vmatpush1.bf16.msra.mxu0 0
        %2525 = vmatprep.subr.bf16.mxu0 0
        %2526 = vmatpush1.bf16.msra.mxu0 0
        %2527 = vmatprep.subr.bf16.mxu0 0
        %2528 = vmatpush1.bf16.msra.mxu0 0
        %2529 = vmatprep.subr.bf16.mxu0 0
        %2530 = vmatpush1.bf16.msra.mxu0 0
        %2531 = vmatprep.subr.bf16.mxu0 0
        %2532 = vmatpush1.bf16.msra.mxu0 0
        %2533 = vmatprep.subr.bf16.mxu0 0
        %2534 = vmatpush1.bf16.msra.mxu0 0
        %2535 = vmatprep.subr.bf16.mxu0 0
        %2536 = vmatpush1.bf16.msra.mxu0 0
        %2537 = vmatprep.subr.bf16.mxu0 0
        %2538 = vmatpush1.bf16.msra.mxu0 0
        %2539 = vmatprep.subr.bf16.mxu0 0
        %2540 = vmatpush1.bf16.msra.mxu0 0
        %2541 = vmatprep.mubr.bf16.mxu0 0
        %2542 = vmatmul.mubr.bf16.gmra.mrb[0].mxu0 %v2462
        %v2543 = vpop.f32.mrb[0].mxu0
        %v2544 = vadd.f32 0.0, %v2543
        %v2545 = vpop.f32.mrb[0].mxu0
        %v2546 = vpop.f32.mrb[0].mxu0
        %v2547 = vadd.f32 0.0, %v2546
        %v2548 = vpop.f32.mrb[0].mxu0
        %2549 = vmatprep.mubr.bf16.mxu0 0
        %2550 = vmatmul.mubr.bf16.gmra.mrb[0].mxu0 %v2465
        %v2551 = vpop.f32.mrb[0].mxu0
        %v2552 = vadd.f32 0.0, %v2551
        %v2553 = vpop.f32.mrb[0].mxu0
        %v2554 = vpop.f32.mrb[0].mxu0
        %v2555 = vadd.f32 0.0, %v2554
        %v2556 = vpop.f32.mrb[0].mxu0
        %2557 = vmatprep.mubr.bf16.mxu0 0
        %2558 = vmatmul.mubr.bf16.gmra.mrb[0].mxu0 %v2468
        %v2559 = vpop.f32.mrb[0].mxu0
        %v2560 = vadd.f32 0.0, %v2559
        %v2561 = vpop.f32.mrb[0].mxu0
        %v2562 = vpop.f32.mrb[0].mxu0
        %v2563 = vadd.f32 0.0, %v2562
        %v2564 = vpop.f32.mrb[0].mxu0
        %2565 = vmatprep.mubr.bf16.mxu0 0
        %2566 = vmatmul.mubr.bf16.gmra.mrb[0].mxu0 %v2471
        %v2567 = vpop.f32.mrb[0].mxu0
        %v2568 = vadd.f32 0.0, %v2567
        %v2569 = vpop.f32.mrb[0].mxu0
        %v2570 = vpop.f32.mrb[0].mxu0
        %v2571 = vadd.f32 0.0, %v2570
        %v2572 = vpop.f32.mrb[0].mxu0
        %2573 = vmatprep.mubr.bf16.mxu0 0
        %2574 = vmatmul.mubr.bf16.gmra.mrb[0].mxu0 %v2474
        %v2575 = vpop.f32.mrb[0].mxu0
        %v2576 = vadd.f32 0.0, %v2575
        %v2577 = vpop.f32.mrb[0].mxu0
        %v2578 = vpop.f32.mrb[0].mxu0
        %v2579 = vadd.f32 0.0, %v2578
        %v2580 = vpop.f32.mrb[0].mxu0
        %2581 = vmatprep.mubr.bf16.mxu0 0
        %2582 = vmatmul.mubr.bf16.gmra.mrb[0].mxu0 %v2477
        %v2583 = vpop.f32.mrb[0].mxu0
        %v2584 = vadd.f32 0.0, %v2583
        %v2585 = vpop.f32.mrb[0].mxu0
        %v2586 = vpop.f32.mrb[0].mxu0
        %v2587 = vadd.f32 0.0, %v2586
        %v2588 = vpop.f32.mrb[0].mxu0
        %2589 = vmatprep.mubr.bf16.mxu0 0
        %2590 = vmatmul.mubr.bf16.gmra.mrb[0].mxu0 %v2480
        %v2591 = vpop.f32.mrb[0].mxu0
        %v2592 = vadd.f32 0.0, %v2591
        %v2593 = vpop.f32.mrb[0].mxu0
        %v2594 = vpop.f32.mrb[0].mxu0
        %v2595 = vadd.f32 0.0, %v2594
        %v2596 = vpop.f32.mrb[0].mxu0
        %2597 = vmatprep.mubr.bf16.mxu0 0
        %2598 = vmatmul.mubr.bf16.gmra.mrb[0].mxu0 %v2483
        %v2599 = vpop.f32.mrb[0].mxu0
        %v2600 = vadd.f32 0.0, %v2599
        %v2601 = vpop.f32.mrb[0].mxu0
        %v2602 = vpop.f32.mrb[0].mxu0
        %v2603 = vadd.f32 0.0, %v2602
        %v2604 = vpop.f32.mrb[0].mxu0
        %2605 = vmatprep.mubr.bf16.mxu0 0
        %2606 = vmatmul.mubr.bf16.gmra.mrb[0].mxu0 %v2486
        %v2607 = vpop.f32.mrb[0].mxu0
        %v2608 = vadd.f32 0.0, %v2607
        %v2609 = vpop.f32.mrb[0].mxu0
        %v2610 = vpop.f32.mrb[0].mxu0
        %v2611 = vadd.f32 0.0, %v2610
        %v2612 = vpop.f32.mrb[0].mxu0
        %2613 = vmatprep.mubr.bf16.mxu0 0
        %2614 = vmatmul.mubr.bf16.gmra.mrb[0].mxu0 %v2489
        %v2615 = vpop.f32.mrb[0].mxu0
        %v2616 = vadd.f32 0.0, %v2615
        %v2617 = vpop.f32.mrb[0].mxu0
        %v2618 = vpop.f32.mrb[0].mxu0
        %v2619 = vadd.f32 0.0, %v2618
        %v2620 = vpop.f32.mrb[0].mxu0
        %2621 = vmatprep.mubr.bf16.mxu0 0
        %2622 = vmatmul.mubr.bf16.gmra.mrb[0].mxu0 %v2492
        %v2623 = vpop.f32.mrb[0].mxu0
        %v2624 = vadd.f32 0.0, %v2623
        %v2625 = vpop.f32.mrb[0].mxu0
        %v2626 = vpop.f32.mrb[0].mxu0
        %v2627 = vadd.f32 0.0, %v2626
        %v2628 = vpop.f32.mrb[0].mxu0
        %2629 = vmatprep.mubr.bf16.mxu0 0
        %2630 = vmatmul.mubr.bf16.gmra.mrb[0].mxu0 %v2495
        %v2631 = vpop.f32.mrb[0].mxu0
        %v2632 = vadd.f32 0.0, %v2631
        %v2633 = vpop.f32.mrb[0].mxu0
        %v2634 = vpop.f32.mrb[0].mxu0
        %v2635 = vadd.f32 0.0, %v2634
        %v2636 = vpop.f32.mrb[0].mxu0
        %2637 = vmatprep.mubr.bf16.mxu0 0
        %2638 = vmatmul.mubr.bf16.gmra.mrb[0].mxu0 %v2498
        %v2639 = vpop.f32.mrb[0].mxu0
        %v2640 = vadd.f32 0.0, %v2639
        %v2641 = vpop.f32.mrb[0].mxu0
        %v2642 = vpop.f32.mrb[0].mxu0
        %v2643 = vadd.f32 0.0, %v2642
        %v2644 = vpop.f32.mrb[0].mxu0
        %2645 = vmatprep.mubr.bf16.mxu0 0
        %2646 = vmatmul.mubr.bf16.gmra.mrb[0].mxu0 %v2501
        %v2647 = vpop.f32.mrb[0].mxu0
        %v2648 = vadd.f32 0.0, %v2647
        %v2649 = vpop.f32.mrb[0].mxu0
        %v2650 = vpop.f32.mrb[0].mxu0
        %v2651 = vadd.f32 0.0, %v2650
        %v2652 = vpop.f32.mrb[0].mxu0
        %2653 = vmatprep.mubr.bf16.mxu0 0
        %2654 = vmatmul.mubr.bf16.gmra.mrb[0].mxu0 %v2504
        %v2655 = vpop.f32.mrb[0].mxu0
        %v2656 = vadd.f32 0.0, %v2655
        %v2657 = vpop.f32.mrb[0].mxu0
        %v2658 = vpop.f32.mrb[0].mxu0
        %v2659 = vadd.f32 0.0, %v2658
        %v2660 = vpop.f32.mrb[0].mxu0
        %2661 = vmatprep.mubr.bf16.mxu0 0
        %2662 = vmatmul.mubr.bf16.gmra.mrb[0].mxu0 %v2507
        %v2663 = vpop.f32.mrb[0].mxu0
        %v2664 = vadd.f32 0.0, %v2663
        %v2665 = vpop.f32.mrb[0].mxu0
        %v2666 = vpop.f32.mrb[0].mxu0
        %v2667 = vadd.f32 0.0, %v2666
        %v2668 = vpop.f32.mrb[0].mxu0
        %2669 = vdwg.mxu0
        %v2676 = vunpack.c.l.b16 %v2414
        %v2677 = vunpack.c.l.b16 %v2415
        %v2678 = vunpack.c.l.b16 %v2416
        %v2679 = vunpack.c.l.b16 %v2417
        %v2680 = vunpack.c.l.b16 %v2418
        %v2681 = vunpack.c.l.b16 %v2419
        %v2682 = vpack.c.b16 %v2677, %v2676
        %v2683 = vpack.c.b16 %v2679, %v2678
        %v2684 = vpack.c.b16 %v2681, %v2680
        %v2689 = vsel %vm2460, %v2398, 0
        %v2692 = vsel %vm2460, %v2399, 0
        %v2695 = vsel %vm2460, %v2400, 0
        %v2698 = vsel %vm2460, %v2401, 0
        %v2701 = vsel %vm2460, %v2402, 0
        %v2704 = vsel %vm2460, %v2403, 0
        %v2707 = vsel %vm2460, %v2404, 0
        %v2710 = vsel %vm2460, %v2405, 0
        %v2713 = vsel %vm2460, %v2406, 0
        %v2716 = vsel %vm2460, %v2407, 0
        %v2719 = vsel %vm2460, %v2408, 0
        %v2722 = vsel %vm2460, %v2409, 0
        %v2725 = vsel %vm2460, %v2410, 0
        %v2728 = vsel %vm2460, %v2411, 0
        %v2731 = vsel %vm2460, %v2412, 0
        %v2734 = vsel %vm2460, %v2413, 0
        %2736 = vmatprep.subr.bf16.mxu0 0
        %2737 = vmatpush1.bf16.msra.mxu0 %v2682
        %2738 = vmatprep.subr.bf16.mxu0 0
        %2739 = vmatpush1.bf16.msra.mxu0 %v2683
        %2740 = vmatprep.subr.bf16.mxu0 0
        %2741 = vmatpush1.bf16.msra.mxu0 %v2684
        %2742 = vmatprep.subr.bf16.mxu0 0
        %2743 = vmatpush1.bf16.msra.mxu0 0
        %2744 = vmatprep.subr.bf16.mxu0 0
        %2745 = vmatpush1.bf16.msra.mxu0 0
        %2746 = vmatprep.subr.bf16.mxu0 0
        %2747 = vmatpush1.bf16.msra.mxu0 0
        %2748 = vmatprep.subr.bf16.mxu0 0
        %2749 = vmatpush1.bf16.msra.mxu0 0
        %2750 = vmatprep.subr.bf16.mxu0 0
        %2751 = vmatpush1.bf16.msra.mxu0 0
        %2752 = vmatprep.subr.bf16.mxu0 0
        %2753 = vmatpush1.bf16.msra.mxu0 0
        %2754 = vmatprep.subr.bf16.mxu0 0
        %2755 = vmatpush1.bf16.msra.mxu0 0
        %2756 = vmatprep.subr.bf16.mxu0 0
        %2757 = vmatpush1.bf16.msra.mxu0 0
        %2758 = vmatprep.subr.bf16.mxu0 0
        %2759 = vmatpush1.bf16.msra.mxu0 0
        %2760 = vmatprep.subr.bf16.mxu0 0
        %2761 = vmatpush1.bf16.msra.mxu0 0
        %2762 = vmatprep.subr.bf16.mxu0 0
        %2763 = vmatpush1.bf16.msra.mxu0 0
        %2764 = vmatprep.subr.bf16.mxu0 0
        %2765 = vmatpush1.bf16.msra.mxu0 0
        %2766 = vmatprep.subr.bf16.mxu0 0
        %2767 = vmatpush1.bf16.msra.mxu0 0
        %2768 = vmatprep.mubr.bf16.mxu0 0
        %2769 = vmatmul.mubr.bf16.gmra.mrb[0].mxu0 %v2689
        %v2770 = vpop.f32.mrb[0].mxu0
        %v2771 = vadd.f32 %v2544, %v2770
        %v2772 = vpop.f32.mrb[0].mxu0
        %v2773 = vpop.f32.mrb[0].mxu0
        %v2774 = vadd.f32 %v2547, %v2773
        %v2775 = vpop.f32.mrb[0].mxu0
        %2776 = vmatprep.mubr.bf16.mxu0 0
        %2777 = vmatmul.mubr.bf16.gmra.mrb[0].mxu0 %v2692
        %v2778 = vpop.f32.mrb[0].mxu0
        %v2779 = vadd.f32 %v2552, %v2778
        %v2780 = vpop.f32.mrb[0].mxu0
        %v2781 = vpop.f32.mrb[0].mxu0
        %v2782 = vadd.f32 %v2555, %v2781
        %v2783 = vpop.f32.mrb[0].mxu0
        %2784 = vmatprep.mubr.bf16.mxu0 0
        %2785 = vmatmul.mubr.bf16.gmra.mrb[0].mxu0 %v2695
        %v2786 = vpop.f32.mrb[0].mxu0
        %v2787 = vadd.f32 %v2560, %v2786
        %v2788 = vpop.f32.mrb[0].mxu0
        %v2789 = vpop.f32.mrb[0].mxu0
        %v2790 = vadd.f32 %v2563, %v2789
        %v2791 = vpop.f32.mrb[0].mxu0
        %2792 = vmatprep.mubr.bf16.mxu0 0
        %2793 = vmatmul.mubr.bf16.gmra.mrb[0].mxu0 %v2698
        %v2794 = vpop.f32.mrb[0].mxu0
        %v2795 = vadd.f32 %v2568, %v2794
        %v2796 = vpop.f32.mrb[0].mxu0
        %v2797 = vpop.f32.mrb[0].mxu0
        %v2798 = vadd.f32 %v2571, %v2797
        %v2799 = vpop.f32.mrb[0].mxu0
        %2800 = vmatprep.mubr.bf16.mxu0 0
        %2801 = vmatmul.mubr.bf16.gmra.mrb[0].mxu0 %v2701
        %v2802 = vpop.f32.mrb[0].mxu0
        %v2803 = vadd.f32 %v2576, %v2802
        %v2804 = vpop.f32.mrb[0].mxu0
        %v2805 = vpop.f32.mrb[0].mxu0
        %v2806 = vadd.f32 %v2579, %v2805
        %v2807 = vpop.f32.mrb[0].mxu0
        %2808 = vmatprep.mubr.bf16.mxu0 0
        %2809 = vmatmul.mubr.bf16.gmra.mrb[0].mxu0 %v2704
        %v2810 = vpop.f32.mrb[0].mxu0
        %v2811 = vadd.f32 %v2584, %v2810
        %v2812 = vpop.f32.mrb[0].mxu0
        %v2813 = vpop.f32.mrb[0].mxu0
        %v2814 = vadd.f32 %v2587, %v2813
        %v2815 = vpop.f32.mrb[0].mxu0
        %2816 = vmatprep.mubr.bf16.mxu0 0
        %2817 = vmatmul.mubr.bf16.gmra.mrb[0].mxu0 %v2707
        %v2818 = vpop.f32.mrb[0].mxu0
        %v2819 = vadd.f32 %v2592, %v2818
        %v2820 = vpop.f32.mrb[0].mxu0
        %v2821 = vpop.f32.mrb[0].mxu0
        %v2822 = vadd.f32 %v2595, %v2821
        %v2823 = vpop.f32.mrb[0].mxu0
        %2824 = vmatprep.mubr.bf16.mxu0 0
        %2825 = vmatmul.mubr.bf16.gmra.mrb[0].mxu0 %v2710
        %v2826 = vpop.f32.mrb[0].mxu0
        %v2827 = vadd.f32 %v2600, %v2826
        %v2828 = vpop.f32.mrb[0].mxu0
        %v2829 = vpop.f32.mrb[0].mxu0
        %v2830 = vadd.f32 %v2603, %v2829
        %v2831 = vpop.f32.mrb[0].mxu0
        %2832 = vmatprep.mubr.bf16.mxu0 0
        %2833 = vmatmul.mubr.bf16.gmra.mrb[0].mxu0 %v2713
        %v2834 = vpop.f32.mrb[0].mxu0
        %v2835 = vadd.f32 %v2608, %v2834
        %v2836 = vpop.f32.mrb[0].mxu0
        %v2837 = vpop.f32.mrb[0].mxu0
        %v2838 = vadd.f32 %v2611, %v2837
        %v2839 = vpop.f32.mrb[0].mxu0
        %2840 = vmatprep.mubr.bf16.mxu0 0
        %2841 = vmatmul.mubr.bf16.gmra.mrb[0].mxu0 %v2716
        %v2842 = vpop.f32.mrb[0].mxu0
        %v2843 = vadd.f32 %v2616, %v2842
        %v2844 = vpop.f32.mrb[0].mxu0
        %v2845 = vpop.f32.mrb[0].mxu0
        %v2846 = vadd.f32 %v2619, %v2845
        %v2847 = vpop.f32.mrb[0].mxu0
        %2848 = vmatprep.mubr.bf16.mxu0 0
        %2849 = vmatmul.mubr.bf16.gmra.mrb[0].mxu0 %v2719
        %v2850 = vpop.f32.mrb[0].mxu0
        %v2851 = vadd.f32 %v2624, %v2850
        %v2852 = vpop.f32.mrb[0].mxu0
        %v2853 = vpop.f32.mrb[0].mxu0
        %v2854 = vadd.f32 %v2627, %v2853
        %v2855 = vpop.f32.mrb[0].mxu0
        %2856 = vmatprep.mubr.bf16.mxu0 0
        %2857 = vmatmul.mubr.bf16.gmra.mrb[0].mxu0 %v2722
        %v2858 = vpop.f32.mrb[0].mxu0
        %v2859 = vadd.f32 %v2632, %v2858
        %v2860 = vpop.f32.mrb[0].mxu0
        %v2861 = vpop.f32.mrb[0].mxu0
        %v2862 = vadd.f32 %v2635, %v2861
        %v2863 = vpop.f32.mrb[0].mxu0
        %2864 = vmatprep.mubr.bf16.mxu0 0
        %2865 = vmatmul.mubr.bf16.gmra.mrb[0].mxu0 %v2725
        %v2866 = vpop.f32.mrb[0].mxu0
        %v2867 = vadd.f32 %v2640, %v2866
        %v2868 = vpop.f32.mrb[0].mxu0
        %v2869 = vpop.f32.mrb[0].mxu0
        %v2870 = vadd.f32 %v2643, %v2869
        %v2871 = vpop.f32.mrb[0].mxu0
        %2872 = vmatprep.mubr.bf16.mxu0 0
        %2873 = vmatmul.mubr.bf16.gmra.mrb[0].mxu0 %v2728
        %v2874 = vpop.f32.mrb[0].mxu0
        %v2875 = vadd.f32 %v2648, %v2874
        %v2876 = vpop.f32.mrb[0].mxu0
        %v2877 = vpop.f32.mrb[0].mxu0
        %v2878 = vadd.f32 %v2651, %v2877
        %v2879 = vpop.f32.mrb[0].mxu0
        %2880 = vmatprep.mubr.bf16.mxu0 0
        %2881 = vmatmul.mubr.bf16.gmra.mrb[0].mxu0 %v2731
        %v2882 = vpop.f32.mrb[0].mxu0
        %v2883 = vadd.f32 %v2656, %v2882
        %v2884 = vpop.f32.mrb[0].mxu0
        %v2885 = vpop.f32.mrb[0].mxu0
        %v2886 = vadd.f32 %v2659, %v2885
        %v2887 = vpop.f32.mrb[0].mxu0
        %2888 = vmatprep.mubr.bf16.mxu0 0
        %2889 = vmatmul.mubr.bf16.gmra.mrb[0].mxu0 %v2734
        %v2890 = vpop.f32.mrb[0].mxu0
        %v2891 = vadd.f32 %v2664, %v2890
        %v2892 = vpop.f32.mrb[0].mxu0
        %v2893 = vpop.f32.mrb[0].mxu0
        %v2894 = vadd.f32 %v2667, %v2893
        %v2895 = vpop.f32.mrb[0].mxu0
        %2896 = vdwg.mxu0
        %v2897 = vpack.c.bf16 %v2367, %v2366
        %v2898 = vpack.c.bf16 %v2369, %v2368
        %v2899 = vpack.c.bf16 %v2371, %v2370
        %v2900 = vpack.c.bf16 %v2373, %v2372
        %v2901 = vpack.c.bf16 %v2375, %v2374
        %v2902 = vpack.c.bf16 %v2377, %v2376
        %v2903 = vpack.c.bf16 %v2379, %v2378
        %v2904 = vpack.c.bf16 %v2381, %v2380
        %v2905 = vpack.c.bf16 %v2383, %v2382
        %v2906 = vpack.c.bf16 %v2385, %v2384
        %v2907 = vpack.c.bf16 %v2387, %v2386
        %v2908 = vpack.c.bf16 %v2389, %v2388
        %v2909 = vpack.c.bf16 %v2391, %v2390
        %v2910 = vpack.c.bf16 %v2393, %v2392
        %v2911 = vpack.c.bf16 %v2395, %v2394
        %v2912 = vpack.c.bf16 %v2397, %v2396
        %v2913 = vld [vmem:[%s3 + $0x30] sm:$0xf]
        %v2914 = vld [vmem:[%s3 + $0x34] sm:$0xf]
        %v2915 = vld [vmem:[%s3 + $0x38] sm:$0xf]
        %v2916 = vld [vmem:[%s3 + $0x3c] sm:$0xf]
        %v2917 = vld [vmem:[%s3 + $0x40] sm:$0xf]
        %v2918 = vld [vmem:[%s3 + $0x44] sm:$0xf]
        %v2925 = vunpack.c.l.b16 %v2913
        %v2926 = vunpack.c.l.b16 %v2914
        %v2927 = vunpack.c.l.b16 %v2915
        %v2928 = vunpack.c.l.b16 %v2916
        %v2929 = vunpack.c.l.b16 %v2917
        %v2930 = vunpack.c.l.b16 %v2918
        %v2931 = vpack.c.b16 %v2926, %v2925
        %v2932 = vpack.c.b16 %v2928, %v2927
        %v2933 = vpack.c.b16 %v2930, %v2929
        %v2938 = vsel %vm2460, %v2897, 0
        %v2941 = vsel %vm2460, %v2898, 0
        %v2944 = vsel %vm2460, %v2899, 0
        %v2947 = vsel %vm2460, %v2900, 0
        %v2950 = vsel %vm2460, %v2901, 0
        %v2953 = vsel %vm2460, %v2902, 0
        %v2956 = vsel %vm2460, %v2903, 0
        %v2959 = vsel %vm2460, %v2904, 0
        %v2962 = vsel %vm2460, %v2905, 0
        %v2965 = vsel %vm2460, %v2906, 0
        %v2968 = vsel %vm2460, %v2907, 0
        %v2971 = vsel %vm2460, %v2908, 0
        %v2974 = vsel %vm2460, %v2909, 0
        %v2977 = vsel %vm2460, %v2910, 0
        %v2980 = vsel %vm2460, %v2911, 0
        %v2983 = vsel %vm2460, %v2912, 0
        %2985 = vmatprep.subr.bf16.mxu0 0
        %2986 = vmatpush1.bf16.msra.mxu0 %v2931
        %2987 = vmatprep.subr.bf16.mxu0 0
        %2988 = vmatpush1.bf16.msra.mxu0 %v2932
        %2989 = vmatprep.subr.bf16.mxu0 0
        %2990 = vmatpush1.bf16.msra.mxu0 %v2933
        %2991 = vmatprep.subr.bf16.mxu0 0
        %2992 = vmatpush1.bf16.msra.mxu0 0
        %2993 = vmatprep.subr.bf16.mxu0 0
        %2994 = vmatpush1.bf16.msra.mxu0 0
        %2995 = vmatprep.subr.bf16.mxu0 0
        %2996 = vmatpush1.bf16.msra.mxu0 0
        %2997 = vmatprep.subr.bf16.mxu0 0
        %2998 = vmatpush1.bf16.msra.mxu0 0
        %2999 = vmatprep.subr.bf16.mxu0 0
        %3000 = vmatpush1.bf16.msra.mxu0 0
        %3001 = vmatprep.subr.bf16.mxu0 0
        %3002 = vmatpush1.bf16.msra.mxu0 0
        %3003 = vmatprep.subr.bf16.mxu0 0
        %3004 = vmatpush1.bf16.msra.mxu0 0
        %3005 = vmatprep.subr.bf16.mxu0 0
        %3006 = vmatpush1.bf16.msra.mxu0 0
        %3007 = vmatprep.subr.bf16.mxu0 0
        %3008 = vmatpush1.bf16.msra.mxu0 0
        %3009 = vmatprep.subr.bf16.mxu0 0
        %3010 = vmatpush1.bf16.msra.mxu0 0
        %3011 = vmatprep.subr.bf16.mxu0 0
        %3012 = vmatpush1.bf16.msra.mxu0 0
        %3013 = vmatprep.subr.bf16.mxu0 0
        %3014 = vmatpush1.bf16.msra.mxu0 0
        %3015 = vmatprep.subr.bf16.mxu0 0
        %3016 = vmatpush1.bf16.msra.mxu0 0
        %3017 = vmatprep.mubr.bf16.mxu0 0
        %3018 = vmatmul.mubr.bf16.gmra.mrb[0].mxu0 %v2938
        %v3019 = vpop.f32.mrb[0].mxu0
        %v3020 = vadd.f32 0.0, %v3019
        %v3021 = vpop.f32.mrb[0].mxu0
        %v3022 = vpop.f32.mrb[0].mxu0
        %v3023 = vadd.f32 0.0, %v3022
        %v3024 = vpop.f32.mrb[0].mxu0
        %3025 = vmatprep.mubr.bf16.mxu0 0
        %3026 = vmatmul.mubr.bf16.gmra.mrb[0].mxu0 %v2941
        %v3027 = vpop.f32.mrb[0].mxu0
        %v3028 = vadd.f32 0.0, %v3027
        %v3029 = vpop.f32.mrb[0].mxu0
        %v3030 = vpop.f32.mrb[0].mxu0
        %v3031 = vadd.f32 0.0, %v3030
        %v3032 = vpop.f32.mrb[0].mxu0
        %3033 = vmatprep.mubr.bf16.mxu0 0
        %3034 = vmatmul.mubr.bf16.gmra.mrb[0].mxu0 %v2944
        %v3035 = vpop.f32.mrb[0].mxu0
        %v3036 = vadd.f32 0.0, %v3035
        %v3037 = vpop.f32.mrb[0].mxu0
        %v3038 = vpop.f32.mrb[0].mxu0
        %v3039 = vadd.f32 0.0, %v3038
        %v3040 = vpop.f32.mrb[0].mxu0
        %3041 = vmatprep.mubr.bf16.mxu0 0
        %3042 = vmatmul.mubr.bf16.gmra.mrb[0].mxu0 %v2947
        %v3043 = vpop.f32.mrb[0].mxu0
        %v3044 = vadd.f32 0.0, %v3043
        %v3045 = vpop.f32.mrb[0].mxu0
        %v3046 = vpop.f32.mrb[0].mxu0
        %v3047 = vadd.f32 0.0, %v3046
        %v3048 = vpop.f32.mrb[0].mxu0
        %3049 = vmatprep.mubr.bf16.mxu0 0
        %3050 = vmatmul.mubr.bf16.gmra.mrb[0].mxu0 %v2950
        %v3051 = vpop.f32.mrb[0].mxu0
        %v3052 = vadd.f32 0.0, %v3051
        %v3053 = vpop.f32.mrb[0].mxu0
        %v3054 = vpop.f32.mrb[0].mxu0
        %v3055 = vadd.f32 0.0, %v3054
        %v3056 = vpop.f32.mrb[0].mxu0
        %3057 = vmatprep.mubr.bf16.mxu0 0
        %3058 = vmatmul.mubr.bf16.gmra.mrb[0].mxu0 %v2953
        %v3059 = vpop.f32.mrb[0].mxu0
        %v3060 = vadd.f32 0.0, %v3059
        %v3061 = vpop.f32.mrb[0].mxu0
        %v3062 = vpop.f32.mrb[0].mxu0
        %v3063 = vadd.f32 0.0, %v3062
        %v3064 = vpop.f32.mrb[0].mxu0
        %3065 = vmatprep.mubr.bf16.mxu0 0
        %3066 = vmatmul.mubr.bf16.gmra.mrb[0].mxu0 %v2956
        %v3067 = vpop.f32.mrb[0].mxu0
        %v3068 = vadd.f32 0.0, %v3067
        %v3069 = vpop.f32.mrb[0].mxu0
        %v3070 = vpop.f32.mrb[0].mxu0
        %v3071 = vadd.f32 0.0, %v3070
        %v3072 = vpop.f32.mrb[0].mxu0
        %3073 = vmatprep.mubr.bf16.mxu0 0
        %3074 = vmatmul.mubr.bf16.gmra.mrb[0].mxu0 %v2959
        %v3075 = vpop.f32.mrb[0].mxu0
        %v3076 = vadd.f32 0.0, %v3075
        %v3077 = vpop.f32.mrb[0].mxu0
        %v3078 = vpop.f32.mrb[0].mxu0
        %v3079 = vadd.f32 0.0, %v3078
        %v3080 = vpop.f32.mrb[0].mxu0
        %3081 = vmatprep.mubr.bf16.mxu0 0
        %3082 = vmatmul.mubr.bf16.gmra.mrb[0].mxu0 %v2962
        %v3083 = vpop.f32.mrb[0].mxu0
        %v3084 = vadd.f32 0.0, %v3083
        %v3085 = vpop.f32.mrb[0].mxu0
        %v3086 = vpop.f32.mrb[0].mxu0
        %v3087 = vadd.f32 0.0, %v3086
        %v3088 = vpop.f32.mrb[0].mxu0
        %3089 = vmatprep.mubr.bf16.mxu0 0
        %3090 = vmatmul.mubr.bf16.gmra.mrb[0].mxu0 %v2965
        %v3091 = vpop.f32.mrb[0].mxu0
        %v3092 = vadd.f32 0.0, %v3091
        %v3093 = vpop.f32.mrb[0].mxu0
        %v3094 = vpop.f32.mrb[0].mxu0
        %v3095 = vadd.f32 0.0, %v3094
        %v3096 = vpop.f32.mrb[0].mxu0
        %3097 = vmatprep.mubr.bf16.mxu0 0
        %3098 = vmatmul.mubr.bf16.gmra.mrb[0].mxu0 %v2968
        %v3099 = vpop.f32.mrb[0].mxu0
        %v3100 = vadd.f32 0.0, %v3099
        %v3101 = vpop.f32.mrb[0].mxu0
        %v3102 = vpop.f32.mrb[0].mxu0
        %v3103 = vadd.f32 0.0, %v3102
        %v3104 = vpop.f32.mrb[0].mxu0
        %3105 = vmatprep.mubr.bf16.mxu0 0
        %3106 = vmatmul.mubr.bf16.gmra.mrb[0].mxu0 %v2971
        %v3107 = vpop.f32.mrb[0].mxu0
        %v3108 = vadd.f32 0.0, %v3107
        %v3109 = vpop.f32.mrb[0].mxu0
        %v3110 = vpop.f32.mrb[0].mxu0
        %v3111 = vadd.f32 0.0, %v3110
        %v3112 = vpop.f32.mrb[0].mxu0
        %3113 = vmatprep.mubr.bf16.mxu0 0
        %3114 = vmatmul.mubr.bf16.gmra.mrb[0].mxu0 %v2974
        %v3115 = vpop.f32.mrb[0].mxu0
        %v3116 = vadd.f32 0.0, %v3115
        %v3117 = vpop.f32.mrb[0].mxu0
        %v3118 = vpop.f32.mrb[0].mxu0
        %v3119 = vadd.f32 0.0, %v3118
        %v3120 = vpop.f32.mrb[0].mxu0
        %3121 = vmatprep.mubr.bf16.mxu0 0
        %3122 = vmatmul.mubr.bf16.gmra.mrb[0].mxu0 %v2977
        %v3123 = vpop.f32.mrb[0].mxu0
        %v3124 = vadd.f32 0.0, %v3123
        %v3125 = vpop.f32.mrb[0].mxu0
        %v3126 = vpop.f32.mrb[0].mxu0
        %v3127 = vadd.f32 0.0, %v3126
        %v3128 = vpop.f32.mrb[0].mxu0
        %3129 = vmatprep.mubr.bf16.mxu0 0
        %3130 = vmatmul.mubr.bf16.gmra.mrb[0].mxu0 %v2980
        %v3131 = vpop.f32.mrb[0].mxu0
        %v3132 = vadd.f32 0.0, %v3131
        %v3133 = vpop.f32.mrb[0].mxu0
        %v3134 = vpop.f32.mrb[0].mxu0
        %v3135 = vadd.f32 0.0, %v3134
        %v3136 = vpop.f32.mrb[0].mxu0
        %3137 = vmatprep.mubr.bf16.mxu0 0
        %3138 = vmatmul.mubr.bf16.gmra.mrb[0].mxu0 %v2983
        %v3139 = vpop.f32.mrb[0].mxu0
        %v3140 = vadd.f32 0.0, %v3139
        %v3141 = vpop.f32.mrb[0].mxu0
        %v3142 = vpop.f32.mrb[0].mxu0
        %v3143 = vadd.f32 0.0, %v3142
        %v3144 = vpop.f32.mrb[0].mxu0
        %3145 = vdwg.mxu0
        %v3146 = vadd.f32 %v2771, %v3020
        %v3147 = vadd.f32 %v2774, %v3023
        %v3148 = vadd.f32 %v2779, %v3028
        %v3149 = vadd.f32 %v2782, %v3031
        %v3150 = vadd.f32 %v2787, %v3036
        %v3151 = vadd.f32 %v2790, %v3039
        %v3152 = vadd.f32 %v2795, %v3044
        %v3153 = vadd.f32 %v2798, %v3047
        %v3154 = vadd.f32 %v2803, %v3052
        %v3155 = vadd.f32 %v2806, %v3055
        %v3156 = vadd.f32 %v2811, %v3060
        %v3157 = vadd.f32 %v2814, %v3063
        %v3158 = vadd.f32 %v2819, %v3068
        %v3159 = vadd.f32 %v2822, %v3071
        %v3160 = vadd.f32 %v2827, %v3076
        %v3161 = vadd.f32 %v2830, %v3079
        %v3162 = vadd.f32 %v2835, %v3084
        %v3163 = vadd.f32 %v2838, %v3087
        %v3164 = vadd.f32 %v2843, %v3092
        %v3165 = vadd.f32 %v2846, %v3095
        %v3166 = vadd.f32 %v2851, %v3100
        %v3167 = vadd.f32 %v2854, %v3103
        %v3168 = vadd.f32 %v2859, %v3108
        %v3169 = vadd.f32 %v2862, %v3111
        %v3170 = vadd.f32 %v2867, %v3116
        %v3171 = vadd.f32 %v2870, %v3119
        %v3172 = vadd.f32 %v2875, %v3124
        %v3173 = vadd.f32 %v2878, %v3127
        %v3174 = vadd.f32 %v2883, %v3132
        %v3175 = vadd.f32 %v2886, %v3135
        %v3176 = vadd.f32 %v2891, %v3140
        %v3177 = vadd.f32 %v2894, %v3143
        %v3178 = vld [vmem:[%s4] sm:$0x1]
        %v3180 = vlaneseq
        %v3181 = vshrl.u32 %v3180, 7
        %v3182 = vsub.s32 0, %v3181
        %v3183 = vrot.slane %v3178, %v3182
        %v3185 = vadd.f32 %v3146, %v3183
        %v3186 = vadd.f32 %v3147, %v3183
        %v3187 = vadd.f32 %v3148, %v3183
        %v3188 = vadd.f32 %v3149, %v3183
        %v3189 = vadd.f32 %v3150, %v3183
        %v3190 = vadd.f32 %v3151, %v3183
        %v3191 = vadd.f32 %v3152, %v3183
        %v3192 = vadd.f32 %v3153, %v3183
        %v3193 = vadd.f32 %v3154, %v3183
        %v3194 = vadd.f32 %v3155, %v3183
        %v3195 = vadd.f32 %v3156, %v3183
        %v3196 = vadd.f32 %v3157, %v3183
        %v3197 = vadd.f32 %v3158, %v3183
        %v3198 = vadd.f32 %v3159, %v3183
        %v3199 = vadd.f32 %v3160, %v3183
        %v3200 = vadd.f32 %v3161, %v3183
        %v3201 = vadd.f32 %v3162, %v3183
        %v3202 = vadd.f32 %v3163, %v3183
        %v3203 = vadd.f32 %v3164, %v3183
        %v3204 = vadd.f32 %v3165, %v3183
        %v3205 = vadd.f32 %v3166, %v3183
        %v3206 = vadd.f32 %v3167, %v3183
        %v3207 = vadd.f32 %v3168, %v3183
        %v3208 = vadd.f32 %v3169, %v3183
        %v3209 = vadd.f32 %v3170, %v3183
        %v3210 = vadd.f32 %v3171, %v3183
        %v3211 = vadd.f32 %v3172, %v3183
        %v3212 = vadd.f32 %v3173, %v3183
        %v3213 = vadd.f32 %v3174, %v3183
        %v3214 = vadd.f32 %v3175, %v3183
        %v3215 = vadd.f32 %v3176, %v3183
        %v3216 = vadd.f32 %v3177, %v3183
        %v3217 = vmax.f32 %v3185, 0.0
        %v3218 = vmax.f32 %v3186, 0.0
        %v3219 = vmax.f32 %v3187, 0.0
        %v3220 = vmax.f32 %v3188, 0.0
        %v3221 = vmax.f32 %v3189, 0.0
        %v3222 = vmax.f32 %v3190, 0.0
        %v3223 = vmax.f32 %v3191, 0.0
        %v3224 = vmax.f32 %v3192, 0.0
        %v3225 = vmax.f32 %v3193, 0.0
        %v3226 = vmax.f32 %v3194, 0.0
        %v3227 = vmax.f32 %v3195, 0.0
        %v3228 = vmax.f32 %v3196, 0.0
        %v3229 = vmax.f32 %v3197, 0.0
        %v3230 = vmax.f32 %v3198, 0.0
        %v3231 = vmax.f32 %v3199, 0.0
        %v3232 = vmax.f32 %v3200, 0.0
        %v3233 = vmax.f32 %v3201, 0.0
        %v3234 = vmax.f32 %v3202, 0.0
        %v3235 = vmax.f32 %v3203, 0.0
        %v3236 = vmax.f32 %v3204, 0.0
        %v3237 = vmax.f32 %v3205, 0.0
        %v3238 = vmax.f32 %v3206, 0.0
        %v3239 = vmax.f32 %v3207, 0.0
        %v3240 = vmax.f32 %v3208, 0.0
        %v3241 = vmax.f32 %v3209, 0.0
        %v3242 = vmax.f32 %v3210, 0.0
        %v3243 = vmax.f32 %v3211, 0.0
        %v3244 = vmax.f32 %v3212, 0.0
        %v3245 = vmax.f32 %v3213, 0.0
        %v3246 = vmax.f32 %v3214, 0.0
        %v3247 = vmax.f32 %v3215, 0.0
        %v3248 = vmax.f32 %v3216, 0.0
        %3249 = vst [vmem:[%s217] sm:$0xff] %v3217
        %3250 = vst [vmem:[%s217 + $0x8] sm:$0xff] %v3218
        %3251 = vst [vmem:[%s217 + $0x10] sm:$0xff] %v3219
        %3252 = vst [vmem:[%s217 + $0x18] sm:$0xff] %v3220
        %3253 = vst [vmem:[%s217 + $0x20] sm:$0xff] %v3221
        %3254 = vst [vmem:[%s217 + $0x28] sm:$0xff] %v3222
        %3255 = vst [vmem:[%s217 + $0x30] sm:$0xff] %v3223
        %3256 = vst [vmem:[%s217 + $0x38] sm:$0xff] %v3224
        %3257 = vst [vmem:[%s217 + $0x40] sm:$0xff] %v3225
        %3258 = vst [vmem:[%s217 + $0x48] sm:$0xff] %v3226
        %3259 = vst [vmem:[%s217 + $0x50] sm:$0xff] %v3227
        %3260 = vst [vmem:[%s217 + $0x58] sm:$0xff] %v3228
        %3261 = vst [vmem:[%s217 + $0x60] sm:$0xff] %v3229
        %3262 = vst [vmem:[%s217 + $0x68] sm:$0xff] %v3230
        %3263 = vst [vmem:[%s217 + $0x70] sm:$0xff] %v3231
        %3264 = vst [vmem:[%s217 + $0x78] sm:$0xff] %v3232
        %3265 = vst [vmem:[%s217 + $0x80] sm:$0xff] %v3233
        %3266 = vst [vmem:[%s217 + $0x88] sm:$0xff] %v3234
        %3267 = vst [vmem:[%s217 + $0x90] sm:$0xff] %v3235
        %3268 = vst [vmem:[%s217 + $0x98] sm:$0xff] %v3236
        %3269 = vst [vmem:[%s217 + $0xa0] sm:$0xff] %v3237
        %3270 = vst [vmem:[%s217 + $0xa8] sm:$0xff] %v3238
        %3271 = vst [vmem:[%s217 + $0xb0] sm:$0xff] %v3239
        %3272 = vst [vmem:[%s217 + $0xb8] sm:$0xff] %v3240
        %3273 = vst [vmem:[%s217 + $0xc0] sm:$0xff] %v3241
        %3274 = vst [vmem:[%s217 + $0xc8] sm:$0xff] %v3242
        %3275 = vst [vmem:[%s217 + $0xd0] sm:$0xff] %v3243
        %3276 = vst [vmem:[%s217 + $0xd8] sm:$0xff] %v3244
        %3277 = vst [vmem:[%s217 + $0xe0] sm:$0xff] %v3245
        %3278 = vst [vmem:[%s217 + $0xe8] sm:$0xff] %v3246
        %3279 = vst [vmem:[%s217 + $0xf0] sm:$0xff] %v3247
        %3280 = vst [vmem:[%s217 + $0xf8] sm:$0xff] %v3248
        %s3281 = sand.u32 %s137, 1
        %s3282 = scalar_lea.sflag [#allocation3], %s3281
        %s3283 = sand.u32 %s137, 1
        %s3284 = smul.addr %s3283, 256
        %s3285 = scalar_lea.vmem [#allocation2], %s3284
        // Predicated region
        $region41: #{fire_forward.1} parent=39 // pred_check
          %p3286 = pneg %p147
        $region42: #{fire_forward.1} parent=39 // pred_check_branch
          %3288 = sbr.rel (%p3286) target = $region44
        $region43: #{fire_forward.1} parent=39 // pred_region
          %s3290 = ssub.s32 4096, 4096
          %3291 = vsyncadd %s3282, %s3290
          %s3292 = smul.addr %s19, 32
          %s3293 = smul.addr %s3292, 128
          %s3294 = scalar_lea.hbm %s5, %s3293
          %s3295 = sshll.u32 %s3285, 4
          %s3296 = int_to_ptr.vmem [resolvable:$true] %s3295
          %3301 = dma.vmem_to_hbm [thread:$0]  %s3296, 4096, %s3294, %s3282, 128, 128, 8
        $region44: #{fire_forward.1} parent=39 // pred_fallthru
          _
      $region40: #{fire_forward.1} parent=5 // pred_fallthru
        _
      %p3302 = scmp.le.s32.totalorder 2, %s14
      // Predicated region
      $region45: #{fire_forward.1} parent=5 // pred_check
        %p3303 = pneg %p3302
      $region46: #{fire_forward.1} parent=5 // pred_check_branch
        %3305 = sbr.rel (%p3303) target = $region48
      $region47: #{fire_forward.1} parent=5 // pred_region
        %s3306 = ssub.s32 %s14, 2
        // Predicated region
        $region49: #{fire_forward.1} parent=47 // pred_check
          %p3307 = pneg %p153
        $region50: #{fire_forward.1} parent=47 // pred_check_branch
          %3309 = sbr.rel (%p3307) target = $region52
        $region51: #{fire_forward.1} parent=47 // pred_region
          %s3310 = sand.u32 %s138, 1
          %s3311 = scalar_lea.sflag [#allocation3], %s3310
          %s3312 = sand.u32 %s138, 1
          %s3313 = smul.addr %s3312, 256
          %s3314 = scalar_lea.vmem [#allocation2], %s3313
          %3315 = dma.done %s3311, 4096
        $region52: #{fire_forward.1} parent=47 // pred_fallthru
          _
      $region48: #{fire_forward.1} parent=5 // pred_fallthru
        _
    $region6: #{fire_forward.1} parent=1 // loop_footer
      %s18 = sadd.s32 1, %s14
    $region7: #{fire_forward.1} parent=1 // loop_footer_branch
      %13 = sbr.rel target = $region3
    $region8: #{fire_forward.1} parent=1 // loop_exit
      _
    %3316 = vsyncpa [#allocation3], 1
    %s3317 = scalar_lea.sflag [#allocation3], 1
    %3318 = vsyncpa %s3317, 1

</llo_original>
